<compile_context>
chip_gen: v7x
topology: tpu7x:2x2x1
jax: 0.10.0
libtpu: 0.0.40
codegen_flags: <defaults>
</compile_context>

<pallas_src>
import jax
import jax.numpy as jnp
from jax import lax
from jax.experimental import pallas as pl
from jax.experimental.pallas import tpu as pltpu

NEG = -1e30  # "minus infinity" for padded CRF tags (finite: avoids inf-inf NaNs)


# -----------------------------------------------------------------------------
# Fused kernel: BiLSTM recurrence + hidden2tag + emission mask + viterbi forward
# -----------------------------------------------------------------------------
def bilstm_crf_kernel(emb_ref, wih_ref, b_ref, wrec_ref, wout_ref, bout_ref,
                      mask_ref, trans_ref, start_ref, end_ref,
                      hist_ref, score_ref,
                      gx_ref, hs_ref, emis_ref, maskb_ref):
    T, B, Kp = hist_ref.shape
    Hd2 = hs_ref.shape[1]          # 2 * Hd (bidirectional hidden width)
    Hd = Hd2 // 2
    G = 4 * Hd                     # gate-block width per direction (i,f,g,o)

    # ---- hoisted input projection: one big bf16 MXU matmul, lane-dense output ----
    # columns [0:4Hd] = forward gates (i,f,g,o), [4Hd:8Hd] = backward gates.
    gx_ref[...] = (jnp.dot(emb_ref[...], wih_ref[...],
                           preferred_element_type=jnp.float32) + b_ref[...])

    wrec = wrec_ref[...]                                             # (2Hd, 8Hd) bf16 block-diag
    fwd_lane = lax.broadcasted_iota(jnp.int32, (B, 2 * G), 1) < G    # hoisted lane mask

    def cell(pre, c):   # pre: (B, 4*Hd) f32, PyTorch gate order i, f, g, o
        i = jax.nn.sigmoid(pre[:, 0:Hd])
        f = jax.nn.sigmoid(pre[:, Hd:2 * Hd])
        g = jnp.tanh(pre[:, 2 * Hd:3 * Hd])
        o = jax.nn.sigmoid(pre[:, 3 * Hd:4 * Hd])
        c_new = f * c + i * g
        return o * jnp.tanh(c_new), c_new

    # ---- both directions in a single time loop (independent carries) ----
    def step(s, carry):
        h_f, c_f, h_b, c_b = carry
        rf = pl.multiple_of(s * B, B)              # forward timestep row offset
        rb = pl.multiple_of((T - 1 - s) * B, B)    # backward timestep row offset
        # one full-vreg-width (B, 8Hd) load per direction, merged with one select
        px = jnp.where(fwd_lane, gx_ref[pl.ds(rf, B), :], gx_ref[pl.ds(rb, B), :])
        # single 128-lane recurrent matmul for BOTH directions (block-diag weight)
        h_cat = jnp.concatenate([h_f, h_b], axis=1).astype(jnp.bfloat16)   # (B, 2Hd)
        pre = px + jnp.dot(h_cat, wrec, preferred_element_type=jnp.float32)
        h_f, c_f = cell(pre[:, 0:G], c_f)
        h_b, c_b = cell(pre[:, G:2 * G], c_b)
        hs_ref[pl.ds(rf, B), 0:Hd] = h_f           # forward lanes of hidden scratch
        hs_ref[pl.ds(rb, B), Hd:2 * Hd] = h_b      # backward lanes
        return (h_f, c_f, h_b, c_b)

    zero = jnp.zeros((B, Hd), jnp.float32)
    # TODO(synk): for production-size T use a small unroll factor (e.g. 4) instead of
    # full unroll to bound vreg live ranges and compile time.
    lax.fori_loop(0, T, step, (zero, zero, zero, zero), unroll=True)

    # ---- hidden2tag (single MXU matmul) + emission masking (lane-dense K_pad) ----
    logits = (jnp.dot(hs_ref[...].astype(jnp.bfloat16), wout_ref[...],
                      preferred_element_type=jnp.float32) + bout_ref[...])
    emis_ref[...] = logits * mask_ref[...]                           # (T*B, Kp)
    # mask hoisted out of the viterbi hot path: broadcast once to tag lanes
    maskb_ref[...] = jnp.broadcast_to(mask_ref[...], (T * B, Kp))

    # ---- CRF viterbi forward recursion (emissions never leave VMEM) ----
    trans_bkk = jnp.broadcast_to(trans_ref[...][None, :, :], (B, Kp, Kp))  # hoisted
    idx_bkk = lax.broadcasted_iota(jnp.int32, (B, Kp, Kp), 1)              # hoisted
    hist_ref[0] = jnp.zeros((B, Kp), jnp.int32)
    score0 = start_ref[...] + emis_ref[0:B, :]                             # (B, Kp)

    def vit_step(t, score):
        r = pl.multiple_of(t * B, B)
        emis_t = emis_ref[pl.ds(r, B), :]                                  # (B, Kp)
        # nxt[b, i, j] = score[b, i] + trans[i, j] + emission[t, b, j]
        nxt = score[:, :, None] + trans_bkk + emis_t[:, None, :]
        max_val = jnp.max(nxt, axis=1)                                     # (B, Kp)
        arg = jnp.min(jnp.where(nxt == max_val[:, None, :], idx_bkk, Kp), axis=1)
        hist_ref[t] = arg                                                  # (B, Kp) int32
        m = maskb_ref[pl.ds(r, B), :]                                      # (B, Kp) lane-dense
        return jnp.where(m > 0.0, max_val, score)

    score = lax.fori_loop(1, T, vit_step, score0, unroll=True)
    score_ref[...] = score + end_ref[...]


# -----------------------------------------------------------------------------
# Wrapper
# -----------------------------------------------------------------------------
def _vmem():
    return pl.BlockSpec(memory_space=pltpu.MemorySpace.VMEM)


def run_bilstm_crf(emb_flat, mask_flat, params, T, B, K_pad):
    Hd2 = params['wrec'].shape[0]            # 2 * Hd
    TB = T * B
    # TODO(synk): for realistic NER sizes add a batch grid axis with
    # dimension_semantics=("parallel",) (uses v7x's 2nd TensorCore and keeps the
    # full-sequence scratches under v7x's 64 MiB VMEM); at B=2 a grid is pure
    # per-step overhead so it is omitted.  On v6e/v7x, wider Hd also wants the
    # 8*Hd gate width sized toward 256 MXU columns.
    return pl.pallas_call(
        bilstm_crf_kernel,
        out_shape=(jax.ShapeDtypeStruct((T, B, K_pad), jnp.int32),   # backpointer history
                   jax.ShapeDtypeStruct((B, K_pad), jnp.float32)),   # final viterbi scores
        in_specs=[_vmem()] * 10,
        out_specs=(_vmem(), _vmem()),
        scratch_shapes=[
            pltpu.VMEM((TB, 4 * Hd2), jnp.float32),   # input pre-activations (TB, 8*Hd)
            pltpu.VMEM((TB, Hd2), jnp.float32),       # [h_fwd | h_bwd] hidden states
            pltpu.VMEM((TB, K_pad), jnp.float32),     # masked emissions
            pltpu.VMEM((TB, K_pad), jnp.float32),     # mask broadcast to tag lanes
        ],
        compiler_params=pltpu.CompilerParams(vmem_limit_bytes=32 * 1024 * 1024),
    )(emb_flat, params['wih_all'], params['b_all'], params['wrec'],
      params['wout'], params['bout'], mask_flat,
      params['trans_pad'], params['start_pad'], params['end_pad'])


def viterbi_backtrack(hist, score, mask_bt):
    # hist: (T, B, K_pad) int32, score: (B, K) f32 (padding stripped), mask_bt: (B, T)
    T, B, _ = hist.shape
    seq_end = jnp.sum(mask_bt, axis=1).astype(jnp.int32) - 1      # (B,)
    best_last = jnp.argmax(score, axis=1).astype(jnp.int32)       # (B,)
    batch = jnp.arange(B)

    def step(cur, t):
        ptr = hist[t, batch, cur]                                 # (B,)
        new_cur = jnp.where(t <= seq_end, ptr, cur)
        return new_cur, new_cur

    ts = jnp.arange(T - 1, 0, -1)
    _, rev = lax.scan(step, best_last, ts)                        # positions T-2..0
    front = rev[::-1]                                             # positions 0..T-2
    tags = jnp.concatenate([front, best_last[None, :]], axis=0)   # (T, B)
    pos = jnp.arange(T)[:, None]
    tags = jnp.where(pos <= seq_end[None, :], tags, 0)            # zero-pad past seq end
    return tags.T                                                 # (B, T)


# -----------------------------------------------------------------------------
# Model
# -----------------------------------------------------------------------------
class NERLSTM_CRF_Pallas:
    def __init__(self, embedding_dim, hidden_dim, dropout, word2id, tag2id, key):
        self.embedding_dim = embedding_dim
        self.hidden_dim = hidden_dim
        self.vocab_size = len(word2id) + 1
        self.tag_size = len(tag2id)
        self.dropout_p = dropout          # TODO(synk): dropout is identity (eval mode only)
        Hd = hidden_dim // 2
        K = self.tag_size
        self.K_pad = ((K + 127) // 128) * 128          # lane-dense padded tag axis (>=128)
        Kp = self.K_pad
        E = embedding_dim

        keys = jax.random.split(key, 16)
        s = 0.1
        nrm = lambda k, shp: (s * jax.random.normal(k, shp)).astype(jnp.float32)

        self.embed_table = nrm(keys[0], (self.vocab_size, E))
        wih_f = nrm(keys[1], (E, 4 * Hd))
        wih_b = nrm(keys[4], (E, 4 * Hd))
        whh_f = nrm(keys[2], (Hd, 4 * Hd))
        whh_b = nrm(keys[5], (Hd, 4 * Hd))
        # NOTE: if loading real PyTorch weights these must be b_ih + b_hh (summed).
        b_f = nrm(keys[3], (1, 4 * Hd))
        b_b = nrm(keys[6], (1, 4 * Hd))
        wout = nrm(keys[7], (2 * Hd, K))              # hidden2tag
        bout = nrm(keys[8], (1, K))
        trans = nrm(keys[9], (K, K))                  # CRF transitions [from, to]
        start = nrm(keys[10], (1, K))                 # CRF start transitions
        end = nrm(keys[11], (1, K))                   # CRF end transitions

        # Block-diagonal recurrent weight: concat(h_f, h_b) @ wrec -> all 8 gate blocks.
        zblk = jnp.zeros((Hd, 4 * Hd), jnp.float32)
        wrec = jnp.concatenate(
            [jnp.concatenate([whh_f, zblk], axis=1),
             jnp.concatenate([zblk, whh_b], axis=1)], axis=0)       # (2Hd, 8Hd)

        self.params = dict(
            # [forward | backward] input-projection weights, bf16 for the MXU
            wih_all=jnp.concatenate([wih_f, wih_b], axis=1).astype(jnp.bfloat16),
            b_all=jnp.concatenate([b_f, b_b], axis=1),              # f32
            wrec=wrec.astype(jnp.bfloat16),                         # bf16 recurrent (f32 acc)
            # tag axis padded to Kp: extra wout/bout columns are zero,
            # transitions/start/end into padded tags are NEG (never win max/argmax)
            wout=jnp.zeros((2 * Hd, Kp), jnp.bfloat16).at[:, :K].set(
                wout.astype(jnp.bfloat16)),
            bout=jnp.zeros((1, Kp), jnp.float32).at[:, :K].set(bout),
            trans_pad=jnp.full((Kp, Kp), NEG, jnp.float32).at[:K, :K].set(trans),
            start_pad=jnp.full((1, Kp), NEG, jnp.float32).at[:, :K].set(start),
            end_pad=jnp.full((1, Kp), NEG, jnp.float32).at[:, :K].set(end),
        )

    def forward(self, x, mask):
        B, T = x.shape
        mask_f = mask.astype(jnp.float32)
        emb = self.embed_table[x]                                   # (B, T, E) gather (plain-JAX glue)
        # time-major flat layout for the kernel: row = t * B + b
        emb_flat = jnp.transpose(emb, (1, 0, 2)).reshape(T * B, -1).astype(jnp.bfloat16)
        mask_flat = jnp.transpose(mask_f, (1, 0)).reshape(T * B, 1)
        hist, score = run_bilstm_crf(emb_flat, mask_flat, self.params, T, B, self.K_pad)
        # strip tag padding before argmax/backtracking
        tags = viterbi_backtrack(hist, score[:, :self.tag_size], mask_f)   # (B, T) int32
        return tags


# -----------------------------------------------------------------------------
if __name__ == "__main__":
    key = jax.random.PRNGKey(0)
    k_param, k_x = jax.random.split(key)

    word2id = {f"w{i}": i for i in range(100)}    # vocab_size = 101
    tag2id = {f"T{i}": i for i in range(5)}       # tag_size = 5
    embedding_dim = 32
    hidden_dim = 32
    dropout = 0.5

    B, T = 2, 8
    model = NERLSTM_CRF_Pallas(embedding_dim, hidden_dim, dropout,
                               word2id, tag2id, k_param)

    x = jax.random.randint(k_x, (B, T), 0, model.vocab_size, dtype=jnp.int32)
    lengths = jnp.array([8, 5], dtype=jnp.int32)
    mask = (jnp.arange(T)[None, :] < lengths[:, None]).astype(jnp.float32)  # (B, T)

    tags = model.forward(x, mask)
    jax.block_until_ready(tags)
    print("KERNEL_OK")
</pallas_src>

<mosaic_0001>
module attributes {stable_mosaic.version = 11 : i64} {
  func.func @bilstm_crf_kernel(%arg0: memref<16x32xbf16, #tpu.memory_space<vmem>>, %arg1: memref<32x128xbf16, #tpu.memory_space<vmem>>, %arg2: memref<1x128xf32, #tpu.memory_space<vmem>>, %arg3: memref<32x128xbf16, #tpu.memory_space<vmem>>, %arg4: memref<32x128xbf16, #tpu.memory_space<vmem>>, %arg5: memref<1x128xf32, #tpu.memory_space<vmem>>, %arg6: memref<16x1xf32, #tpu.memory_space<vmem>>, %arg7: memref<128x128xf32, #tpu.memory_space<vmem>>, %arg8: memref<1x128xf32, #tpu.memory_space<vmem>>, %arg9: memref<1x128xf32, #tpu.memory_space<vmem>>, %arg10: memref<8x2x128xi32, #tpu.memory_space<vmem>>, %arg11: memref<2x128xf32, #tpu.memory_space<vmem>>, %arg12: memref<16x128xf32, #tpu.memory_space<vmem>>, %arg13: memref<16x32xf32, #tpu.memory_space<vmem>>, %arg14: memref<16x128xf32, #tpu.memory_space<vmem>>, %arg15: memref<16x128xf32, #tpu.memory_space<vmem>>) attributes {dimension_semantics = [], scalar_prefetch = 0 : i64, scratch_operands = 4 : i64, tpu.core_type = #tpu.core_type<tc>} {
    %c0 = arith.constant 0 : index
    %c0_0 = arith.constant 0 : index
    %0 = vector.load %arg0[%c0, %c0_0] : memref<16x32xbf16, #tpu.memory_space<vmem>>, vector<16x32xbf16>
    %c0_1 = arith.constant 0 : index
    %c0_2 = arith.constant 0 : index
    %1 = vector.load %arg1[%c0_1, %c0_2] : memref<32x128xbf16, #tpu.memory_space<vmem>>, vector<32x128xbf16>
    %cst = arith.constant dense<0.000000e+00> : vector<16x128xf32>
    %2 = tpu.matmul %0, %1, %cst {dimension_numbers = #tpu.dot_dimension_numbers<[1], [0], [0], [1], [0, 0, 1, 1], [], []>} : vector<16x32xbf16>, vector<32x128xbf16>, vector<16x128xf32> -> vector<16x128xf32>
    %c0_3 = arith.constant 0 : index
    %c0_4 = arith.constant 0 : index
    %3 = vector.load %arg2[%c0_3, %c0_4] : memref<1x128xf32, #tpu.memory_space<vmem>>, vector<1x128xf32>
    %4 = vector.broadcast %3 : vector<1x128xf32> to vector<16x128xf32>
    %5 = arith.addf %2, %4 : vector<16x128xf32>
    %c0_5 = arith.constant 0 : index
    %c0_6 = arith.constant 0 : index
    %6 = vector.load %arg12[%c0_5, %c0_6] : memref<16x128xf32, #tpu.memory_space<vmem>>, vector<16x128xf32>
    tpu.vector_store %arg12[%c0_5, %c0_6], %5 {strides = array<i32>} : memref<16x128xf32, #tpu.memory_space<vmem>>, vector<16x128xf32>,
    %c0_7 = arith.constant 0 : index
    %c0_8 = arith.constant 0 : index
    %7 = vector.load %arg3[%c0_7, %c0_8] : memref<32x128xbf16, #tpu.memory_space<vmem>>, vector<32x128xbf16>
    %8 = tpu.iota {dimensions = array<i32: 1>} : vector<2x128xi32>
    %c64_i32 = arith.constant 64 : i32
    %9 = vector.broadcast %c64_i32 : i32 to vector<2x128xi32>
    %10 = arith.cmpi slt, %8, %9 : vector<2x128xi32>
    %cst_9 = arith.constant 0.000000e+00 : f32
    %11 = vector.broadcast %cst_9 : f32 to vector<2x16xf32>
    %c0_i32 = arith.constant 0 : i32
    %c2_i32 = arith.constant 2 : i32
    %12 = arith.muli %c0_i32, %c2_i32 : i32
    %13 = tpu.assume_multiple %12, 2 : i32
    %c7_i32 = arith.constant 7 : i32
    %14 = arith.subi %c7_i32, %c0_i32 : i32
    %c2_i32_10 = arith.constant 2 : i32
    %15 = arith.muli %14, %c2_i32_10 : i32
    %16 = tpu.assume_multiple %15, 2 : i32
    %17 = arith.index_cast %13 : i32 to index
    %c0_11 = arith.constant 0 : index
    %18 = vector.load %arg12[%17, %c0_11] : memref<16x128xf32, #tpu.memory_space<vmem>>, vector<2x128xf32>
    %19 = arith.index_cast %16 : i32 to index
    %c0_12 = arith.constant 0 : index
    %20 = vector.load %arg12[%19, %c0_12] : memref<16x128xf32, #tpu.memory_space<vmem>>, vector<2x128xf32>
    %21 = arith.select %10, %18, %20 : vector<2x128xi1>, vector<2x128xf32>
    %22 = tpu.concatenate %11, %11 in 1 : vector<2x16xf32>, vector<2x16xf32> -> vector<2x32xf32>
    %23 = arith.truncf %22 : vector<2x32xf32> to vector<2x32xbf16>
    %cst_13 = arith.constant dense<0.000000e+00> : vector<2x128xf32>
    %24 = tpu.matmul %23, %7, %cst_13 {dimension_numbers = #tpu.dot_dimension_numbers<[1], [0], [0], [1], [0, 0, 1, 1], [], []>} : vector<2x32xbf16>, vector<32x128xbf16>, vector<2x128xf32> -> vector<2x128xf32>
    %25 = arith.addf %21, %24 : vector<2x128xf32>
    %26 = vector.extract_strided_slice %25 {offsets = [0, 0], sizes = [2, 64], strides = [1, 1]} : vector<2x128xf32> to vector<2x64xf32>
    %27 = vector.extract_strided_slice %26 {offsets = [0, 0], sizes = [2, 16], strides = [1, 1]} : vector<2x64xf32> to vector<2x16xf32>
    %28 = arith.negf %27 : vector<2x16xf32>
    %29 = math.exp %28 : vector<2x16xf32>
    %cst_14 = arith.constant 1.000000e+00 : f32
    %30 = vector.broadcast %cst_14 : f32 to vector<2x16xf32>
    %31 = arith.addf %30, %29 : vector<2x16xf32>
    %32 = arith.divf %30, %31 : vector<2x16xf32>
    %33 = vector.extract_strided_slice %26 {offsets = [0, 16], sizes = [2, 16], strides = [1, 1]} : vector<2x64xf32> to vector<2x16xf32>
    %34 = arith.negf %33 : vector<2x16xf32>
    %35 = math.exp %34 : vector<2x16xf32>
    %cst_15 = arith.constant 1.000000e+00 : f32
    %36 = vector.broadcast %cst_15 : f32 to vector<2x16xf32>
    %37 = arith.addf %36, %35 : vector<2x16xf32>
    %38 = arith.divf %36, %37 : vector<2x16xf32>
    %39 = vector.extract_strided_slice %26 {offsets = [0, 32], sizes = [2, 16], strides = [1, 1]} : vector<2x64xf32> to vector<2x16xf32>
    %40 = math.tanh %39 : vector<2x16xf32>
    %41 = vector.extract_strided_slice %26 {offsets = [0, 48], sizes = [2, 16], strides = [1, 1]} : vector<2x64xf32> to vector<2x16xf32>
    %42 = arith.negf %41 : vector<2x16xf32>
    %43 = math.exp %42 : vector<2x16xf32>
    %cst_16 = arith.constant 1.000000e+00 : f32
    %44 = vector.broadcast %cst_16 : f32 to vector<2x16xf32>
    %45 = arith.addf %44, %43 : vector<2x16xf32>
    %46 = arith.divf %44, %45 : vector<2x16xf32>
    %47 = arith.mulf %38, %11 : vector<2x16xf32>
    %48 = arith.mulf %32, %40 : vector<2x16xf32>
    %49 = arith.addf %47, %48 : vector<2x16xf32>
    %50 = math.tanh %49 : vector<2x16xf32>
    %51 = arith.mulf %46, %50 : vector<2x16xf32>
    %52 = vector.extract_strided_slice %25 {offsets = [0, 64], sizes = [2, 64], strides = [1, 1]} : vector<2x128xf32> to vector<2x64xf32>
    %53 = vector.extract_strided_slice %52 {offsets = [0, 0], sizes = [2, 16], strides = [1, 1]} : vector<2x64xf32> to vector<2x16xf32>
    %54 = arith.negf %53 : vector<2x16xf32>
    %55 = math.exp %54 : vector<2x16xf32>
    %cst_17 = arith.constant 1.000000e+00 : f32
    %56 = vector.broadcast %cst_17 : f32 to vector<2x16xf32>
    %57 = arith.addf %56, %55 : vector<2x16xf32>
    %58 = arith.divf %56, %57 : vector<2x16xf32>
    %59 = vector.extract_strided_slice %52 {offsets = [0, 16], sizes = [2, 16], strides = [1, 1]} : vector<2x64xf32> to vector<2x16xf32>
    %60 = arith.negf %59 : vector<2x16xf32>
    %61 = math.exp %60 : vector<2x16xf32>
    %cst_18 = arith.constant 1.000000e+00 : f32
    %62 = vector.broadcast %cst_18 : f32 to vector<2x16xf32>
    %63 = arith.addf %62, %61 : vector<2x16xf32>
    %64 = arith.divf %62, %63 : vector<2x16xf32>
    %65 = vector.extract_strided_slice %52 {offsets = [0, 32], sizes = [2, 16], strides = [1, 1]} : vector<2x64xf32> to vector<2x16xf32>
    %66 = math.tanh %65 : vector<2x16xf32>
    %67 = vector.extract_strided_slice %52 {offsets = [0, 48], sizes = [2, 16], strides = [1, 1]} : vector<2x64xf32> to vector<2x16xf32>
    %68 = arith.negf %67 : vector<2x16xf32>
    %69 = math.exp %68 : vector<2x16xf32>
    %cst_19 = arith.constant 1.000000e+00 : f32
    %70 = vector.broadcast %cst_19 : f32 to vector<2x16xf32>
    %71 = arith.addf %70, %69 : vector<2x16xf32>
    %72 = arith.divf %70, %71 : vector<2x16xf32>
    %73 = arith.mulf %64, %11 : vector<2x16xf32>
    %74 = arith.mulf %58, %66 : vector<2x16xf32>
    %75 = arith.addf %73, %74 : vector<2x16xf32>
    %76 = math.tanh %75 : vector<2x16xf32>
    %77 = arith.mulf %72, %76 : vector<2x16xf32>
    %78 = arith.index_cast %13 : i32 to index
    %c0_20 = arith.constant 0 : index
    %79 = vector.load %arg13[%78, %c0_20] : memref<16x32xf32, #tpu.memory_space<vmem>>, vector<2x16xf32>
    tpu.vector_store %arg13[%78, %c0_20], %51 {strides = array<i32>} : memref<16x32xf32, #tpu.memory_space<vmem>>, vector<2x16xf32>,
    %80 = arith.index_cast %16 : i32 to index
    %c16 = arith.constant 16 : index
    %81 = vector.load %arg13[%80, %c16] : memref<16x32xf32, #tpu.memory_space<vmem>>, vector<2x16xf32>
    tpu.vector_store %arg13[%80, %c16], %77 {strides = array<i32>} : memref<16x32xf32, #tpu.memory_space<vmem>>, vector<2x16xf32>,
    %c1_i32 = arith.constant 1 : i32
    %c2_i32_21 = arith.constant 2 : i32
    %82 = arith.muli %c1_i32, %c2_i32_21 : i32
    %83 = tpu.assume_multiple %82, 2 : i32
    %c7_i32_22 = arith.constant 7 : i32
    %84 = arith.subi %c7_i32_22, %c1_i32 : i32
    %c2_i32_23 = arith.constant 2 : i32
    %85 = arith.muli %84, %c2_i32_23 : i32
    %86 = tpu.assume_multiple %85, 2 : i32
    %87 = arith.index_cast %83 : i32 to index
    %c0_24 = arith.constant 0 : index
    %88 = vector.load %arg12[%87, %c0_24] : memref<16x128xf32, #tpu.memory_space<vmem>>, vector<2x128xf32>
    %89 = arith.index_cast %86 : i32 to index
    %c0_25 = arith.constant 0 : index
    %90 = vector.load %arg12[%89, %c0_25] : memref<16x128xf32, #tpu.memory_space<vmem>>, vector<2x128xf32>
    %91 = arith.select %10, %88, %90 : vector<2x128xi1>, vector<2x128xf32>
    %92 = tpu.concatenate %51, %77 in 1 : vector<2x16xf32>, vector<2x16xf32> -> vector<2x32xf32>
    %93 = arith.truncf %92 : vector<2x32xf32> to vector<2x32xbf16>
    %cst_26 = arith.constant dense<0.000000e+00> : vector<2x128xf32>
    %94 = tpu.matmul %93, %7, %cst_26 {dimension_numbers = #tpu.dot_dimension_numbers<[1], [0], [0], [1], [0, 0, 1, 1], [], []>} : vector<2x32xbf16>, vector<32x128xbf16>, vector<2x128xf32> -> vector<2x128xf32>
    %95 = arith.addf %91, %94 : vector<2x128xf32>
    %96 = vector.extract_strided_slice %95 {offsets = [0, 0], sizes = [2, 64], strides = [1, 1]} : vector<2x128xf32> to vector<2x64xf32>
    %97 = vector.extract_strided_slice %96 {offsets = [0, 0], sizes = [2, 16], strides = [1, 1]} : vector<2x64xf32> to vector<2x16xf32>
    %98 = arith.negf %97 : vector<2x16xf32>
    %99 = math.exp %98 : vector<2x16xf32>
    %cst_27 = arith.constant 1.000000e+00 : f32
    %100 = vector.broadcast %cst_27 : f32 to vector<2x16xf32>
    %101 = arith.addf %100, %99 : vector<2x16xf32>
    %102 = arith.divf %100, %101 : vector<2x16xf32>
    %103 = vector.extract_strided_slice %96 {offsets = [0, 16], sizes = [2, 16], strides = [1, 1]} : vector<2x64xf32> to vector<2x16xf32>
    %104 = arith.negf %103 : vector<2x16xf32>
    %105 = math.exp %104 : vector<2x16xf32>
    %cst_28 = arith.constant 1.000000e+00 : f32
    %106 = vector.broadcast %cst_28 : f32 to vector<2x16xf32>
    %107 = arith.addf %106, %105 : vector<2x16xf32>
    %108 = arith.divf %106, %107 : vector<2x16xf32>
    %109 = vector.extract_strided_slice %96 {offsets = [0, 32], sizes = [2, 16], strides = [1, 1]} : vector<2x64xf32> to vector<2x16xf32>
    %110 = math.tanh %109 : vector<2x16xf32>
    %111 = vector.extract_strided_slice %96 {offsets = [0, 48], sizes = [2, 16], strides = [1, 1]} : vector<2x64xf32> to vector<2x16xf32>
    %112 = arith.negf %111 : vector<2x16xf32>
    %113 = math.exp %112 : vector<2x16xf32>
    %cst_29 = arith.constant 1.000000e+00 : f32
    %114 = vector.broadcast %cst_29 : f32 to vector<2x16xf32>
    %115 = arith.addf %114, %113 : vector<2x16xf32>
    %116 = arith.divf %114, %115 : vector<2x16xf32>
    %117 = arith.mulf %108, %49 : vector<2x16xf32>
    %118 = arith.mulf %102, %110 : vector<2x16xf32>
    %119 = arith.addf %117, %118 : vector<2x16xf32>
    %120 = math.tanh %119 : vector<2x16xf32>
    %121 = arith.mulf %116, %120 : vector<2x16xf32>
    %122 = vector.extract_strided_slice %95 {offsets = [0, 64], sizes = [2, 64], strides = [1, 1]} : vector<2x128xf32> to vector<2x64xf32>
    %123 = vector.extract_strided_slice %122 {offsets = [0, 0], sizes = [2, 16], strides = [1, 1]} : vector<2x64xf32> to vector<2x16xf32>
    %124 = arith.negf %123 : vector<2x16xf32>
    %125 = math.exp %124 : vector<2x16xf32>
    %cst_30 = arith.constant 1.000000e+00 : f32
    %126 = vector.broadcast %cst_30 : f32 to vector<2x16xf32>
    %127 = arith.addf %126, %125 : vector<2x16xf32>
    %128 = arith.divf %126, %127 : vector<2x16xf32>
    %129 = vector.extract_strided_slice %122 {offsets = [0, 16], sizes = [2, 16], strides = [1, 1]} : vector<2x64xf32> to vector<2x16xf32>
    %130 = arith.negf %129 : vector<2x16xf32>
    %131 = math.exp %130 : vector<2x16xf32>
    %cst_31 = arith.constant 1.000000e+00 : f32
    %132 = vector.broadcast %cst_31 : f32 to vector<2x16xf32>
    %133 = arith.addf %132, %131 : vector<2x16xf32>
    %134 = arith.divf %132, %133 : vector<2x16xf32>
    %135 = vector.extract_strided_slice %122 {offsets = [0, 32], sizes = [2, 16], strides = [1, 1]} : vector<2x64xf32> to vector<2x16xf32>
    %136 = math.tanh %135 : vector<2x16xf32>
    %137 = vector.extract_strided_slice %122 {offsets = [0, 48], sizes = [2, 16], strides = [1, 1]} : vector<2x64xf32> to vector<2x16xf32>
    %138 = arith.negf %137 : vector<2x16xf32>
    %139 = math.exp %138 : vector<2x16xf32>
    %cst_32 = arith.constant 1.000000e+00 : f32
    %140 = vector.broadcast %cst_32 : f32 to vector<2x16xf32>
    %141 = arith.addf %140, %139 : vector<2x16xf32>
    %142 = arith.divf %140, %141 : vector<2x16xf32>
    %143 = arith.mulf %134, %75 : vector<2x16xf32>
    %144 = arith.mulf %128, %136 : vector<2x16xf32>
    %145 = arith.addf %143, %144 : vector<2x16xf32>
    %146 = math.tanh %145 : vector<2x16xf32>
    %147 = arith.mulf %142, %146 : vector<2x16xf32>
    %148 = arith.index_cast %83 : i32 to index
    %c0_33 = arith.constant 0 : index
    %149 = vector.load %arg13[%148, %c0_33] : memref<16x32xf32, #tpu.memory_space<vmem>>, vector<2x16xf32>
    tpu.vector_store %arg13[%148, %c0_33], %121 {strides = array<i32>} : memref<16x32xf32, #tpu.memory_space<vmem>>, vector<2x16xf32>,
    %150 = arith.index_cast %86 : i32 to index
    %c16_34 = arith.constant 16 : index
    %151 = vector.load %arg13[%150, %c16_34] : memref<16x32xf32, #tpu.memory_space<vmem>>, vector<2x16xf32>
    tpu.vector_store %arg13[%150, %c16_34], %147 {strides = array<i32>} : memref<16x32xf32, #tpu.memory_space<vmem>>, vector<2x16xf32>,
    %c2_i32_35 = arith.constant 2 : i32
    %c2_i32_36 = arith.constant 2 : i32
    %152 = arith.muli %c2_i32_35, %c2_i32_36 : i32
    %153 = tpu.assume_multiple %152, 2 : i32
    %c7_i32_37 = arith.constant 7 : i32
    %154 = arith.subi %c7_i32_37, %c2_i32_35 : i32
    %c2_i32_38 = arith.constant 2 : i32
    %155 = arith.muli %154, %c2_i32_38 : i32
    %156 = tpu.assume_multiple %155, 2 : i32
    %157 = arith.index_cast %153 : i32 to index
    %c0_39 = arith.constant 0 : index
    %158 = vector.load %arg12[%157, %c0_39] : memref<16x128xf32, #tpu.memory_space<vmem>>, vector<2x128xf32>
    %159 = arith.index_cast %156 : i32 to index
    %c0_40 = arith.constant 0 : index
    %160 = vector.load %arg12[%159, %c0_40] : memref<16x128xf32, #tpu.memory_space<vmem>>, vector<2x128xf32>
    %161 = arith.select %10, %158, %160 : vector<2x128xi1>, vector<2x128xf32>
    %162 = tpu.concatenate %121, %147 in 1 : vector<2x16xf32>, vector<2x16xf32> -> vector<2x32xf32>
    %163 = arith.truncf %162 : vector<2x32xf32> to vector<2x32xbf16>
    %cst_41 = arith.constant dense<0.000000e+00> : vector<2x128xf32>
    %164 = tpu.matmul %163, %7, %cst_41 {dimension_numbers = #tpu.dot_dimension_numbers<[1], [0], [0], [1], [0, 0, 1, 1], [], []>} : vector<2x32xbf16>, vector<32x128xbf16>, vector<2x128xf32> -> vector<2x128xf32>
    %165 = arith.addf %161, %164 : vector<2x128xf32>
    %166 = vector.extract_strided_slice %165 {offsets = [0, 0], sizes = [2, 64], strides = [1, 1]} : vector<2x128xf32> to vector<2x64xf32>
    %167 = vector.extract_strided_slice %166 {offsets = [0, 0], sizes = [2, 16], strides = [1, 1]} : vector<2x64xf32> to vector<2x16xf32>
    %168 = arith.negf %167 : vector<2x16xf32>
    %169 = math.exp %168 : vector<2x16xf32>
    %cst_42 = arith.constant 1.000000e+00 : f32
    %170 = vector.broadcast %cst_42 : f32 to vector<2x16xf32>
    %171 = arith.addf %170, %169 : vector<2x16xf32>
    %172 = arith.divf %170, %171 : vector<2x16xf32>
    %173 = vector.extract_strided_slice %166 {offsets = [0, 16], sizes = [2, 16], strides = [1, 1]} : vector<2x64xf32> to vector<2x16xf32>
    %174 = arith.negf %173 : vector<2x16xf32>
    %175 = math.exp %174 : vector<2x16xf32>
    %cst_43 = arith.constant 1.000000e+00 : f32
    %176 = vector.broadcast %cst_43 : f32 to vector<2x16xf32>
    %177 = arith.addf %176, %175 : vector<2x16xf32>
    %178 = arith.divf %176, %177 : vector<2x16xf32>
    %179 = vector.extract_strided_slice %166 {offsets = [0, 32], sizes = [2, 16], strides = [1, 1]} : vector<2x64xf32> to vector<2x16xf32>
    %180 = math.tanh %179 : vector<2x16xf32>
    %181 = vector.extract_strided_slice %166 {offsets = [0, 48], sizes = [2, 16], strides = [1, 1]} : vector<2x64xf32> to vector<2x16xf32>
    %182 = arith.negf %181 : vector<2x16xf32>
    %183 = math.exp %182 : vector<2x16xf32>
    %cst_44 = arith.constant 1.000000e+00 : f32
    %184 = vector.broadcast %cst_44 : f32 to vector<2x16xf32>
    %185 = arith.addf %184, %183 : vector<2x16xf32>
    %186 = arith.divf %184, %185 : vector<2x16xf32>
    %187 = arith.mulf %178, %119 : vector<2x16xf32>
    %188 = arith.mulf %172, %180 : vector<2x16xf32>
    %189 = arith.addf %187, %188 : vector<2x16xf32>
    %190 = math.tanh %189 : vector<2x16xf32>
    %191 = arith.mulf %186, %190 : vector<2x16xf32>
    %192 = vector.extract_strided_slice %165 {offsets = [0, 64], sizes = [2, 64], strides = [1, 1]} : vector<2x128xf32> to vector<2x64xf32>
    %193 = vector.extract_strided_slice %192 {offsets = [0, 0], sizes = [2, 16], strides = [1, 1]} : vector<2x64xf32> to vector<2x16xf32>
    %194 = arith.negf %193 : vector<2x16xf32>
    %195 = math.exp %194 : vector<2x16xf32>
    %cst_45 = arith.constant 1.000000e+00 : f32
    %196 = vector.broadcast %cst_45 : f32 to vector<2x16xf32>
    %197 = arith.addf %196, %195 : vector<2x16xf32>
    %198 = arith.divf %196, %197 : vector<2x16xf32>
    %199 = vector.extract_strided_slice %192 {offsets = [0, 16], sizes = [2, 16], strides = [1, 1]} : vector<2x64xf32> to vector<2x16xf32>
    %200 = arith.negf %199 : vector<2x16xf32>
    %201 = math.exp %200 : vector<2x16xf32>
    %cst_46 = arith.constant 1.000000e+00 : f32
    %202 = vector.broadcast %cst_46 : f32 to vector<2x16xf32>
    %203 = arith.addf %202, %201 : vector<2x16xf32>
    %204 = arith.divf %202, %203 : vector<2x16xf32>
    %205 = vector.extract_strided_slice %192 {offsets = [0, 32], sizes = [2, 16], strides = [1, 1]} : vector<2x64xf32> to vector<2x16xf32>
    %206 = math.tanh %205 : vector<2x16xf32>
    %207 = vector.extract_strided_slice %192 {offsets = [0, 48], sizes = [2, 16], strides = [1, 1]} : vector<2x64xf32> to vector<2x16xf32>
    %208 = arith.negf %207 : vector<2x16xf32>
    %209 = math.exp %208 : vector<2x16xf32>
    %cst_47 = arith.constant 1.000000e+00 : f32
    %210 = vector.broadcast %cst_47 : f32 to vector<2x16xf32>
    %211 = arith.addf %210, %209 : vector<2x16xf32>
    %212 = arith.divf %210, %211 : vector<2x16xf32>
    %213 = arith.mulf %204, %145 : vector<2x16xf32>
    %214 = arith.mulf %198, %206 : vector<2x16xf32>
    %215 = arith.addf %213, %214 : vector<2x16xf32>
    %216 = math.tanh %215 : vector<2x16xf32>
    %217 = arith.mulf %212, %216 : vector<2x16xf32>
    %218 = arith.index_cast %153 : i32 to index
    %c0_48 = arith.constant 0 : index
    %219 = vector.load %arg13[%218, %c0_48] : memref<16x32xf32, #tpu.memory_space<vmem>>, vector<2x16xf32>
    tpu.vector_store %arg13[%218, %c0_48], %191 {strides = array<i32>} : memref<16x32xf32, #tpu.memory_space<vmem>>, vector<2x16xf32>,
    %220 = arith.index_cast %156 : i32 to index
    %c16_49 = arith.constant 16 : index
    %221 = vector.load %arg13[%220, %c16_49] : memref<16x32xf32, #tpu.memory_space<vmem>>, vector<2x16xf32>
    tpu.vector_store %arg13[%220, %c16_49], %217 {strides = array<i32>} : memref<16x32xf32, #tpu.memory_space<vmem>>, vector<2x16xf32>,
    %c3_i32 = arith.constant 3 : i32
    %c2_i32_50 = arith.constant 2 : i32
    %222 = arith.muli %c3_i32, %c2_i32_50 : i32
    %223 = tpu.assume_multiple %222, 2 : i32
    %c7_i32_51 = arith.constant 7 : i32
    %224 = arith.subi %c7_i32_51, %c3_i32 : i32
    %c2_i32_52 = arith.constant 2 : i32
    %225 = arith.muli %224, %c2_i32_52 : i32
    %226 = tpu.assume_multiple %225, 2 : i32
    %227 = arith.index_cast %223 : i32 to index
    %c0_53 = arith.constant 0 : index
    %228 = vector.load %arg12[%227, %c0_53] : memref<16x128xf32, #tpu.memory_space<vmem>>, vector<2x128xf32>
    %229 = arith.index_cast %226 : i32 to index
    %c0_54 = arith.constant 0 : index
    %230 = vector.load %arg12[%229, %c0_54] : memref<16x128xf32, #tpu.memory_space<vmem>>, vector<2x128xf32>
    %231 = arith.select %10, %228, %230 : vector<2x128xi1>, vector<2x128xf32>
    %232 = tpu.concatenate %191, %217 in 1 : vector<2x16xf32>, vector<2x16xf32> -> vector<2x32xf32>
    %233 = arith.truncf %232 : vector<2x32xf32> to vector<2x32xbf16>
    %cst_55 = arith.constant dense<0.000000e+00> : vector<2x128xf32>
    %234 = tpu.matmul %233, %7, %cst_55 {dimension_numbers = #tpu.dot_dimension_numbers<[1], [0], [0], [1], [0, 0, 1, 1], [], []>} : vector<2x32xbf16>, vector<32x128xbf16>, vector<2x128xf32> -> vector<2x128xf32>
    %235 = arith.addf %231, %234 : vector<2x128xf32>
    %236 = vector.extract_strided_slice %235 {offsets = [0, 0], sizes = [2, 64], strides = [1, 1]} : vector<2x128xf32> to vector<2x64xf32>
    %237 = vector.extract_strided_slice %236 {offsets = [0, 0], sizes = [2, 16], strides = [1, 1]} : vector<2x64xf32> to vector<2x16xf32>
    %238 = arith.negf %237 : vector<2x16xf32>
    %239 = math.exp %238 : vector<2x16xf32>
    %cst_56 = arith.constant 1.000000e+00 : f32
    %240 = vector.broadcast %cst_56 : f32 to vector<2x16xf32>
    %241 = arith.addf %240, %239 : vector<2x16xf32>
    %242 = arith.divf %240, %241 : vector<2x16xf32>
    %243 = vector.extract_strided_slice %236 {offsets = [0, 16], sizes = [2, 16], strides = [1, 1]} : vector<2x64xf32> to vector<2x16xf32>
    %244 = arith.negf %243 : vector<2x16xf32>
    %245 = math.exp %244 : vector<2x16xf32>
    %cst_57 = arith.constant 1.000000e+00 : f32
    %246 = vector.broadcast %cst_57 : f32 to vector<2x16xf32>
    %247 = arith.addf %246, %245 : vector<2x16xf32>
    %248 = arith.divf %246, %247 : vector<2x16xf32>
    %249 = vector.extract_strided_slice %236 {offsets = [0, 32], sizes = [2, 16], strides = [1, 1]} : vector<2x64xf32> to vector<2x16xf32>
    %250 = math.tanh %249 : vector<2x16xf32>
    %251 = vector.extract_strided_slice %236 {offsets = [0, 48], sizes = [2, 16], strides = [1, 1]} : vector<2x64xf32> to vector<2x16xf32>
    %252 = arith.negf %251 : vector<2x16xf32>
    %253 = math.exp %252 : vector<2x16xf32>
    %cst_58 = arith.constant 1.000000e+00 : f32
    %254 = vector.broadcast %cst_58 : f32 to vector<2x16xf32>
    %255 = arith.addf %254, %253 : vector<2x16xf32>
    %256 = arith.divf %254, %255 : vector<2x16xf32>
    %257 = arith.mulf %248, %189 : vector<2x16xf32>
    %258 = arith.mulf %242, %250 : vector<2x16xf32>
    %259 = arith.addf %257, %258 : vector<2x16xf32>
    %260 = math.tanh %259 : vector<2x16xf32>
    %261 = arith.mulf %256, %260 : vector<2x16xf32>
    %262 = vector.extract_strided_slice %235 {offsets = [0, 64], sizes = [2, 64], strides = [1, 1]} : vector<2x128xf32> to vector<2x64xf32>
    %263 = vector.extract_strided_slice %262 {offsets = [0, 0], sizes = [2, 16], strides = [1, 1]} : vector<2x64xf32> to vector<2x16xf32>
    %264 = arith.negf %263 : vector<2x16xf32>
    %265 = math.exp %264 : vector<2x16xf32>
    %cst_59 = arith.constant 1.000000e+00 : f32
    %266 = vector.broadcast %cst_59 : f32 to vector<2x16xf32>
    %267 = arith.addf %266, %265 : vector<2x16xf32>
    %268 = arith.divf %266, %267 : vector<2x16xf32>
    %269 = vector.extract_strided_slice %262 {offsets = [0, 16], sizes = [2, 16], strides = [1, 1]} : vector<2x64xf32> to vector<2x16xf32>
    %270 = arith.negf %269 : vector<2x16xf32>
    %271 = math.exp %270 : vector<2x16xf32>
    %cst_60 = arith.constant 1.000000e+00 : f32
    %272 = vector.broadcast %cst_60 : f32 to vector<2x16xf32>
    %273 = arith.addf %272, %271 : vector<2x16xf32>
    %274 = arith.divf %272, %273 : vector<2x16xf32>
    %275 = vector.extract_strided_slice %262 {offsets = [0, 32], sizes = [2, 16], strides = [1, 1]} : vector<2x64xf32> to vector<2x16xf32>
    %276 = math.tanh %275 : vector<2x16xf32>
    %277 = vector.extract_strided_slice %262 {offsets = [0, 48], sizes = [2, 16], strides = [1, 1]} : vector<2x64xf32> to vector<2x16xf32>
    %278 = arith.negf %277 : vector<2x16xf32>
    %279 = math.exp %278 : vector<2x16xf32>
    %cst_61 = arith.constant 1.000000e+00 : f32
    %280 = vector.broadcast %cst_61 : f32 to vector<2x16xf32>
    %281 = arith.addf %280, %279 : vector<2x16xf32>
    %282 = arith.divf %280, %281 : vector<2x16xf32>
    %283 = arith.mulf %274, %215 : vector<2x16xf32>
    %284 = arith.mulf %268, %276 : vector<2x16xf32>
    %285 = arith.addf %283, %284 : vector<2x16xf32>
    %286 = math.tanh %285 : vector<2x16xf32>
    %287 = arith.mulf %282, %286 : vector<2x16xf32>
    %288 = arith.index_cast %223 : i32 to index
    %c0_62 = arith.constant 0 : index
    %289 = vector.load %arg13[%288, %c0_62] : memref<16x32xf32, #tpu.memory_space<vmem>>, vector<2x16xf32>
    tpu.vector_store %arg13[%288, %c0_62], %261 {strides = array<i32>} : memref<16x32xf32, #tpu.memory_space<vmem>>, vector<2x16xf32>,
    %290 = arith.index_cast %226 : i32 to index
    %c16_63 = arith.constant 16 : index
    %291 = vector.load %arg13[%290, %c16_63] : memref<16x32xf32, #tpu.memory_space<vmem>>, vector<2x16xf32>
    tpu.vector_store %arg13[%290, %c16_63], %287 {strides = array<i32>} : memref<16x32xf32, #tpu.memory_space<vmem>>, vector<2x16xf32>,
    %c4_i32 = arith.constant 4 : i32
    %c2_i32_64 = arith.constant 2 : i32
    %292 = arith.muli %c4_i32, %c2_i32_64 : i32
    %293 = tpu.assume_multiple %292, 2 : i32
    %c7_i32_65 = arith.constant 7 : i32
    %294 = arith.subi %c7_i32_65, %c4_i32 : i32
    %c2_i32_66 = arith.constant 2 : i32
    %295 = arith.muli %294, %c2_i32_66 : i32
    %296 = tpu.assume_multiple %295, 2 : i32
    %297 = arith.index_cast %293 : i32 to index
    %c0_67 = arith.constant 0 : index
    %298 = vector.load %arg12[%297, %c0_67] : memref<16x128xf32, #tpu.memory_space<vmem>>, vector<2x128xf32>
    %299 = arith.index_cast %296 : i32 to index
    %c0_68 = arith.constant 0 : index
    %300 = vector.load %arg12[%299, %c0_68] : memref<16x128xf32, #tpu.memory_space<vmem>>, vector<2x128xf32>
    %301 = arith.select %10, %298, %300 : vector<2x128xi1>, vector<2x128xf32>
    %302 = tpu.concatenate %261, %287 in 1 : vector<2x16xf32>, vector<2x16xf32> -> vector<2x32xf32>
    %303 = arith.truncf %302 : vector<2x32xf32> to vector<2x32xbf16>
    %cst_69 = arith.constant dense<0.000000e+00> : vector<2x128xf32>
    %304 = tpu.matmul %303, %7, %cst_69 {dimension_numbers = #tpu.dot_dimension_numbers<[1], [0], [0], [1], [0, 0, 1, 1], [], []>} : vector<2x32xbf16>, vector<32x128xbf16>, vector<2x128xf32> -> vector<2x128xf32>
    %305 = arith.addf %301, %304 : vector<2x128xf32>
    %306 = vector.extract_strided_slice %305 {offsets = [0, 0], sizes = [2, 64], strides = [1, 1]} : vector<2x128xf32> to vector<2x64xf32>
    %307 = vector.extract_strided_slice %306 {offsets = [0, 0], sizes = [2, 16], strides = [1, 1]} : vector<2x64xf32> to vector<2x16xf32>
    %308 = arith.negf %307 : vector<2x16xf32>
    %309 = math.exp %308 : vector<2x16xf32>
    %cst_70 = arith.constant 1.000000e+00 : f32
    %310 = vector.broadcast %cst_70 : f32 to vector<2x16xf32>
    %311 = arith.addf %310, %309 : vector<2x16xf32>
    %312 = arith.divf %310, %311 : vector<2x16xf32>
    %313 = vector.extract_strided_slice %306 {offsets = [0, 16], sizes = [2, 16], strides = [1, 1]} : vector<2x64xf32> to vector<2x16xf32>
    %314 = arith.negf %313 : vector<2x16xf32>
    %315 = math.exp %314 : vector<2x16xf32>
    %cst_71 = arith.constant 1.000000e+00 : f32
    %316 = vector.broadcast %cst_71 : f32 to vector<2x16xf32>
    %317 = arith.addf %316, %315 : vector<2x16xf32>
    %318 = arith.divf %316, %317 : vector<2x16xf32>
    %319 = vector.extract_strided_slice %306 {offsets = [0, 32], sizes = [2, 16], strides = [1, 1]} : vector<2x64xf32> to vector<2x16xf32>
    %320 = math.tanh %319 : vector<2x16xf32>
    %321 = vector.extract_strided_slice %306 {offsets = [0, 48], sizes = [2, 16], strides = [1, 1]} : vector<2x64xf32> to vector<2x16xf32>
    %322 = arith.negf %321 : vector<2x16xf32>
    %323 = math.exp %322 : vector<2x16xf32>
    %cst_72 = arith.constant 1.000000e+00 : f32
    %324 = vector.broadcast %cst_72 : f32 to vector<2x16xf32>
    %325 = arith.addf %324, %323 : vector<2x16xf32>
    %326 = arith.divf %324, %325 : vector<2x16xf32>
    %327 = arith.mulf %318, %259 : vector<2x16xf32>
    %328 = arith.mulf %312, %320 : vector<2x16xf32>
    %329 = arith.addf %327, %328 : vector<2x16xf32>
    %330 = math.tanh %329 : vector<2x16xf32>
    %331 = arith.mulf %326, %330 : vector<2x16xf32>
    %332 = vector.extract_strided_slice %305 {offsets = [0, 64], sizes = [2, 64], strides = [1, 1]} : vector<2x128xf32> to vector<2x64xf32>
    %333 = vector.extract_strided_slice %332 {offsets = [0, 0], sizes = [2, 16], strides = [1, 1]} : vector<2x64xf32> to vector<2x16xf32>
    %334 = arith.negf %333 : vector<2x16xf32>
    %335 = math.exp %334 : vector<2x16xf32>
    %cst_73 = arith.constant 1.000000e+00 : f32
    %336 = vector.broadcast %cst_73 : f32 to vector<2x16xf32>
    %337 = arith.addf %336, %335 : vector<2x16xf32>
    %338 = arith.divf %336, %337 : vector<2x16xf32>
    %339 = vector.extract_strided_slice %332 {offsets = [0, 16], sizes = [2, 16], strides = [1, 1]} : vector<2x64xf32> to vector<2x16xf32>
    %340 = arith.negf %339 : vector<2x16xf32>
    %341 = math.exp %340 : vector<2x16xf32>
    %cst_74 = arith.constant 1.000000e+00 : f32
    %342 = vector.broadcast %cst_74 : f32 to vector<2x16xf32>
    %343 = arith.addf %342, %341 : vector<2x16xf32>
    %344 = arith.divf %342, %343 : vector<2x16xf32>
    %345 = vector.extract_strided_slice %332 {offsets = [0, 32], sizes = [2, 16], strides = [1, 1]} : vector<2x64xf32> to vector<2x16xf32>
    %346 = math.tanh %345 : vector<2x16xf32>
    %347 = vector.extract_strided_slice %332 {offsets = [0, 48], sizes = [2, 16], strides = [1, 1]} : vector<2x64xf32> to vector<2x16xf32>
    %348 = arith.negf %347 : vector<2x16xf32>
    %349 = math.exp %348 : vector<2x16xf32>
    %cst_75 = arith.constant 1.000000e+00 : f32
    %350 = vector.broadcast %cst_75 : f32 to vector<2x16xf32>
    %351 = arith.addf %350, %349 : vector<2x16xf32>
    %352 = arith.divf %350, %351 : vector<2x16xf32>
    %353 = arith.mulf %344, %285 : vector<2x16xf32>
    %354 = arith.mulf %338, %346 : vector<2x16xf32>
    %355 = arith.addf %353, %354 : vector<2x16xf32>
    %356 = math.tanh %355 : vector<2x16xf32>
    %357 = arith.mulf %352, %356 : vector<2x16xf32>
    %358 = arith.index_cast %293 : i32 to index
    %c0_76 = arith.constant 0 : index
    %359 = vector.load %arg13[%358, %c0_76] : memref<16x32xf32, #tpu.memory_space<vmem>>, vector<2x16xf32>
    tpu.vector_store %arg13[%358, %c0_76], %331 {strides = array<i32>} : memref<16x32xf32, #tpu.memory_space<vmem>>, vector<2x16xf32>,
    %360 = arith.index_cast %296 : i32 to index
    %c16_77 = arith.constant 16 : index
    %361 = vector.load %arg13[%360, %c16_77] : memref<16x32xf32, #tpu.memory_space<vmem>>, vector<2x16xf32>
    tpu.vector_store %arg13[%360, %c16_77], %357 {strides = array<i32>} : memref<16x32xf32, #tpu.memory_space<vmem>>, vector<2x16xf32>,
    %c5_i32 = arith.constant 5 : i32
    %c2_i32_78 = arith.constant 2 : i32
    %362 = arith.muli %c5_i32, %c2_i32_78 : i32
    %363 = tpu.assume_multiple %362, 2 : i32
    %c7_i32_79 = arith.constant 7 : i32
    %364 = arith.subi %c7_i32_79, %c5_i32 : i32
    %c2_i32_80 = arith.constant 2 : i32
    %365 = arith.muli %364, %c2_i32_80 : i32
    %366 = tpu.assume_multiple %365, 2 : i32
    %367 = arith.index_cast %363 : i32 to index
    %c0_81 = arith.constant 0 : index
    %368 = vector.load %arg12[%367, %c0_81] : memref<16x128xf32, #tpu.memory_space<vmem>>, vector<2x128xf32>
    %369 = arith.index_cast %366 : i32 to index
    %c0_82 = arith.constant 0 : index
    %370 = vector.load %arg12[%369, %c0_82] : memref<16x128xf32, #tpu.memory_space<vmem>>, vector<2x128xf32>
    %371 = arith.select %10, %368, %370 : vector<2x128xi1>, vector<2x128xf32>
    %372 = tpu.concatenate %331, %357 in 1 : vector<2x16xf32>, vector<2x16xf32> -> vector<2x32xf32>
    %373 = arith.truncf %372 : vector<2x32xf32> to vector<2x32xbf16>
    %cst_83 = arith.constant dense<0.000000e+00> : vector<2x128xf32>
    %374 = tpu.matmul %373, %7, %cst_83 {dimension_numbers = #tpu.dot_dimension_numbers<[1], [0], [0], [1], [0, 0, 1, 1], [], []>} : vector<2x32xbf16>, vector<32x128xbf16>, vector<2x128xf32> -> vector<2x128xf32>
    %375 = arith.addf %371, %374 : vector<2x128xf32>
    %376 = vector.extract_strided_slice %375 {offsets = [0, 0], sizes = [2, 64], strides = [1, 1]} : vector<2x128xf32> to vector<2x64xf32>
    %377 = vector.extract_strided_slice %376 {offsets = [0, 0], sizes = [2, 16], strides = [1, 1]} : vector<2x64xf32> to vector<2x16xf32>
    %378 = arith.negf %377 : vector<2x16xf32>
    %379 = math.exp %378 : vector<2x16xf32>
    %cst_84 = arith.constant 1.000000e+00 : f32
    %380 = vector.broadcast %cst_84 : f32 to vector<2x16xf32>
    %381 = arith.addf %380, %379 : vector<2x16xf32>
    %382 = arith.divf %380, %381 : vector<2x16xf32>
    %383 = vector.extract_strided_slice %376 {offsets = [0, 16], sizes = [2, 16], strides = [1, 1]} : vector<2x64xf32> to vector<2x16xf32>
    %384 = arith.negf %383 : vector<2x16xf32>
    %385 = math.exp %384 : vector<2x16xf32>
    %cst_85 = arith.constant 1.000000e+00 : f32
    %386 = vector.broadcast %cst_85 : f32 to vector<2x16xf32>
    %387 = arith.addf %386, %385 : vector<2x16xf32>
    %388 = arith.divf %386, %387 : vector<2x16xf32>
    %389 = vector.extract_strided_slice %376 {offsets = [0, 32], sizes = [2, 16], strides = [1, 1]} : vector<2x64xf32> to vector<2x16xf32>
    %390 = math.tanh %389 : vector<2x16xf32>
    %391 = vector.extract_strided_slice %376 {offsets = [0, 48], sizes = [2, 16], strides = [1, 1]} : vector<2x64xf32> to vector<2x16xf32>
    %392 = arith.negf %391 : vector<2x16xf32>
    %393 = math.exp %392 : vector<2x16xf32>
    %cst_86 = arith.constant 1.000000e+00 : f32
    %394 = vector.broadcast %cst_86 : f32 to vector<2x16xf32>
    %395 = arith.addf %394, %393 : vector<2x16xf32>
    %396 = arith.divf %394, %395 : vector<2x16xf32>
    %397 = arith.mulf %388, %329 : vector<2x16xf32>
    %398 = arith.mulf %382, %390 : vector<2x16xf32>
    %399 = arith.addf %397, %398 : vector<2x16xf32>
    %400 = math.tanh %399 : vector<2x16xf32>
    %401 = arith.mulf %396, %400 : vector<2x16xf32>
    %402 = vector.extract_strided_slice %375 {offsets = [0, 64], sizes = [2, 64], strides = [1, 1]} : vector<2x128xf32> to vector<2x64xf32>
    %403 = vector.extract_strided_slice %402 {offsets = [0, 0], sizes = [2, 16], strides = [1, 1]} : vector<2x64xf32> to vector<2x16xf32>
    %404 = arith.negf %403 : vector<2x16xf32>
    %405 = math.exp %404 : vector<2x16xf32>
    %cst_87 = arith.constant 1.000000e+00 : f32
    %406 = vector.broadcast %cst_87 : f32 to vector<2x16xf32>
    %407 = arith.addf %406, %405 : vector<2x16xf32>
    %408 = arith.divf %406, %407 : vector<2x16xf32>
    %409 = vector.extract_strided_slice %402 {offsets = [0, 16], sizes = [2, 16], strides = [1, 1]} : vector<2x64xf32> to vector<2x16xf32>
    %410 = arith.negf %409 : vector<2x16xf32>
    %411 = math.exp %410 : vector<2x16xf32>
    %cst_88 = arith.constant 1.000000e+00 : f32
    %412 = vector.broadcast %cst_88 : f32 to vector<2x16xf32>
    %413 = arith.addf %412, %411 : vector<2x16xf32>
    %414 = arith.divf %412, %413 : vector<2x16xf32>
    %415 = vector.extract_strided_slice %402 {offsets = [0, 32], sizes = [2, 16], strides = [1, 1]} : vector<2x64xf32> to vector<2x16xf32>
    %416 = math.tanh %415 : vector<2x16xf32>
    %417 = vector.extract_strided_slice %402 {offsets = [0, 48], sizes = [2, 16], strides = [1, 1]} : vector<2x64xf32> to vector<2x16xf32>
    %418 = arith.negf %417 : vector<2x16xf32>
    %419 = math.exp %418 : vector<2x16xf32>
    %cst_89 = arith.constant 1.000000e+00 : f32
    %420 = vector.broadcast %cst_89 : f32 to vector<2x16xf32>
    %421 = arith.addf %420, %419 : vector<2x16xf32>
    %422 = arith.divf %420, %421 : vector<2x16xf32>
    %423 = arith.mulf %414, %355 : vector<2x16xf32>
    %424 = arith.mulf %408, %416 : vector<2x16xf32>
    %425 = arith.addf %423, %424 : vector<2x16xf32>
    %426 = math.tanh %425 : vector<2x16xf32>
    %427 = arith.mulf %422, %426 : vector<2x16xf32>
    %428 = arith.index_cast %363 : i32 to index
    %c0_90 = arith.constant 0 : index
    %429 = vector.load %arg13[%428, %c0_90] : memref<16x32xf32, #tpu.memory_space<vmem>>, vector<2x16xf32>
    tpu.vector_store %arg13[%428, %c0_90], %401 {strides = array<i32>} : memref<16x32xf32, #tpu.memory_space<vmem>>, vector<2x16xf32>,
    %430 = arith.index_cast %366 : i32 to index
    %c16_91 = arith.constant 16 : index
    %431 = vector.load %arg13[%430, %c16_91] : memref<16x32xf32, #tpu.memory_space<vmem>>, vector<2x16xf32>
    tpu.vector_store %arg13[%430, %c16_91], %427 {strides = array<i32>} : memref<16x32xf32, #tpu.memory_space<vmem>>, vector<2x16xf32>,
    %c6_i32 = arith.constant 6 : i32
    %c2_i32_92 = arith.constant 2 : i32
    %432 = arith.muli %c6_i32, %c2_i32_92 : i32
    %433 = tpu.assume_multiple %432, 2 : i32
    %c7_i32_93 = arith.constant 7 : i32
    %434 = arith.subi %c7_i32_93, %c6_i32 : i32
    %c2_i32_94 = arith.constant 2 : i32
    %435 = arith.muli %434, %c2_i32_94 : i32
    %436 = tpu.assume_multiple %435, 2 : i32
    %437 = arith.index_cast %433 : i32 to index
    %c0_95 = arith.constant 0 : index
    %438 = vector.load %arg12[%437, %c0_95] : memref<16x128xf32, #tpu.memory_space<vmem>>, vector<2x128xf32>
    %439 = arith.index_cast %436 : i32 to index
    %c0_96 = arith.constant 0 : index
    %440 = vector.load %arg12[%439, %c0_96] : memref<16x128xf32, #tpu.memory_space<vmem>>, vector<2x128xf32>
    %441 = arith.select %10, %438, %440 : vector<2x128xi1>, vector<2x128xf32>
    %442 = tpu.concatenate %401, %427 in 1 : vector<2x16xf32>, vector<2x16xf32> -> vector<2x32xf32>
    %443 = arith.truncf %442 : vector<2x32xf32> to vector<2x32xbf16>
    %cst_97 = arith.constant dense<0.000000e+00> : vector<2x128xf32>
    %444 = tpu.matmul %443, %7, %cst_97 {dimension_numbers = #tpu.dot_dimension_numbers<[1], [0], [0], [1], [0, 0, 1, 1], [], []>} : vector<2x32xbf16>, vector<32x128xbf16>, vector<2x128xf32> -> vector<2x128xf32>
    %445 = arith.addf %441, %444 : vector<2x128xf32>
    %446 = vector.extract_strided_slice %445 {offsets = [0, 0], sizes = [2, 64], strides = [1, 1]} : vector<2x128xf32> to vector<2x64xf32>
    %447 = vector.extract_strided_slice %446 {offsets = [0, 0], sizes = [2, 16], strides = [1, 1]} : vector<2x64xf32> to vector<2x16xf32>
    %448 = arith.negf %447 : vector<2x16xf32>
    %449 = math.exp %448 : vector<2x16xf32>
    %cst_98 = arith.constant 1.000000e+00 : f32
    %450 = vector.broadcast %cst_98 : f32 to vector<2x16xf32>
    %451 = arith.addf %450, %449 : vector<2x16xf32>
    %452 = arith.divf %450, %451 : vector<2x16xf32>
    %453 = vector.extract_strided_slice %446 {offsets = [0, 16], sizes = [2, 16], strides = [1, 1]} : vector<2x64xf32> to vector<2x16xf32>
    %454 = arith.negf %453 : vector<2x16xf32>
    %455 = math.exp %454 : vector<2x16xf32>
    %cst_99 = arith.constant 1.000000e+00 : f32
    %456 = vector.broadcast %cst_99 : f32 to vector<2x16xf32>
    %457 = arith.addf %456, %455 : vector<2x16xf32>
    %458 = arith.divf %456, %457 : vector<2x16xf32>
    %459 = vector.extract_strided_slice %446 {offsets = [0, 32], sizes = [2, 16], strides = [1, 1]} : vector<2x64xf32> to vector<2x16xf32>
    %460 = math.tanh %459 : vector<2x16xf32>
    %461 = vector.extract_strided_slice %446 {offsets = [0, 48], sizes = [2, 16], strides = [1, 1]} : vector<2x64xf32> to vector<2x16xf32>
    %462 = arith.negf %461 : vector<2x16xf32>
    %463 = math.exp %462 : vector<2x16xf32>
    %cst_100 = arith.constant 1.000000e+00 : f32
    %464 = vector.broadcast %cst_100 : f32 to vector<2x16xf32>
    %465 = arith.addf %464, %463 : vector<2x16xf32>
    %466 = arith.divf %464, %465 : vector<2x16xf32>
    %467 = arith.mulf %458, %399 : vector<2x16xf32>
    %468 = arith.mulf %452, %460 : vector<2x16xf32>
    %469 = arith.addf %467, %468 : vector<2x16xf32>
    %470 = math.tanh %469 : vector<2x16xf32>
    %471 = arith.mulf %466, %470 : vector<2x16xf32>
    %472 = vector.extract_strided_slice %445 {offsets = [0, 64], sizes = [2, 64], strides = [1, 1]} : vector<2x128xf32> to vector<2x64xf32>
    %473 = vector.extract_strided_slice %472 {offsets = [0, 0], sizes = [2, 16], strides = [1, 1]} : vector<2x64xf32> to vector<2x16xf32>
    %474 = arith.negf %473 : vector<2x16xf32>
    %475 = math.exp %474 : vector<2x16xf32>
    %cst_101 = arith.constant 1.000000e+00 : f32
    %476 = vector.broadcast %cst_101 : f32 to vector<2x16xf32>
    %477 = arith.addf %476, %475 : vector<2x16xf32>
    %478 = arith.divf %476, %477 : vector<2x16xf32>
    %479 = vector.extract_strided_slice %472 {offsets = [0, 16], sizes = [2, 16], strides = [1, 1]} : vector<2x64xf32> to vector<2x16xf32>
    %480 = arith.negf %479 : vector<2x16xf32>
    %481 = math.exp %480 : vector<2x16xf32>
    %cst_102 = arith.constant 1.000000e+00 : f32
    %482 = vector.broadcast %cst_102 : f32 to vector<2x16xf32>
    %483 = arith.addf %482, %481 : vector<2x16xf32>
    %484 = arith.divf %482, %483 : vector<2x16xf32>
    %485 = vector.extract_strided_slice %472 {offsets = [0, 32], sizes = [2, 16], strides = [1, 1]} : vector<2x64xf32> to vector<2x16xf32>
    %486 = math.tanh %485 : vector<2x16xf32>
    %487 = vector.extract_strided_slice %472 {offsets = [0, 48], sizes = [2, 16], strides = [1, 1]} : vector<2x64xf32> to vector<2x16xf32>
    %488 = arith.negf %487 : vector<2x16xf32>
    %489 = math.exp %488 : vector<2x16xf32>
    %cst_103 = arith.constant 1.000000e+00 : f32
    %490 = vector.broadcast %cst_103 : f32 to vector<2x16xf32>
    %491 = arith.addf %490, %489 : vector<2x16xf32>
    %492 = arith.divf %490, %491 : vector<2x16xf32>
    %493 = arith.mulf %484, %425 : vector<2x16xf32>
    %494 = arith.mulf %478, %486 : vector<2x16xf32>
    %495 = arith.addf %493, %494 : vector<2x16xf32>
    %496 = math.tanh %495 : vector<2x16xf32>
    %497 = arith.mulf %492, %496 : vector<2x16xf32>
    %498 = arith.index_cast %433 : i32 to index
    %c0_104 = arith.constant 0 : index
    %499 = vector.load %arg13[%498, %c0_104] : memref<16x32xf32, #tpu.memory_space<vmem>>, vector<2x16xf32>
    tpu.vector_store %arg13[%498, %c0_104], %471 {strides = array<i32>} : memref<16x32xf32, #tpu.memory_space<vmem>>, vector<2x16xf32>,
    %500 = arith.index_cast %436 : i32 to index
    %c16_105 = arith.constant 16 : index
    %501 = vector.load %arg13[%500, %c16_105] : memref<16x32xf32, #tpu.memory_space<vmem>>, vector<2x16xf32>
    tpu.vector_store %arg13[%500, %c16_105], %497 {strides = array<i32>} : memref<16x32xf32, #tpu.memory_space<vmem>>, vector<2x16xf32>,
    %c7_i32_106 = arith.constant 7 : i32
    %c2_i32_107 = arith.constant 2 : i32
    %502 = arith.muli %c7_i32_106, %c2_i32_107 : i32
    %503 = tpu.assume_multiple %502, 2 : i32
    %c7_i32_108 = arith.constant 7 : i32
    %504 = arith.subi %c7_i32_108, %c7_i32_106 : i32
    %c2_i32_109 = arith.constant 2 : i32
    %505 = arith.muli %504, %c2_i32_109 : i32
    %506 = tpu.assume_multiple %505, 2 : i32
    %507 = arith.index_cast %503 : i32 to index
    %c0_110 = arith.constant 0 : index
    %508 = vector.load %arg12[%507, %c0_110] : memref<16x128xf32, #tpu.memory_space<vmem>>, vector<2x128xf32>
    %509 = arith.index_cast %506 : i32 to index
    %c0_111 = arith.constant 0 : index
    %510 = vector.load %arg12[%509, %c0_111] : memref<16x128xf32, #tpu.memory_space<vmem>>, vector<2x128xf32>
    %511 = arith.select %10, %508, %510 : vector<2x128xi1>, vector<2x128xf32>
    %512 = tpu.concatenate %471, %497 in 1 : vector<2x16xf32>, vector<2x16xf32> -> vector<2x32xf32>
    %513 = arith.truncf %512 : vector<2x32xf32> to vector<2x32xbf16>
    %cst_112 = arith.constant dense<0.000000e+00> : vector<2x128xf32>
    %514 = tpu.matmul %513, %7, %cst_112 {dimension_numbers = #tpu.dot_dimension_numbers<[1], [0], [0], [1], [0, 0, 1, 1], [], []>} : vector<2x32xbf16>, vector<32x128xbf16>, vector<2x128xf32> -> vector<2x128xf32>
    %515 = arith.addf %511, %514 : vector<2x128xf32>
    %516 = vector.extract_strided_slice %515 {offsets = [0, 0], sizes = [2, 64], strides = [1, 1]} : vector<2x128xf32> to vector<2x64xf32>
    %517 = vector.extract_strided_slice %516 {offsets = [0, 0], sizes = [2, 16], strides = [1, 1]} : vector<2x64xf32> to vector<2x16xf32>
    %518 = arith.negf %517 : vector<2x16xf32>
    %519 = math.exp %518 : vector<2x16xf32>
    %cst_113 = arith.constant 1.000000e+00 : f32
    %520 = vector.broadcast %cst_113 : f32 to vector<2x16xf32>
    %521 = arith.addf %520, %519 : vector<2x16xf32>
    %522 = arith.divf %520, %521 : vector<2x16xf32>
    %523 = vector.extract_strided_slice %516 {offsets = [0, 16], sizes = [2, 16], strides = [1, 1]} : vector<2x64xf32> to vector<2x16xf32>
    %524 = arith.negf %523 : vector<2x16xf32>
    %525 = math.exp %524 : vector<2x16xf32>
    %cst_114 = arith.constant 1.000000e+00 : f32
    %526 = vector.broadcast %cst_114 : f32 to vector<2x16xf32>
    %527 = arith.addf %526, %525 : vector<2x16xf32>
    %528 = arith.divf %526, %527 : vector<2x16xf32>
    %529 = vector.extract_strided_slice %516 {offsets = [0, 32], sizes = [2, 16], strides = [1, 1]} : vector<2x64xf32> to vector<2x16xf32>
    %530 = math.tanh %529 : vector<2x16xf32>
    %531 = vector.extract_strided_slice %516 {offsets = [0, 48], sizes = [2, 16], strides = [1, 1]} : vector<2x64xf32> to vector<2x16xf32>
    %532 = arith.negf %531 : vector<2x16xf32>
    %533 = math.exp %532 : vector<2x16xf32>
    %cst_115 = arith.constant 1.000000e+00 : f32
    %534 = vector.broadcast %cst_115 : f32 to vector<2x16xf32>
    %535 = arith.addf %534, %533 : vector<2x16xf32>
    %536 = arith.divf %534, %535 : vector<2x16xf32>
    %537 = arith.mulf %528, %469 : vector<2x16xf32>
    %538 = arith.mulf %522, %530 : vector<2x16xf32>
    %539 = arith.addf %537, %538 : vector<2x16xf32>
    %540 = math.tanh %539 : vector<2x16xf32>
    %541 = arith.mulf %536, %540 : vector<2x16xf32>
    %542 = vector.extract_strided_slice %515 {offsets = [0, 64], sizes = [2, 64], strides = [1, 1]} : vector<2x128xf32> to vector<2x64xf32>
    %543 = vector.extract_strided_slice %542 {offsets = [0, 0], sizes = [2, 16], strides = [1, 1]} : vector<2x64xf32> to vector<2x16xf32>
    %544 = arith.negf %543 : vector<2x16xf32>
    %545 = math.exp %544 : vector<2x16xf32>
    %cst_116 = arith.constant 1.000000e+00 : f32
    %546 = vector.broadcast %cst_116 : f32 to vector<2x16xf32>
    %547 = arith.addf %546, %545 : vector<2x16xf32>
    %548 = arith.divf %546, %547 : vector<2x16xf32>
    %549 = vector.extract_strided_slice %542 {offsets = [0, 16], sizes = [2, 16], strides = [1, 1]} : vector<2x64xf32> to vector<2x16xf32>
    %550 = arith.negf %549 : vector<2x16xf32>
    %551 = math.exp %550 : vector<2x16xf32>
    %cst_117 = arith.constant 1.000000e+00 : f32
    %552 = vector.broadcast %cst_117 : f32 to vector<2x16xf32>
    %553 = arith.addf %552, %551 : vector<2x16xf32>
    %554 = arith.divf %552, %553 : vector<2x16xf32>
    %555 = vector.extract_strided_slice %542 {offsets = [0, 32], sizes = [2, 16], strides = [1, 1]} : vector<2x64xf32> to vector<2x16xf32>
    %556 = math.tanh %555 : vector<2x16xf32>
    %557 = vector.extract_strided_slice %542 {offsets = [0, 48], sizes = [2, 16], strides = [1, 1]} : vector<2x64xf32> to vector<2x16xf32>
    %558 = arith.negf %557 : vector<2x16xf32>
    %559 = math.exp %558 : vector<2x16xf32>
    %cst_118 = arith.constant 1.000000e+00 : f32
    %560 = vector.broadcast %cst_118 : f32 to vector<2x16xf32>
    %561 = arith.addf %560, %559 : vector<2x16xf32>
    %562 = arith.divf %560, %561 : vector<2x16xf32>
    %563 = arith.mulf %554, %495 : vector<2x16xf32>
    %564 = arith.mulf %548, %556 : vector<2x16xf32>
    %565 = arith.addf %563, %564 : vector<2x16xf32>
    %566 = math.tanh %565 : vector<2x16xf32>
    %567 = arith.mulf %562, %566 : vector<2x16xf32>
    %568 = arith.index_cast %503 : i32 to index
    %c0_119 = arith.constant 0 : index
    %569 = vector.load %arg13[%568, %c0_119] : memref<16x32xf32, #tpu.memory_space<vmem>>, vector<2x16xf32>
    tpu.vector_store %arg13[%568, %c0_119], %541 {strides = array<i32>} : memref<16x32xf32, #tpu.memory_space<vmem>>, vector<2x16xf32>,
    %570 = arith.index_cast %506 : i32 to index
    %c16_120 = arith.constant 16 : index
    %571 = vector.load %arg13[%570, %c16_120] : memref<16x32xf32, #tpu.memory_space<vmem>>, vector<2x16xf32>
    tpu.vector_store %arg13[%570, %c16_120], %567 {strides = array<i32>} : memref<16x32xf32, #tpu.memory_space<vmem>>, vector<2x16xf32>,
    %c8_i32 = arith.constant 8 : i32
    %c0_121 = arith.constant 0 : index
    %c0_122 = arith.constant 0 : index
    %572 = vector.load %arg13[%c0_121, %c0_122] : memref<16x32xf32, #tpu.memory_space<vmem>>, vector<16x32xf32>
    %573 = arith.truncf %572 : vector<16x32xf32> to vector<16x32xbf16>
    %c0_123 = arith.constant 0 : index
    %c0_124 = arith.constant 0 : index
    %574 = vector.load %arg4[%c0_123, %c0_124] : memref<32x128xbf16, #tpu.memory_space<vmem>>, vector<32x128xbf16>
    %cst_125 = arith.constant dense<0.000000e+00> : vector<16x128xf32>
    %575 = tpu.matmul %573, %574, %cst_125 {dimension_numbers = #tpu.dot_dimension_numbers<[1], [0], [0], [1], [0, 0, 1, 1], [], []>} : vector<16x32xbf16>, vector<32x128xbf16>, vector<16x128xf32> -> vector<16x128xf32>
    %c0_126 = arith.constant 0 : index
    %c0_127 = arith.constant 0 : index
    %576 = vector.load %arg5[%c0_126, %c0_127] : memref<1x128xf32, #tpu.memory_space<vmem>>, vector<1x128xf32>
    %577 = vector.broadcast %576 : vector<1x128xf32> to vector<16x128xf32>
    %578 = arith.addf %575, %577 : vector<16x128xf32>
    %c0_128 = arith.constant 0 : index
    %c0_129 = arith.constant 0 : index
    %579 = vector.load %arg6[%c0_128, %c0_129] : memref<16x1xf32, #tpu.memory_space<vmem>>, vector<16x1xf32>
    %580 = vector.broadcast %579 : vector<16x1xf32> to vector<16x128xf32>
    %581 = arith.mulf %578, %580 : vector<16x128xf32>
    %c0_130 = arith.constant 0 : index
    %c0_131 = arith.constant 0 : index
    %582 = vector.load %arg14[%c0_130, %c0_131] : memref<16x128xf32, #tpu.memory_space<vmem>>, vector<16x128xf32>
    tpu.vector_store %arg14[%c0_130, %c0_131], %581 {strides = array<i32>} : memref<16x128xf32, #tpu.memory_space<vmem>>, vector<16x128xf32>,
    %c0_132 = arith.constant 0 : index
    %c0_133 = arith.constant 0 : index
    %583 = vector.load %arg6[%c0_132, %c0_133] : memref<16x1xf32, #tpu.memory_space<vmem>>, vector<16x1xf32>
    %584 = vector.shape_cast %583 : vector<16x1xf32> to vector<16x1xf32>
    %585 = vector.broadcast %584 : vector<16x1xf32> to vector<16x128xf32>
    %c0_134 = arith.constant 0 : index
    %c0_135 = arith.constant 0 : index
    %586 = vector.load %arg15[%c0_134, %c0_135] : memref<16x128xf32, #tpu.memory_space<vmem>>, vector<16x128xf32>
    tpu.vector_store %arg15[%c0_134, %c0_135], %585 {strides = array<i32>} : memref<16x128xf32, #tpu.memory_space<vmem>>, vector<16x128xf32>,
    %c0_136 = arith.constant 0 : index
    %c0_137 = arith.constant 0 : index
    %587 = vector.load %arg7[%c0_136, %c0_137] : memref<128x128xf32, #tpu.memory_space<vmem>>, vector<128x128xf32>
    %588 = vector.shape_cast %587 : vector<128x128xf32> to vector<1x128x128xf32>
    %589 = vector.shape_cast %588 : vector<1x128x128xf32> to vector<1x128x128xf32>
    %590 = vector.broadcast %589 : vector<1x128x128xf32> to vector<2x128x128xf32>
    %591 = tpu.iota {dimensions = array<i32: 1>} : vector<2x128x128xi32>
    %c0_i32_138 = arith.constant 0 : i32
    %592 = vector.broadcast %c0_i32_138 : i32 to vector<2x128xi32>
    %c0_139 = arith.constant 0 : index
    %c0_140 = arith.constant 0 : index
    %c0_141 = arith.constant 0 : index
    %593 = vector.load %arg10[%c0_139, %c0_140, %c0_141] : memref<8x2x128xi32, #tpu.memory_space<vmem>>, vector<1x2x128xi32>
    %594 = vector.shape_cast %593 : vector<1x2x128xi32> to vector<2x128xi32>
    %595 = vector.shape_cast %592 : vector<2x128xi32> to vector<1x2x128xi32>
    tpu.vector_store %arg10[%c0_139, %c0_140, %c0_141], %595 {strides = array<i32>} : memref<8x2x128xi32, #tpu.memory_space<vmem>>, vector<1x2x128xi32>,
    %c0_142 = arith.constant 0 : index
    %c0_143 = arith.constant 0 : index
    %596 = vector.load %arg8[%c0_142, %c0_143] : memref<1x128xf32, #tpu.memory_space<vmem>>, vector<1x128xf32>
    %c0_144 = arith.constant 0 : index
    %c0_145 = arith.constant 0 : index
    %597 = vector.load %arg14[%c0_144, %c0_145] : memref<16x128xf32, #tpu.memory_space<vmem>>, vector<2x128xf32>
    %598 = vector.broadcast %596 : vector<1x128xf32> to vector<2x128xf32>
    %599 = arith.addf %598, %597 : vector<2x128xf32>
    %c1_i32_146 = arith.constant 1 : i32
    %c2_i32_147 = arith.constant 2 : i32
    %600 = arith.muli %c1_i32_146, %c2_i32_147 : i32
    %601 = tpu.assume_multiple %600, 2 : i32
    %602 = arith.index_cast %601 : i32 to index
    %c0_148 = arith.constant 0 : index
    %603 = vector.load %arg14[%602, %c0_148] : memref<16x128xf32, #tpu.memory_space<vmem>>, vector<2x128xf32>
    %604 = vector.shape_cast %599 : vector<2x128xf32> to vector<2x128x1xf32>
    %605 = vector.broadcast %604 : vector<2x128x1xf32> to vector<2x128x128xf32>
    %606 = arith.addf %605, %590 : vector<2x128x128xf32>
    %607 = vector.shape_cast %603 : vector<2x128xf32> to vector<2x1x128xf32>
    %608 = vector.broadcast %607 : vector<2x1x128xf32> to vector<2x128x128xf32>
    %609 = arith.addf %606, %608 : vector<2x128x128xf32>
    %cst_149 = arith.constant dense<0xFF800000> : vector<2x128xf32>
    %610 = vector.multi_reduction <maximumf>, %609, %cst_149 [1] : vector<2x128x128xf32> to vector<2x128xf32>
    %611 = vector.shape_cast %610 : vector<2x128xf32> to vector<2x1x128xf32>
    %612 = vector.broadcast %611 : vector<2x1x128xf32> to vector<2x128x128xf32>
    %613 = arith.cmpf oeq, %609, %612 : vector<2x128x128xf32>
    %c128_i32 = arith.constant 128 : i32
    %614 = vector.broadcast %c128_i32 : i32 to vector<2x128x128xi32>
    %615 = arith.select %613, %591, %614 : vector<2x128x128xi1>, vector<2x128x128xi32>
    %cst_150 = arith.constant dense<2147483647> : vector<2x128xi32>
    %616 = vector.multi_reduction <minsi>, %615, %cst_150 [1] : vector<2x128x128xi32> to vector<2x128xi32>
    %617 = arith.index_cast %c1_i32_146 : i32 to index
    %c0_151 = arith.constant 0 : index
    %c0_152 = arith.constant 0 : index
    %618 = vector.load %arg10[%617, %c0_151, %c0_152] : memref<8x2x128xi32, #tpu.memory_space<vmem>>, vector<1x2x128xi32>
    %619 = vector.shape_cast %618 : vector<1x2x128xi32> to vector<2x128xi32>
    %620 = vector.shape_cast %616 : vector<2x128xi32> to vector<1x2x128xi32>
    tpu.vector_store %arg10[%617, %c0_151, %c0_152], %620 {strides = array<i32>} : memref<8x2x128xi32, #tpu.memory_space<vmem>>, vector<1x2x128xi32>,
    %621 = arith.index_cast %601 : i32 to index
    %c0_153 = arith.constant 0 : index
    %622 = vector.load %arg15[%621, %c0_153] : memref<16x128xf32, #tpu.memory_space<vmem>>, vector<2x128xf32>
    %cst_154 = arith.constant 0.000000e+00 : f32
    %623 = vector.broadcast %cst_154 : f32 to vector<2x128xf32>
    %624 = arith.cmpf ogt, %622, %623 : vector<2x128xf32>
    %625 = arith.select %624, %610, %599 : vector<2x128xi1>, vector<2x128xf32>
    %c2_i32_155 = arith.constant 2 : i32
    %c2_i32_156 = arith.constant 2 : i32
    %626 = arith.muli %c2_i32_155, %c2_i32_156 : i32
    %627 = tpu.assume_multiple %626, 2 : i32
    %628 = arith.index_cast %627 : i32 to index
    %c0_157 = arith.constant 0 : index
    %629 = vector.load %arg14[%628, %c0_157] : memref<16x128xf32, #tpu.memory_space<vmem>>, vector<2x128xf32>
    %630 = vector.shape_cast %625 : vector<2x128xf32> to vector<2x128x1xf32>
    %631 = vector.broadcast %630 : vector<2x128x1xf32> to vector<2x128x128xf32>
    %632 = arith.addf %631, %590 : vector<2x128x128xf32>
    %633 = vector.shape_cast %629 : vector<2x128xf32> to vector<2x1x128xf32>
    %634 = vector.broadcast %633 : vector<2x1x128xf32> to vector<2x128x128xf32>
    %635 = arith.addf %632, %634 : vector<2x128x128xf32>
    %cst_158 = arith.constant dense<0xFF800000> : vector<2x128xf32>
    %636 = vector.multi_reduction <maximumf>, %635, %cst_158 [1] : vector<2x128x128xf32> to vector<2x128xf32>
    %637 = vector.shape_cast %636 : vector<2x128xf32> to vector<2x1x128xf32>
    %638 = vector.broadcast %637 : vector<2x1x128xf32> to vector<2x128x128xf32>
    %639 = arith.cmpf oeq, %635, %638 : vector<2x128x128xf32>
    %c128_i32_159 = arith.constant 128 : i32
    %640 = vector.broadcast %c128_i32_159 : i32 to vector<2x128x128xi32>
    %641 = arith.select %639, %591, %640 : vector<2x128x128xi1>, vector<2x128x128xi32>
    %cst_160 = arith.constant dense<2147483647> : vector<2x128xi32>
    %642 = vector.multi_reduction <minsi>, %641, %cst_160 [1] : vector<2x128x128xi32> to vector<2x128xi32>
    %643 = arith.index_cast %c2_i32_155 : i32 to index
    %c0_161 = arith.constant 0 : index
    %c0_162 = arith.constant 0 : index
    %644 = vector.load %arg10[%643, %c0_161, %c0_162] : memref<8x2x128xi32, #tpu.memory_space<vmem>>, vector<1x2x128xi32>
    %645 = vector.shape_cast %644 : vector<1x2x128xi32> to vector<2x128xi32>
    %646 = vector.shape_cast %642 : vector<2x128xi32> to vector<1x2x128xi32>
    tpu.vector_store %arg10[%643, %c0_161, %c0_162], %646 {strides = array<i32>} : memref<8x2x128xi32, #tpu.memory_space<vmem>>, vector<1x2x128xi32>,
    %647 = arith.index_cast %627 : i32 to index
    %c0_163 = arith.constant 0 : index
    %648 = vector.load %arg15[%647, %c0_163] : memref<16x128xf32, #tpu.memory_space<vmem>>, vector<2x128xf32>
    %cst_164 = arith.constant 0.000000e+00 : f32
    %649 = vector.broadcast %cst_164 : f32 to vector<2x128xf32>
    %650 = arith.cmpf ogt, %648, %649 : vector<2x128xf32>
    %651 = arith.select %650, %636, %625 : vector<2x128xi1>, vector<2x128xf32>
    %c3_i32_165 = arith.constant 3 : i32
    %c2_i32_166 = arith.constant 2 : i32
    %652 = arith.muli %c3_i32_165, %c2_i32_166 : i32
    %653 = tpu.assume_multiple %652, 2 : i32
    %654 = arith.index_cast %653 : i32 to index
    %c0_167 = arith.constant 0 : index
    %655 = vector.load %arg14[%654, %c0_167] : memref<16x128xf32, #tpu.memory_space<vmem>>, vector<2x128xf32>
    %656 = vector.shape_cast %651 : vector<2x128xf32> to vector<2x128x1xf32>
    %657 = vector.broadcast %656 : vector<2x128x1xf32> to vector<2x128x128xf32>
    %658 = arith.addf %657, %590 : vector<2x128x128xf32>
    %659 = vector.shape_cast %655 : vector<2x128xf32> to vector<2x1x128xf32>
    %660 = vector.broadcast %659 : vector<2x1x128xf32> to vector<2x128x128xf32>
    %661 = arith.addf %658, %660 : vector<2x128x128xf32>
    %cst_168 = arith.constant dense<0xFF800000> : vector<2x128xf32>
    %662 = vector.multi_reduction <maximumf>, %661, %cst_168 [1] : vector<2x128x128xf32> to vector<2x128xf32>
    %663 = vector.shape_cast %662 : vector<2x128xf32> to vector<2x1x128xf32>
    %664 = vector.broadcast %663 : vector<2x1x128xf32> to vector<2x128x128xf32>
    %665 = arith.cmpf oeq, %661, %664 : vector<2x128x128xf32>
    %c128_i32_169 = arith.constant 128 : i32
    %666 = vector.broadcast %c128_i32_169 : i32 to vector<2x128x128xi32>
    %667 = arith.select %665, %591, %666 : vector<2x128x128xi1>, vector<2x128x128xi32>
    %cst_170 = arith.constant dense<2147483647> : vector<2x128xi32>
    %668 = vector.multi_reduction <minsi>, %667, %cst_170 [1] : vector<2x128x128xi32> to vector<2x128xi32>
    %669 = arith.index_cast %c3_i32_165 : i32 to index
    %c0_171 = arith.constant 0 : index
    %c0_172 = arith.constant 0 : index
    %670 = vector.load %arg10[%669, %c0_171, %c0_172] : memref<8x2x128xi32, #tpu.memory_space<vmem>>, vector<1x2x128xi32>
    %671 = vector.shape_cast %670 : vector<1x2x128xi32> to vector<2x128xi32>
    %672 = vector.shape_cast %668 : vector<2x128xi32> to vector<1x2x128xi32>
    tpu.vector_store %arg10[%669, %c0_171, %c0_172], %672 {strides = array<i32>} : memref<8x2x128xi32, #tpu.memory_space<vmem>>, vector<1x2x128xi32>,
    %673 = arith.index_cast %653 : i32 to index
    %c0_173 = arith.constant 0 : index
    %674 = vector.load %arg15[%673, %c0_173] : memref<16x128xf32, #tpu.memory_space<vmem>>, vector<2x128xf32>
    %cst_174 = arith.constant 0.000000e+00 : f32
    %675 = vector.broadcast %cst_174 : f32 to vector<2x128xf32>
    %676 = arith.cmpf ogt, %674, %675 : vector<2x128xf32>
    %677 = arith.select %676, %662, %651 : vector<2x128xi1>, vector<2x128xf32>
    %c4_i32_175 = arith.constant 4 : i32
    %c2_i32_176 = arith.constant 2 : i32
    %678 = arith.muli %c4_i32_175, %c2_i32_176 : i32
    %679 = tpu.assume_multiple %678, 2 : i32
    %680 = arith.index_cast %679 : i32 to index
    %c0_177 = arith.constant 0 : index
    %681 = vector.load %arg14[%680, %c0_177] : memref<16x128xf32, #tpu.memory_space<vmem>>, vector<2x128xf32>
    %682 = vector.shape_cast %677 : vector<2x128xf32> to vector<2x128x1xf32>
    %683 = vector.broadcast %682 : vector<2x128x1xf32> to vector<2x128x128xf32>
    %684 = arith.addf %683, %590 : vector<2x128x128xf32>
    %685 = vector.shape_cast %681 : vector<2x128xf32> to vector<2x1x128xf32>
    %686 = vector.broadcast %685 : vector<2x1x128xf32> to vector<2x128x128xf32>
    %687 = arith.addf %684, %686 : vector<2x128x128xf32>
    %cst_178 = arith.constant dense<0xFF800000> : vector<2x128xf32>
    %688 = vector.multi_reduction <maximumf>, %687, %cst_178 [1] : vector<2x128x128xf32> to vector<2x128xf32>
    %689 = vector.shape_cast %688 : vector<2x128xf32> to vector<2x1x128xf32>
    %690 = vector.broadcast %689 : vector<2x1x128xf32> to vector<2x128x128xf32>
    %691 = arith.cmpf oeq, %687, %690 : vector<2x128x128xf32>
    %c128_i32_179 = arith.constant 128 : i32
    %692 = vector.broadcast %c128_i32_179 : i32 to vector<2x128x128xi32>
    %693 = arith.select %691, %591, %692 : vector<2x128x128xi1>, vector<2x128x128xi32>
    %cst_180 = arith.constant dense<2147483647> : vector<2x128xi32>
    %694 = vector.multi_reduction <minsi>, %693, %cst_180 [1] : vector<2x128x128xi32> to vector<2x128xi32>
    %695 = arith.index_cast %c4_i32_175 : i32 to index
    %c0_181 = arith.constant 0 : index
    %c0_182 = arith.constant 0 : index
    %696 = vector.load %arg10[%695, %c0_181, %c0_182] : memref<8x2x128xi32, #tpu.memory_space<vmem>>, vector<1x2x128xi32>
    %697 = vector.shape_cast %696 : vector<1x2x128xi32> to vector<2x128xi32>
    %698 = vector.shape_cast %694 : vector<2x128xi32> to vector<1x2x128xi32>
    tpu.vector_store %arg10[%695, %c0_181, %c0_182], %698 {strides = array<i32>} : memref<8x2x128xi32, #tpu.memory_space<vmem>>, vector<1x2x128xi32>,
    %699 = arith.index_cast %679 : i32 to index
    %c0_183 = arith.constant 0 : index
    %700 = vector.load %arg15[%699, %c0_183] : memref<16x128xf32, #tpu.memory_space<vmem>>, vector<2x128xf32>
    %cst_184 = arith.constant 0.000000e+00 : f32
    %701 = vector.broadcast %cst_184 : f32 to vector<2x128xf32>
    %702 = arith.cmpf ogt, %700, %701 : vector<2x128xf32>
    %703 = arith.select %702, %688, %677 : vector<2x128xi1>, vector<2x128xf32>
    %c5_i32_185 = arith.constant 5 : i32
    %c2_i32_186 = arith.constant 2 : i32
    %704 = arith.muli %c5_i32_185, %c2_i32_186 : i32
    %705 = tpu.assume_multiple %704, 2 : i32
    %706 = arith.index_cast %705 : i32 to index
    %c0_187 = arith.constant 0 : index
    %707 = vector.load %arg14[%706, %c0_187] : memref<16x128xf32, #tpu.memory_space<vmem>>, vector<2x128xf32>
    %708 = vector.shape_cast %703 : vector<2x128xf32> to vector<2x128x1xf32>
    %709 = vector.broadcast %708 : vector<2x128x1xf32> to vector<2x128x128xf32>
    %710 = arith.addf %709, %590 : vector<2x128x128xf32>
    %711 = vector.shape_cast %707 : vector<2x128xf32> to vector<2x1x128xf32>
    %712 = vector.broadcast %711 : vector<2x1x128xf32> to vector<2x128x128xf32>
    %713 = arith.addf %710, %712 : vector<2x128x128xf32>
    %cst_188 = arith.constant dense<0xFF800000> : vector<2x128xf32>
    %714 = vector.multi_reduction <maximumf>, %713, %cst_188 [1] : vector<2x128x128xf32> to vector<2x128xf32>
    %715 = vector.shape_cast %714 : vector<2x128xf32> to vector<2x1x128xf32>
    %716 = vector.broadcast %715 : vector<2x1x128xf32> to vector<2x128x128xf32>
    %717 = arith.cmpf oeq, %713, %716 : vector<2x128x128xf32>
    %c128_i32_189 = arith.constant 128 : i32
    %718 = vector.broadcast %c128_i32_189 : i32 to vector<2x128x128xi32>
    %719 = arith.select %717, %591, %718 : vector<2x128x128xi1>, vector<2x128x128xi32>
    %cst_190 = arith.constant dense<2147483647> : vector<2x128xi32>
    %720 = vector.multi_reduction <minsi>, %719, %cst_190 [1] : vector<2x128x128xi32> to vector<2x128xi32>
    %721 = arith.index_cast %c5_i32_185 : i32 to index
    %c0_191 = arith.constant 0 : index
    %c0_192 = arith.constant 0 : index
    %722 = vector.load %arg10[%721, %c0_191, %c0_192] : memref<8x2x128xi32, #tpu.memory_space<vmem>>, vector<1x2x128xi32>
    %723 = vector.shape_cast %722 : vector<1x2x128xi32> to vector<2x128xi32>
    %724 = vector.shape_cast %720 : vector<2x128xi32> to vector<1x2x128xi32>
    tpu.vector_store %arg10[%721, %c0_191, %c0_192], %724 {strides = array<i32>} : memref<8x2x128xi32, #tpu.memory_space<vmem>>, vector<1x2x128xi32>,
    %725 = arith.index_cast %705 : i32 to index
    %c0_193 = arith.constant 0 : index
    %726 = vector.load %arg15[%725, %c0_193] : memref<16x128xf32, #tpu.memory_space<vmem>>, vector<2x128xf32>
    %cst_194 = arith.constant 0.000000e+00 : f32
    %727 = vector.broadcast %cst_194 : f32 to vector<2x128xf32>
    %728 = arith.cmpf ogt, %726, %727 : vector<2x128xf32>
    %729 = arith.select %728, %714, %703 : vector<2x128xi1>, vector<2x128xf32>
    %c6_i32_195 = arith.constant 6 : i32
    %c2_i32_196 = arith.constant 2 : i32
    %730 = arith.muli %c6_i32_195, %c2_i32_196 : i32
    %731 = tpu.assume_multiple %730, 2 : i32
    %732 = arith.index_cast %731 : i32 to index
    %c0_197 = arith.constant 0 : index
    %733 = vector.load %arg14[%732, %c0_197] : memref<16x128xf32, #tpu.memory_space<vmem>>, vector<2x128xf32>
    %734 = vector.shape_cast %729 : vector<2x128xf32> to vector<2x128x1xf32>
    %735 = vector.broadcast %734 : vector<2x128x1xf32> to vector<2x128x128xf32>
    %736 = arith.addf %735, %590 : vector<2x128x128xf32>
    %737 = vector.shape_cast %733 : vector<2x128xf32> to vector<2x1x128xf32>
    %738 = vector.broadcast %737 : vector<2x1x128xf32> to vector<2x128x128xf32>
    %739 = arith.addf %736, %738 : vector<2x128x128xf32>
    %cst_198 = arith.constant dense<0xFF800000> : vector<2x128xf32>
    %740 = vector.multi_reduction <maximumf>, %739, %cst_198 [1] : vector<2x128x128xf32> to vector<2x128xf32>
    %741 = vector.shape_cast %740 : vector<2x128xf32> to vector<2x1x128xf32>
    %742 = vector.broadcast %741 : vector<2x1x128xf32> to vector<2x128x128xf32>
    %743 = arith.cmpf oeq, %739, %742 : vector<2x128x128xf32>
    %c128_i32_199 = arith.constant 128 : i32
    %744 = vector.broadcast %c128_i32_199 : i32 to vector<2x128x128xi32>
    %745 = arith.select %743, %591, %744 : vector<2x128x128xi1>, vector<2x128x128xi32>
    %cst_200 = arith.constant dense<2147483647> : vector<2x128xi32>
    %746 = vector.multi_reduction <minsi>, %745, %cst_200 [1] : vector<2x128x128xi32> to vector<2x128xi32>
    %747 = arith.index_cast %c6_i32_195 : i32 to index
    %c0_201 = arith.constant 0 : index
    %c0_202 = arith.constant 0 : index
    %748 = vector.load %arg10[%747, %c0_201, %c0_202] : memref<8x2x128xi32, #tpu.memory_space<vmem>>, vector<1x2x128xi32>
    %749 = vector.shape_cast %748 : vector<1x2x128xi32> to vector<2x128xi32>
    %750 = vector.shape_cast %746 : vector<2x128xi32> to vector<1x2x128xi32>
    tpu.vector_store %arg10[%747, %c0_201, %c0_202], %750 {strides = array<i32>} : memref<8x2x128xi32, #tpu.memory_space<vmem>>, vector<1x2x128xi32>,
    %751 = arith.index_cast %731 : i32 to index
    %c0_203 = arith.constant 0 : index
    %752 = vector.load %arg15[%751, %c0_203] : memref<16x128xf32, #tpu.memory_space<vmem>>, vector<2x128xf32>
    %cst_204 = arith.constant 0.000000e+00 : f32
    %753 = vector.broadcast %cst_204 : f32 to vector<2x128xf32>
    %754 = arith.cmpf ogt, %752, %753 : vector<2x128xf32>
    %755 = arith.select %754, %740, %729 : vector<2x128xi1>, vector<2x128xf32>
    %c7_i32_205 = arith.constant 7 : i32
    %c2_i32_206 = arith.constant 2 : i32
    %756 = arith.muli %c7_i32_205, %c2_i32_206 : i32
    %757 = tpu.assume_multiple %756, 2 : i32
    %758 = arith.index_cast %757 : i32 to index
    %c0_207 = arith.constant 0 : index
    %759 = vector.load %arg14[%758, %c0_207] : memref<16x128xf32, #tpu.memory_space<vmem>>, vector<2x128xf32>
    %760 = vector.shape_cast %755 : vector<2x128xf32> to vector<2x128x1xf32>
    %761 = vector.broadcast %760 : vector<2x128x1xf32> to vector<2x128x128xf32>
    %762 = arith.addf %761, %590 : vector<2x128x128xf32>
    %763 = vector.shape_cast %759 : vector<2x128xf32> to vector<2x1x128xf32>
    %764 = vector.broadcast %763 : vector<2x1x128xf32> to vector<2x128x128xf32>
    %765 = arith.addf %762, %764 : vector<2x128x128xf32>
    %cst_208 = arith.constant dense<0xFF800000> : vector<2x128xf32>
    %766 = vector.multi_reduction <maximumf>, %765, %cst_208 [1] : vector<2x128x128xf32> to vector<2x128xf32>
    %767 = vector.shape_cast %766 : vector<2x128xf32> to vector<2x1x128xf32>
    %768 = vector.broadcast %767 : vector<2x1x128xf32> to vector<2x128x128xf32>
    %769 = arith.cmpf oeq, %765, %768 : vector<2x128x128xf32>
    %c128_i32_209 = arith.constant 128 : i32
    %770 = vector.broadcast %c128_i32_209 : i32 to vector<2x128x128xi32>
    %771 = arith.select %769, %591, %770 : vector<2x128x128xi1>, vector<2x128x128xi32>
    %cst_210 = arith.constant dense<2147483647> : vector<2x128xi32>
    %772 = vector.multi_reduction <minsi>, %771, %cst_210 [1] : vector<2x128x128xi32> to vector<2x128xi32>
    %773 = arith.index_cast %c7_i32_205 : i32 to index
    %c0_211 = arith.constant 0 : index
    %c0_212 = arith.constant 0 : index
    %774 = vector.load %arg10[%773, %c0_211, %c0_212] : memref<8x2x128xi32, #tpu.memory_space<vmem>>, vector<1x2x128xi32>
    %775 = vector.shape_cast %774 : vector<1x2x128xi32> to vector<2x128xi32>
    %776 = vector.shape_cast %772 : vector<2x128xi32> to vector<1x2x128xi32>
    tpu.vector_store %arg10[%773, %c0_211, %c0_212], %776 {strides = array<i32>} : memref<8x2x128xi32, #tpu.memory_space<vmem>>, vector<1x2x128xi32>,
    %777 = arith.index_cast %757 : i32 to index
    %c0_213 = arith.constant 0 : index
    %778 = vector.load %arg15[%777, %c0_213] : memref<16x128xf32, #tpu.memory_space<vmem>>, vector<2x128xf32>
    %cst_214 = arith.constant 0.000000e+00 : f32
    %779 = vector.broadcast %cst_214 : f32 to vector<2x128xf32>
    %780 = arith.cmpf ogt, %778, %779 : vector<2x128xf32>
    %781 = arith.select %780, %766, %755 : vector<2x128xi1>, vector<2x128xf32>
    %c7_i32_215 = arith.constant 7 : i32
    %c0_216 = arith.constant 0 : index
    %c0_217 = arith.constant 0 : index
    %782 = vector.load %arg9[%c0_216, %c0_217] : memref<1x128xf32, #tpu.memory_space<vmem>>, vector<1x128xf32>
    %783 = vector.broadcast %782 : vector<1x128xf32> to vector<2x128xf32>
    %784 = arith.addf %781, %783 : vector<2x128xf32>
    %c0_218 = arith.constant 0 : index
    %c0_219 = arith.constant 0 : index
    %785 = vector.load %arg11[%c0_218, %c0_219] : memref<2x128xf32, #tpu.memory_space<vmem>>, vector<2x128xf32>
    tpu.vector_store %arg11[%c0_218, %c0_219], %784 {strides = array<i32>} : memref<2x128xf32, #tpu.memory_space<vmem>>, vector<2x128xf32>,
    return
  }
}

</mosaic_0001>

<llo_original>
// kernel: tpu_custom_call.1
$region0: #{tpu_custom_call.1}
  #allocation0 [shape = 'u32[]', space=smem, size = 0x4, offset = 0x4, fixed_abs, tag = 'smem constant byte address 0x4 - core index']
  #allocation1 [shape = 'u32[144,128]{1,0:T(1,128)}', space=vmem, size = 0x12000, scoped, tag = 'internal scratch']
  #allocation2 [shape = 'f32[16,128]{1,0:T(8,128)}', space=vmem, size = 0x2000, scoped, tag = 'scratch operand']
  #allocation3 [shape = 'f32[16,32]{1,0:T(8,128)}', space=vmem, size = 0x2000, scoped, tag = 'scratch operand']
  #allocation4 [shape = 'f32[16,128]{1,0:T(8,128)}', space=vmem, size = 0x2000, scoped, tag = 'scratch operand']
  #allocation5 [shape = 'f32[16,128]{1,0:T(8,128)}', space=vmem, size = 0x2000, scoped, tag = 'scratch operand']
  %s0 = inlined_call_operand.hbm [shape: bf16[16,32], index: 0, kind: input, shape index: {}]
  %s1 = inlined_call_operand.vmem [shape: bf16[32,128], index: 1, kind: input, shape index: {}]
  %s2 = inlined_call_operand.hbm [shape: f32[1,128], index: 2, kind: input, shape index: {}]
  %s3 = inlined_call_operand.hbm [shape: bf16[32,128], index: 3, kind: input, shape index: {}]
  %s4 = inlined_call_operand.vmem [shape: bf16[32,128], index: 4, kind: input, shape index: {}]
  %s5 = inlined_call_operand.vmem [shape: f32[1,128], index: 5, kind: input, shape index: {}]
  %s6 = inlined_call_operand.vmem [shape: f32[16,1], index: 6, kind: input, shape index: {}]
  %s7 = inlined_call_operand.hbm [shape: f32[128,128], index: 7, kind: input, shape index: {}]
  %s8 = inlined_call_operand.vmem [shape: f32[1,128], index: 8, kind: input, shape index: {}]
  %s9 = inlined_call_operand.vmem [shape: f32[1,128], index: 9, kind: input, shape index: {}]
  %s10 = inlined_call_operand.hbm [shape: s32[8,2,128], index: 10, kind: output, shape index: {0}]
  %s11 = inlined_call_operand.hbm [shape: f32[2,128], index: 11, kind: output, shape index: {1}]
  %12 = xla_tuple %s10, %s11
  %s13 = sld [smem:[#allocation0]]
  $region74: #{tpu_custom_call.1} parent=0
    _
  %s15 = ssub.s32 1, %s13
  %s16 = scalar_select 0, %s15, %s13
  $region1: #{tpu_custom_call.1} parent=0
    #allocation6 [shape = 'u8[4096]{0}', space=vmem, size = 0x1000, scoped, tag = 'input window, operand 0, single buffered']
    #allocation7 [shape = 's32[1]{0}', space=sflag, size = 0x4, scoped, tag = 'scoped memory for tpu_custom_call.1']
    #allocation8 [shape = 's32[1]{0}', space=sflag, size = 0x4, scoped, tag = 'scoped memory for tpu_custom_call.1']
    #allocation9 [shape = 'u8[512]{0}', space=vmem, size = 0x400, scoped, tag = 'input window, operand 2, single buffered']
    #allocation10 [shape = 's32[1]{0}', space=sflag, size = 0x4, scoped, tag = 'scoped memory for tpu_custom_call.1']
    #allocation11 [shape = 'u8[8192]{0}', space=vmem, size = 0x2000, scoped, tag = 'input window, operand 3, single buffered']
    #allocation12 [shape = 'u8[65536]{0}', space=vmem, size = 0x10000, scoped, tag = 'input window, operand 7, single buffered']
    #allocation13 [shape = 's32[1]{0}', space=sflag, size = 0x4, scoped, tag = 'scoped memory for tpu_custom_call.1']
    #allocation14 [shape = 'u8[8192]{0}', space=vmem, size = 0x2000, scoped, tag = 'output window, operand 0, single buffered']
    #allocation15 [shape = 'u8[1024]{0}', space=vmem, size = 0x400, scoped, tag = 'output window, operand 1, single buffered']
    #allocation16 [shape = 's32[1]{0}', space=sflag, size = 0x4, scoped, tag = 'scoped memory for tpu_custom_call.1']
    %17 = vsyncpa [#allocation7], 0
    %18 = vsyncpa [#allocation10], 0
    %19 = vsyncpa [#allocation13], 0
    %20 = vsyncpa [#allocation8], 0
    %21 = vsyncpa [#allocation16], 0
    // Predicated region
    $region2: #{tpu_custom_call.1} parent=1 // pred_check
      _
    $region3: #{tpu_custom_call.1} parent=1 // pred_check_branch
      %23 = sbr.rel (0) target = $region5
    $region4: #{tpu_custom_call.1} parent=1 // pred_region
      %s25 = ssub.s32 128, 128
      %26 = vsyncadd [#allocation7], %s25
      %s27 = sshll.u32 [#allocation6], 4
      %s28 = int_to_ptr.vmem [resolvable:$true] %s27
      %33 = dma.hbm_to_vmem [thread:$0]  %s0, 128, %s28, [#allocation7], 64, 64, 4
    $region5: #{tpu_custom_call.1} parent=1 // pred_fallthru
      _
    // Predicated region
    $region6: #{tpu_custom_call.1} parent=1 // pred_check
      _
    $region7: #{tpu_custom_call.1} parent=1 // pred_check_branch
      %35 = sbr.rel (0) target = $region9
    $region8: #{tpu_custom_call.1} parent=1 // pred_region
      _
    $region9: #{tpu_custom_call.1} parent=1 // pred_fallthru
      _
    // Predicated region
    $region10: #{tpu_custom_call.1} parent=1 // pred_check
      _
    $region11: #{tpu_custom_call.1} parent=1 // pred_check_branch
      %37 = sbr.rel (0) target = $region13
    $region12: #{tpu_custom_call.1} parent=1 // pred_region
      %s39 = ssub.s32 16, 16
      %40 = vsyncadd [#allocation10], %s39
      %s42 = sshll.u32 [#allocation9], 4
      %s43 = int_to_ptr.vmem [resolvable:$true] %s42
      %45 = dma.hbm_to_vmem [thread:$0]  %s2, 16, %s43, [#allocation10]
    $region13: #{tpu_custom_call.1} parent=1 // pred_fallthru
      _
    // Predicated region
    $region14: #{tpu_custom_call.1} parent=1 // pred_check
      _
    $region15: #{tpu_custom_call.1} parent=1 // pred_check_branch
      %47 = sbr.rel (0) target = $region17
    $region16: #{tpu_custom_call.1} parent=1 // pred_region
      %s49 = ssub.s32 256, 256
      %50 = vsyncadd [#allocation10], %s49
      %s51 = sshll.u32 [#allocation11], 4
      %s52 = int_to_ptr.vmem [resolvable:$true] %s51
      %57 = dma.hbm_to_vmem [thread:$0]  %s3, 256, %s52, [#allocation10], 64, 64, 4
    $region17: #{tpu_custom_call.1} parent=1 // pred_fallthru
      _
    // Predicated region
    $region18: #{tpu_custom_call.1} parent=1 // pred_check
      _
    $region19: #{tpu_custom_call.1} parent=1 // pred_check_branch
      %59 = sbr.rel (0) target = $region21
    $region20: #{tpu_custom_call.1} parent=1 // pred_region
      _
    $region21: #{tpu_custom_call.1} parent=1 // pred_fallthru
      _
    // Predicated region
    $region22: #{tpu_custom_call.1} parent=1 // pred_check
      _
    $region23: #{tpu_custom_call.1} parent=1 // pred_check_branch
      %61 = sbr.rel (0) target = $region25
    $region24: #{tpu_custom_call.1} parent=1 // pred_region
      _
    $region25: #{tpu_custom_call.1} parent=1 // pred_fallthru
      _
    // Predicated region
    $region26: #{tpu_custom_call.1} parent=1 // pred_check
      _
    $region27: #{tpu_custom_call.1} parent=1 // pred_check_branch
      %63 = sbr.rel (0) target = $region29
    $region28: #{tpu_custom_call.1} parent=1 // pred_region
      _
    $region29: #{tpu_custom_call.1} parent=1 // pred_fallthru
      _
    // Predicated region
    $region30: #{tpu_custom_call.1} parent=1 // pred_check
      _
    $region31: #{tpu_custom_call.1} parent=1 // pred_check_branch
      %65 = sbr.rel (0) target = $region33
    $region32: #{tpu_custom_call.1} parent=1 // pred_region
      %s67 = ssub.s32 2048, 2048
      %68 = vsyncadd [#allocation13], %s67
      %s69 = sshll.u32 [#allocation12], 4
      %s70 = int_to_ptr.vmem [resolvable:$true] %s69
      %75 = dma.hbm_to_vmem [thread:$0]  %s7, 2048, %s70, [#allocation13], 128, 128, 8
    $region33: #{tpu_custom_call.1} parent=1 // pred_fallthru
      _
    // Predicated region
    $region34: #{tpu_custom_call.1} parent=1 // pred_check
      _
    $region35: #{tpu_custom_call.1} parent=1 // pred_check_branch
      %77 = sbr.rel (0) target = $region37
    $region36: #{tpu_custom_call.1} parent=1 // pred_region
      _
    $region37: #{tpu_custom_call.1} parent=1 // pred_fallthru
      _
    // Predicated region
    $region38: #{tpu_custom_call.1} parent=1 // pred_check
      _
    $region39: #{tpu_custom_call.1} parent=1 // pred_check_branch
      %79 = sbr.rel (0) target = $region41
    $region40: #{tpu_custom_call.1} parent=1 // pred_region
      _
    $region41: #{tpu_custom_call.1} parent=1 // pred_fallthru
      _
    // Predicated region
    $region42: #{tpu_custom_call.1} parent=1 // pred_check
      _
    $region43: #{tpu_custom_call.1} parent=1 // pred_check_branch
      %81 = sbr.rel (0) target = $region45
    $region44: #{tpu_custom_call.1} parent=1 // pred_region
      %82 = dma.done [#allocation7], 128
    $region45: #{tpu_custom_call.1} parent=1 // pred_fallthru
      _
    // Predicated region
    $region46: #{tpu_custom_call.1} parent=1 // pred_check
      _
    $region47: #{tpu_custom_call.1} parent=1 // pred_check_branch
      %84 = sbr.rel (0) target = $region49
    $region48: #{tpu_custom_call.1} parent=1 // pred_region
      %85 = dma.done [#allocation10], 16
    $region49: #{tpu_custom_call.1} parent=1 // pred_fallthru
      _
    // Predicated region
    $region50: #{tpu_custom_call.1} parent=1 // pred_check
      _
    $region51: #{tpu_custom_call.1} parent=1 // pred_check_branch
      %87 = sbr.rel (0) target = $region53
    $region52: #{tpu_custom_call.1} parent=1 // pred_region
      %88 = dma.done [#allocation10], 256
    $region53: #{tpu_custom_call.1} parent=1 // pred_fallthru
      _
    // Predicated region
    $region54: #{tpu_custom_call.1} parent=1 // pred_check
      _
    $region55: #{tpu_custom_call.1} parent=1 // pred_check_branch
      %90 = sbr.rel (0) target = $region57
    $region56: #{tpu_custom_call.1} parent=1 // pred_region
      %91 = dma.done [#allocation13], 2048
    $region57: #{tpu_custom_call.1} parent=1 // pred_fallthru
      _
    %v93 = vld [vmem:[#allocation6] sm:$0xf]
    %v94 = vld [vmem:[#allocation6 + $0x4] sm:$0xf]
    %v95 = vld [vmem:[%s1] sm:$0xf]
    %v96 = vld [vmem:[%s1 + $0x4] sm:$0xf]
    %v97 = vld [vmem:[%s1 + $0x8] sm:$0xf]
    %v98 = vld [vmem:[%s1 + $0xc] sm:$0xf]
    %v99 = vld [vmem:[#allocation9] sm:$0x1]
    %v101 = vlaneseq
    %v102 = vshrl.u32 %v101, 7
    %v103 = vsub.s32 0, %v102
    %v104 = vrot.slane %v99, %v103
    %v108 = vunpack.c.l.b16 %v93
    %v109 = vunpack.c.l.b16 %v94
    %v110 = vpack.c.b16 %v109, %v108
    %v115 = vunpack.c.l.b16 %v95
    %v116 = vunpack.c.l.b16 %v96
    %v117 = vunpack.c.l.b16 %v97
    %v118 = vunpack.c.l.b16 %v98
    %v119 = vpack.c.b16 %v116, %v115
    %v120 = vpack.c.b16 %v118, %v117
    %vm123 = vcmask 261120
    %v125 = vsel %vm123, %v110, 0
    %127 = vmatprep.subr.bf16.mxu0 0
    %128 = vmatpush1.bf16.msra.mxu0 %v119
    %129 = vmatprep.subr.bf16.mxu0 0
    %130 = vmatpush1.bf16.msra.mxu0 %v120
    %131 = vmatprep.subr.bf16.mxu0 0
    %132 = vmatpush1.bf16.msra.mxu0 0
    %133 = vmatprep.subr.bf16.mxu0 0
    %134 = vmatpush1.bf16.msra.mxu0 0
    %135 = vmatprep.subr.bf16.mxu0 0
    %136 = vmatpush1.bf16.msra.mxu0 0
    %137 = vmatprep.subr.bf16.mxu0 0
    %138 = vmatpush1.bf16.msra.mxu0 0
    %139 = vmatprep.subr.bf16.mxu0 0
    %140 = vmatpush1.bf16.msra.mxu0 0
    %141 = vmatprep.subr.bf16.mxu0 0
    %142 = vmatpush1.bf16.msra.mxu0 0
    %143 = vmatprep.subr.bf16.mxu0 0
    %144 = vmatpush1.bf16.msra.mxu0 0
    %145 = vmatprep.subr.bf16.mxu0 0
    %146 = vmatpush1.bf16.msra.mxu0 0
    %147 = vmatprep.subr.bf16.mxu0 0
    %148 = vmatpush1.bf16.msra.mxu0 0
    %149 = vmatprep.subr.bf16.mxu0 0
    %150 = vmatpush1.bf16.msra.mxu0 0
    %151 = vmatprep.subr.bf16.mxu0 0
    %152 = vmatpush1.bf16.msra.mxu0 0
    %153 = vmatprep.subr.bf16.mxu0 0
    %154 = vmatpush1.bf16.msra.mxu0 0
    %155 = vmatprep.subr.bf16.mxu0 0
    %156 = vmatpush1.bf16.msra.mxu0 0
    %157 = vmatprep.subr.bf16.mxu0 0
    %158 = vmatpush1.bf16.msra.mxu0 0
    %159 = vmatprep.mubr.bf16.mxu0 0
    %160 = vmatmul.mubr.bf16.gmra.mrb[0].mxu0 %v125
    %v161 = vpop.f32.mrb[0].mxu0
    %v162 = vadd.f32 %v104, %v161
    %v163 = vpop.f32.mrb[0].mxu0
    %v164 = vpop.f32.mrb[0].mxu0
    %v165 = vadd.f32 %v104, %v164
    %v166 = vpop.f32.mrb[0].mxu0
    %167 = vdwg.mxu0
    %168 = vst [vmem:[#allocation2] sm:$0xff] %v162
    %169 = vst [vmem:[#allocation2 + $0x8] sm:$0xff] %v165
    %v170 = vld [vmem:[#allocation11] sm:$0xf]
    %v171 = vld [vmem:[#allocation11 + $0x4] sm:$0xf]
    %v172 = vld [vmem:[#allocation11 + $0x8] sm:$0xf]
    %v173 = vld [vmem:[#allocation11 + $0xc] sm:$0xf]
    %v174 = vlaneseq
    %v175 = vand.u32 %v174, 127
    %vm176 = vcmp.lt.s32.totalorder %v175, 64
    %v177 = vld [vmem:[#allocation2] sm:$0x3]
    %s178 = scalar_lea.vmem [#allocation2], 14
    %v179 = vld [vmem:[%s178] sm:$0x3]
    %v180 = vsel %vm176, %v177, %v179
    %v181 = vpack.c.bf16 0.0, 0.0
    %v186 = vunpack.c.l.b16 %v170
    %v187 = vunpack.c.l.b16 %v171
    %v188 = vunpack.c.l.b16 %v172
    %v189 = vunpack.c.l.b16 %v173
    %v190 = vpack.c.b16 %v187, %v186
    %v191 = vpack.c.b16 %v189, %v188
    %v195 = vsel %vm123, %v181, 0
    %197 = vmatprep.subr.bf16.mxu0 0
    %198 = vmatpush1.bf16.msra.mxu0 %v190
    %199 = vmatprep.subr.bf16.mxu0 0
    %200 = vmatpush1.bf16.msra.mxu0 %v191
    %201 = vmatprep.subr.bf16.mxu0 0
    %202 = vmatpush1.bf16.msra.mxu0 0
    %203 = vmatprep.subr.bf16.mxu0 0
    %204 = vmatpush1.bf16.msra.mxu0 0
    %205 = vmatprep.subr.bf16.mxu0 0
    %206 = vmatpush1.bf16.msra.mxu0 0
    %207 = vmatprep.subr.bf16.mxu0 0
    %208 = vmatpush1.bf16.msra.mxu0 0
    %209 = vmatprep.subr.bf16.mxu0 0
    %210 = vmatpush1.bf16.msra.mxu0 0
    %211 = vmatprep.subr.bf16.mxu0 0
    %212 = vmatpush1.bf16.msra.mxu0 0
    %213 = vmatprep.subr.bf16.mxu0 0
    %214 = vmatpush1.bf16.msra.mxu0 0
    %215 = vmatprep.subr.bf16.mxu0 0
    %216 = vmatpush1.bf16.msra.mxu0 0
    %217 = vmatprep.subr.bf16.mxu0 0
    %218 = vmatpush1.bf16.msra.mxu0 0
    %219 = vmatprep.subr.bf16.mxu0 0
    %220 = vmatpush1.bf16.msra.mxu0 0
    %221 = vmatprep.subr.bf16.mxu0 0
    %222 = vmatpush1.bf16.msra.mxu0 0
    %223 = vmatprep.subr.bf16.mxu0 0
    %224 = vmatpush1.bf16.msra.mxu0 0
    %225 = vmatprep.subr.bf16.mxu0 0
    %226 = vmatpush1.bf16.msra.mxu0 0
    %227 = vmatprep.subr.bf16.mxu0 0
    %228 = vmatpush1.bf16.msra.mxu0 0
    %229 = vmatprep.mubr.bf16.mxu0 0
    %230 = vmatmul.mubr.bf16.gmra.mrb[0].mxu0 %v195
    %v231 = vpop.f32.mrb[0].mxu0
    %v232 = vadd.f32 0.0, %v231
    %v233 = vpop.f32.mrb[0].mxu0
    %v234 = vpop.f32.mrb[0].mxu0
    %v235 = vpop.f32.mrb[0].mxu0
    %236 = vdwg.mxu0
    %v237 = vadd.f32 %v180, %v232
    %v238 = vxor.u32 %v237, 2147483648
    %v239 = vmul.f32 %v238, 1.442695
    %v240 = vpow.pop %v239
    %v241 = vadd.f32 %v240, 1.0
    %v242 = vrcp.pop %v241
    %v243 = vmul.f32 1.0, %v242
    %v244 = vtanh.pop %v237
    %v245 = vmul.f32 %v243, 0.0
    %247 = vrot.lane.b32.xlu0 %v244, 96
    %v248 = vpop.permute.xlu0 %247
    %v250 = vmul.f32 %v243, %v248
    %252 = vrot.lane.b32.xlu0 %v250, 16
    %v253 = vpop.permute.xlu0 %252
    %v255 = vadd.f32 %v245, %v253
    %v256 = vtanh.pop %v255
    %258 = vrot.lane.b32.xlu0 %v256, 32
    %v259 = vpop.permute.xlu0 %258
    %v261 = vmul.f32 %v243, %v259
    %263 = vrot.lane.b32.xlu0 %v261, 80
    %v264 = vpop.permute.xlu0 %263
    %vm266 = vcmask 123904
    %267 = vst.msk [vmem:[#allocation3] sm:$0x3] %vm266, %v264
    %268 = vrot.lane.b32.xlu0 %v261, 32
    %v269 = vpop.permute.xlu0 %268
    %s271 = scalar_lea.vmem [#allocation3], 14
    %vm272 = vcmask 255104
    %273 = vst.msk [vmem:[%s271] sm:$0x3] %vm272, %v269
    %s274 = scalar_lea.vmem [#allocation2], 2
    %v275 = vld [vmem:[%s274] sm:$0x3]
    %s276 = scalar_lea.vmem [#allocation2], 12
    %v277 = vld [vmem:[%s276] sm:$0x3]
    %v278 = vsel %vm176, %v275, %v277
    %vm279 = vcmask 130048
    %v280 = vsel %vm279, %v264, %v269
    %v281 = vpack.c.bf16 %v280, %v280
    %v283 = vsel %vm123, %v281, 0
    %285 = vmatprep.subr.bf16.mxu0 0
    %286 = vmatpush1.bf16.msra.mxu0 %v190
    %287 = vmatprep.subr.bf16.mxu0 0
    %288 = vmatpush1.bf16.msra.mxu0 %v191
    %289 = vmatprep.subr.bf16.mxu0 0
    %290 = vmatpush1.bf16.msra.mxu0 0
    %291 = vmatprep.subr.bf16.mxu0 0
    %292 = vmatpush1.bf16.msra.mxu0 0
    %293 = vmatprep.subr.bf16.mxu0 0
    %294 = vmatpush1.bf16.msra.mxu0 0
    %295 = vmatprep.subr.bf16.mxu0 0
    %296 = vmatpush1.bf16.msra.mxu0 0
    %297 = vmatprep.subr.bf16.mxu0 0
    %298 = vmatpush1.bf16.msra.mxu0 0
    %299 = vmatprep.subr.bf16.mxu0 0
    %300 = vmatpush1.bf16.msra.mxu0 0
    %301 = vmatprep.subr.bf16.mxu0 0
    %302 = vmatpush1.bf16.msra.mxu0 0
    %303 = vmatprep.subr.bf16.mxu0 0
    %304 = vmatpush1.bf16.msra.mxu0 0
    %305 = vmatprep.subr.bf16.mxu0 0
    %306 = vmatpush1.bf16.msra.mxu0 0
    %307 = vmatprep.subr.bf16.mxu0 0
    %308 = vmatpush1.bf16.msra.mxu0 0
    %309 = vmatprep.subr.bf16.mxu0 0
    %310 = vmatpush1.bf16.msra.mxu0 0
    %311 = vmatprep.subr.bf16.mxu0 0
    %312 = vmatpush1.bf16.msra.mxu0 0
    %313 = vmatprep.subr.bf16.mxu0 0
    %314 = vmatpush1.bf16.msra.mxu0 0
    %315 = vmatprep.subr.bf16.mxu0 0
    %316 = vmatpush1.bf16.msra.mxu0 0
    %317 = vmatprep.mubr.bf16.mxu0 0
    %318 = vmatmul.mubr.bf16.gmra.mrb[0].mxu0 %v283
    %v319 = vpop.f32.mrb[0].mxu0
    %v320 = vadd.f32 0.0, %v319
    %v321 = vpop.f32.mrb[0].mxu0
    %v322 = vpop.f32.mrb[0].mxu0
    %v323 = vpop.f32.mrb[0].mxu0
    %324 = vdwg.mxu0
    %v325 = vadd.f32 %v278, %v320
    %v326 = vxor.u32 %v325, 2147483648
    %v327 = vmul.f32 %v326, 1.442695
    %v328 = vpow.pop %v327
    %v329 = vadd.f32 %v328, 1.0
    %v330 = vrcp.pop %v329
    %v331 = vmul.f32 1.0, %v330
    %v332 = vtanh.pop %v325
    %v333 = vmul.f32 %v331, %v255
    %335 = vrot.lane.b32.xlu0 %v332, 96
    %v336 = vpop.permute.xlu0 %335
    %v338 = vmul.f32 %v331, %v336
    %340 = vrot.lane.b32.xlu0 %v338, 16
    %v341 = vpop.permute.xlu0 %340
    %v343 = vadd.f32 %v333, %v341
    %v344 = vtanh.pop %v343
    %346 = vrot.lane.b32.xlu0 %v344, 32
    %v347 = vpop.permute.xlu0 %346
    %v349 = vmul.f32 %v331, %v347
    %351 = vrot.lane.b32.xlu0 %v349, 80
    %v352 = vpop.permute.xlu0 %351
    %s354 = scalar_lea.vmem [#allocation3], 2
    %355 = vst.msk [vmem:[%s354] sm:$0x3] %vm266, %v352
    %356 = vrot.lane.b32.xlu0 %v349, 32
    %v357 = vpop.permute.xlu0 %356
    %s359 = scalar_lea.vmem [#allocation3], 12
    %360 = vst.msk [vmem:[%s359] sm:$0x3] %vm272, %v357
    %s361 = scalar_lea.vmem [#allocation2], 4
    %v362 = vld [vmem:[%s361] sm:$0x3]
    %s363 = scalar_lea.vmem [#allocation2], 10
    %v364 = vld [vmem:[%s363] sm:$0x3]
    %v365 = vsel %vm176, %v362, %v364
    %v366 = vsel %vm279, %v352, %v357
    %v367 = vpack.c.bf16 %v366, %v366
    %v369 = vsel %vm123, %v367, 0
    %371 = vmatprep.subr.bf16.mxu0 0
    %372 = vmatpush1.bf16.msra.mxu0 %v190
    %373 = vmatprep.subr.bf16.mxu0 0
    %374 = vmatpush1.bf16.msra.mxu0 %v191
    %375 = vmatprep.subr.bf16.mxu0 0
    %376 = vmatpush1.bf16.msra.mxu0 0
    %377 = vmatprep.subr.bf16.mxu0 0
    %378 = vmatpush1.bf16.msra.mxu0 0
    %379 = vmatprep.subr.bf16.mxu0 0
    %380 = vmatpush1.bf16.msra.mxu0 0
    %381 = vmatprep.subr.bf16.mxu0 0
    %382 = vmatpush1.bf16.msra.mxu0 0
    %383 = vmatprep.subr.bf16.mxu0 0
    %384 = vmatpush1.bf16.msra.mxu0 0
    %385 = vmatprep.subr.bf16.mxu0 0
    %386 = vmatpush1.bf16.msra.mxu0 0
    %387 = vmatprep.subr.bf16.mxu0 0
    %388 = vmatpush1.bf16.msra.mxu0 0
    %389 = vmatprep.subr.bf16.mxu0 0
    %390 = vmatpush1.bf16.msra.mxu0 0
    %391 = vmatprep.subr.bf16.mxu0 0
    %392 = vmatpush1.bf16.msra.mxu0 0
    %393 = vmatprep.subr.bf16.mxu0 0
    %394 = vmatpush1.bf16.msra.mxu0 0
    %395 = vmatprep.subr.bf16.mxu0 0
    %396 = vmatpush1.bf16.msra.mxu0 0
    %397 = vmatprep.subr.bf16.mxu0 0
    %398 = vmatpush1.bf16.msra.mxu0 0
    %399 = vmatprep.subr.bf16.mxu0 0
    %400 = vmatpush1.bf16.msra.mxu0 0
    %401 = vmatprep.subr.bf16.mxu0 0
    %402 = vmatpush1.bf16.msra.mxu0 0
    %403 = vmatprep.mubr.bf16.mxu0 0
    %404 = vmatmul.mubr.bf16.gmra.mrb[0].mxu0 %v369
    %v405 = vpop.f32.mrb[0].mxu0
    %v406 = vadd.f32 0.0, %v405
    %v407 = vpop.f32.mrb[0].mxu0
    %v408 = vpop.f32.mrb[0].mxu0
    %v409 = vpop.f32.mrb[0].mxu0
    %410 = vdwg.mxu0
    %v411 = vadd.f32 %v365, %v406
    %v412 = vxor.u32 %v411, 2147483648
    %v413 = vmul.f32 %v412, 1.442695
    %v414 = vpow.pop %v413
    %v415 = vadd.f32 %v414, 1.0
    %v416 = vrcp.pop %v415
    %v417 = vmul.f32 1.0, %v416
    %v418 = vtanh.pop %v411
    %v419 = vmul.f32 %v417, %v343
    %421 = vrot.lane.b32.xlu0 %v418, 96
    %v422 = vpop.permute.xlu0 %421
    %v424 = vmul.f32 %v417, %v422
    %426 = vrot.lane.b32.xlu0 %v424, 16
    %v427 = vpop.permute.xlu0 %426
    %v429 = vadd.f32 %v419, %v427
    %v430 = vtanh.pop %v429
    %432 = vrot.lane.b32.xlu0 %v430, 32
    %v433 = vpop.permute.xlu0 %432
    %v435 = vmul.f32 %v417, %v433
    %437 = vrot.lane.b32.xlu0 %v435, 80
    %v438 = vpop.permute.xlu0 %437
    %s440 = scalar_lea.vmem [#allocation3], 4
    %441 = vst.msk [vmem:[%s440] sm:$0x3] %vm266, %v438
    %442 = vrot.lane.b32.xlu0 %v435, 32
    %v443 = vpop.permute.xlu0 %442
    %s445 = scalar_lea.vmem [#allocation3], 10
    %446 = vst.msk [vmem:[%s445] sm:$0x3] %vm272, %v443
    %s447 = scalar_lea.vmem [#allocation2], 6
    %v448 = vld [vmem:[%s447] sm:$0x3]
    %s449 = scalar_lea.vmem [#allocation2], 8
    %v450 = vld [vmem:[%s449] sm:$0x3]
    %v451 = vsel %vm176, %v448, %v450
    %v452 = vsel %vm279, %v438, %v443
    %v453 = vpack.c.bf16 %v452, %v452
    %v455 = vsel %vm123, %v453, 0
    %457 = vmatprep.subr.bf16.mxu0 0
    %458 = vmatpush1.bf16.msra.mxu0 %v190
    %459 = vmatprep.subr.bf16.mxu0 0
    %460 = vmatpush1.bf16.msra.mxu0 %v191
    %461 = vmatprep.subr.bf16.mxu0 0
    %462 = vmatpush1.bf16.msra.mxu0 0
    %463 = vmatprep.subr.bf16.mxu0 0
    %464 = vmatpush1.bf16.msra.mxu0 0
    %465 = vmatprep.subr.bf16.mxu0 0
    %466 = vmatpush1.bf16.msra.mxu0 0
    %467 = vmatprep.subr.bf16.mxu0 0
    %468 = vmatpush1.bf16.msra.mxu0 0
    %469 = vmatprep.subr.bf16.mxu0 0
    %470 = vmatpush1.bf16.msra.mxu0 0
    %471 = vmatprep.subr.bf16.mxu0 0
    %472 = vmatpush1.bf16.msra.mxu0 0
    %473 = vmatprep.subr.bf16.mxu0 0
    %474 = vmatpush1.bf16.msra.mxu0 0
    %475 = vmatprep.subr.bf16.mxu0 0
    %476 = vmatpush1.bf16.msra.mxu0 0
    %477 = vmatprep.subr.bf16.mxu0 0
    %478 = vmatpush1.bf16.msra.mxu0 0
    %479 = vmatprep.subr.bf16.mxu0 0
    %480 = vmatpush1.bf16.msra.mxu0 0
    %481 = vmatprep.subr.bf16.mxu0 0
    %482 = vmatpush1.bf16.msra.mxu0 0
    %483 = vmatprep.subr.bf16.mxu0 0
    %484 = vmatpush1.bf16.msra.mxu0 0
    %485 = vmatprep.subr.bf16.mxu0 0
    %486 = vmatpush1.bf16.msra.mxu0 0
    %487 = vmatprep.subr.bf16.mxu0 0
    %488 = vmatpush1.bf16.msra.mxu0 0
    %489 = vmatprep.mubr.bf16.mxu0 0
    %490 = vmatmul.mubr.bf16.gmra.mrb[0].mxu0 %v455
    %v491 = vpop.f32.mrb[0].mxu0
    %v492 = vadd.f32 0.0, %v491
    %v493 = vpop.f32.mrb[0].mxu0
    %v494 = vpop.f32.mrb[0].mxu0
    %v495 = vpop.f32.mrb[0].mxu0
    %496 = vdwg.mxu0
    %v497 = vadd.f32 %v451, %v492
    %v498 = vxor.u32 %v497, 2147483648
    %v499 = vmul.f32 %v498, 1.442695
    %v500 = vpow.pop %v499
    %v501 = vadd.f32 %v500, 1.0
    %v502 = vrcp.pop %v501
    %v503 = vmul.f32 1.0, %v502
    %v504 = vtanh.pop %v497
    %v505 = vmul.f32 %v503, %v429
    %507 = vrot.lane.b32.xlu0 %v504, 96
    %v508 = vpop.permute.xlu0 %507
    %v510 = vmul.f32 %v503, %v508
    %512 = vrot.lane.b32.xlu0 %v510, 16
    %v513 = vpop.permute.xlu0 %512
    %v515 = vadd.f32 %v505, %v513
    %v516 = vtanh.pop %v515
    %518 = vrot.lane.b32.xlu0 %v516, 32
    %v519 = vpop.permute.xlu0 %518
    %v521 = vmul.f32 %v503, %v519
    %523 = vrot.lane.b32.xlu0 %v521, 80
    %v524 = vpop.permute.xlu0 %523
    %s526 = scalar_lea.vmem [#allocation3], 6
    %527 = vst.msk [vmem:[%s526] sm:$0x3] %vm266, %v524
    %528 = vrot.lane.b32.xlu0 %v521, 32
    %v529 = vpop.permute.xlu0 %528
    %s531 = scalar_lea.vmem [#allocation3], 8
    %532 = vst.msk [vmem:[%s531] sm:$0x3] %vm272, %v529
    %v533 = vld [vmem:[%s449] sm:$0x3]
    %v534 = vld [vmem:[%s447] sm:$0x3]
    %v535 = vsel %vm176, %v533, %v534
    %v536 = vsel %vm279, %v524, %v529
    %v537 = vpack.c.bf16 %v536, %v536
    %v539 = vsel %vm123, %v537, 0
    %541 = vmatprep.subr.bf16.mxu0 0
    %542 = vmatpush1.bf16.msra.mxu0 %v190
    %543 = vmatprep.subr.bf16.mxu0 0
    %544 = vmatpush1.bf16.msra.mxu0 %v191
    %545 = vmatprep.subr.bf16.mxu0 0
    %546 = vmatpush1.bf16.msra.mxu0 0
    %547 = vmatprep.subr.bf16.mxu0 0
    %548 = vmatpush1.bf16.msra.mxu0 0
    %549 = vmatprep.subr.bf16.mxu0 0
    %550 = vmatpush1.bf16.msra.mxu0 0
    %551 = vmatprep.subr.bf16.mxu0 0
    %552 = vmatpush1.bf16.msra.mxu0 0
    %553 = vmatprep.subr.bf16.mxu0 0
    %554 = vmatpush1.bf16.msra.mxu0 0
    %555 = vmatprep.subr.bf16.mxu0 0
    %556 = vmatpush1.bf16.msra.mxu0 0
    %557 = vmatprep.subr.bf16.mxu0 0
    %558 = vmatpush1.bf16.msra.mxu0 0
    %559 = vmatprep.subr.bf16.mxu0 0
    %560 = vmatpush1.bf16.msra.mxu0 0
    %561 = vmatprep.subr.bf16.mxu0 0
    %562 = vmatpush1.bf16.msra.mxu0 0
    %563 = vmatprep.subr.bf16.mxu0 0
    %564 = vmatpush1.bf16.msra.mxu0 0
    %565 = vmatprep.subr.bf16.mxu0 0
    %566 = vmatpush1.bf16.msra.mxu0 0
    %567 = vmatprep.subr.bf16.mxu0 0
    %568 = vmatpush1.bf16.msra.mxu0 0
    %569 = vmatprep.subr.bf16.mxu0 0
    %570 = vmatpush1.bf16.msra.mxu0 0
    %571 = vmatprep.subr.bf16.mxu0 0
    %572 = vmatpush1.bf16.msra.mxu0 0
    %573 = vmatprep.mubr.bf16.mxu0 0
    %574 = vmatmul.mubr.bf16.gmra.mrb[0].mxu0 %v539
    %v575 = vpop.f32.mrb[0].mxu0
    %v576 = vadd.f32 0.0, %v575
    %v577 = vpop.f32.mrb[0].mxu0
    %v578 = vpop.f32.mrb[0].mxu0
    %v579 = vpop.f32.mrb[0].mxu0
    %580 = vdwg.mxu0
    %v581 = vadd.f32 %v535, %v576
    %v582 = vxor.u32 %v581, 2147483648
    %v583 = vmul.f32 %v582, 1.442695
    %v584 = vpow.pop %v583
    %v585 = vadd.f32 %v584, 1.0
    %v586 = vrcp.pop %v585
    %v587 = vmul.f32 1.0, %v586
    %v588 = vtanh.pop %v581
    %v589 = vmul.f32 %v587, %v515
    %591 = vrot.lane.b32.xlu0 %v588, 96
    %v592 = vpop.permute.xlu0 %591
    %v594 = vmul.f32 %v587, %v592
    %596 = vrot.lane.b32.xlu0 %v594, 16
    %v597 = vpop.permute.xlu0 %596
    %v599 = vadd.f32 %v589, %v597
    %v600 = vtanh.pop %v599
    %602 = vrot.lane.b32.xlu0 %v600, 32
    %v603 = vpop.permute.xlu0 %602
    %v605 = vmul.f32 %v587, %v603
    %607 = vrot.lane.b32.xlu0 %v605, 80
    %v608 = vpop.permute.xlu0 %607
    %610 = vst.msk [vmem:[%s531] sm:$0x3] %vm266, %v608
    %611 = vrot.lane.b32.xlu0 %v605, 32
    %v612 = vpop.permute.xlu0 %611
    %614 = vst.msk [vmem:[%s526] sm:$0x3] %vm272, %v612
    %v615 = vld [vmem:[%s363] sm:$0x3]
    %v616 = vld [vmem:[%s361] sm:$0x3]
    %v617 = vsel %vm176, %v615, %v616
    %v618 = vsel %vm279, %v608, %v612
    %v619 = vpack.c.bf16 %v618, %v618
    %v621 = vsel %vm123, %v619, 0
    %623 = vmatprep.subr.bf16.mxu0 0
    %624 = vmatpush1.bf16.msra.mxu0 %v190
    %625 = vmatprep.subr.bf16.mxu0 0
    %626 = vmatpush1.bf16.msra.mxu0 %v191
    %627 = vmatprep.subr.bf16.mxu0 0
    %628 = vmatpush1.bf16.msra.mxu0 0
    %629 = vmatprep.subr.bf16.mxu0 0
    %630 = vmatpush1.bf16.msra.mxu0 0
    %631 = vmatprep.subr.bf16.mxu0 0
    %632 = vmatpush1.bf16.msra.mxu0 0
    %633 = vmatprep.subr.bf16.mxu0 0
    %634 = vmatpush1.bf16.msra.mxu0 0
    %635 = vmatprep.subr.bf16.mxu0 0
    %636 = vmatpush1.bf16.msra.mxu0 0
    %637 = vmatprep.subr.bf16.mxu0 0
    %638 = vmatpush1.bf16.msra.mxu0 0
    %639 = vmatprep.subr.bf16.mxu0 0
    %640 = vmatpush1.bf16.msra.mxu0 0
    %641 = vmatprep.subr.bf16.mxu0 0
    %642 = vmatpush1.bf16.msra.mxu0 0
    %643 = vmatprep.subr.bf16.mxu0 0
    %644 = vmatpush1.bf16.msra.mxu0 0
    %645 = vmatprep.subr.bf16.mxu0 0
    %646 = vmatpush1.bf16.msra.mxu0 0
    %647 = vmatprep.subr.bf16.mxu0 0
    %648 = vmatpush1.bf16.msra.mxu0 0
    %649 = vmatprep.subr.bf16.mxu0 0
    %650 = vmatpush1.bf16.msra.mxu0 0
    %651 = vmatprep.subr.bf16.mxu0 0
    %652 = vmatpush1.bf16.msra.mxu0 0
    %653 = vmatprep.subr.bf16.mxu0 0
    %654 = vmatpush1.bf16.msra.mxu0 0
    %655 = vmatprep.mubr.bf16.mxu0 0
    %656 = vmatmul.mubr.bf16.gmra.mrb[0].mxu0 %v621
    %v657 = vpop.f32.mrb[0].mxu0
    %v658 = vadd.f32 0.0, %v657
    %v659 = vpop.f32.mrb[0].mxu0
    %v660 = vpop.f32.mrb[0].mxu0
    %v661 = vpop.f32.mrb[0].mxu0
    %662 = vdwg.mxu0
    %v663 = vadd.f32 %v617, %v658
    %v664 = vxor.u32 %v663, 2147483648
    %v665 = vmul.f32 %v664, 1.442695
    %v666 = vpow.pop %v665
    %v667 = vadd.f32 %v666, 1.0
    %v668 = vrcp.pop %v667
    %v669 = vmul.f32 1.0, %v668
    %v670 = vtanh.pop %v663
    %v671 = vmul.f32 %v669, %v599
    %673 = vrot.lane.b32.xlu0 %v670, 96
    %v674 = vpop.permute.xlu0 %673
    %v676 = vmul.f32 %v669, %v674
    %678 = vrot.lane.b32.xlu0 %v676, 16
    %v679 = vpop.permute.xlu0 %678
    %v681 = vadd.f32 %v671, %v679
    %v682 = vtanh.pop %v681
    %684 = vrot.lane.b32.xlu0 %v682, 32
    %v685 = vpop.permute.xlu0 %684
    %v687 = vmul.f32 %v669, %v685
    %689 = vrot.lane.b32.xlu0 %v687, 80
    %v690 = vpop.permute.xlu0 %689
    %692 = vst.msk [vmem:[%s445] sm:$0x3] %vm266, %v690
    %693 = vrot.lane.b32.xlu0 %v687, 32
    %v694 = vpop.permute.xlu0 %693
    %696 = vst.msk [vmem:[%s440] sm:$0x3] %vm272, %v694
    %v697 = vld [vmem:[%s276] sm:$0x3]
    %v698 = vld [vmem:[%s274] sm:$0x3]
    %v699 = vsel %vm176, %v697, %v698
    %v700 = vsel %vm279, %v690, %v694
    %v701 = vpack.c.bf16 %v700, %v700
    %v703 = vsel %vm123, %v701, 0
    %705 = vmatprep.subr.bf16.mxu0 0
    %706 = vmatpush1.bf16.msra.mxu0 %v190
    %707 = vmatprep.subr.bf16.mxu0 0
    %708 = vmatpush1.bf16.msra.mxu0 %v191
    %709 = vmatprep.subr.bf16.mxu0 0
    %710 = vmatpush1.bf16.msra.mxu0 0
    %711 = vmatprep.subr.bf16.mxu0 0
    %712 = vmatpush1.bf16.msra.mxu0 0
    %713 = vmatprep.subr.bf16.mxu0 0
    %714 = vmatpush1.bf16.msra.mxu0 0
    %715 = vmatprep.subr.bf16.mxu0 0
    %716 = vmatpush1.bf16.msra.mxu0 0
    %717 = vmatprep.subr.bf16.mxu0 0
    %718 = vmatpush1.bf16.msra.mxu0 0
    %719 = vmatprep.subr.bf16.mxu0 0
    %720 = vmatpush1.bf16.msra.mxu0 0
    %721 = vmatprep.subr.bf16.mxu0 0
    %722 = vmatpush1.bf16.msra.mxu0 0
    %723 = vmatprep.subr.bf16.mxu0 0
    %724 = vmatpush1.bf16.msra.mxu0 0
    %725 = vmatprep.subr.bf16.mxu0 0
    %726 = vmatpush1.bf16.msra.mxu0 0
    %727 = vmatprep.subr.bf16.mxu0 0
    %728 = vmatpush1.bf16.msra.mxu0 0
    %729 = vmatprep.subr.bf16.mxu0 0
    %730 = vmatpush1.bf16.msra.mxu0 0
    %731 = vmatprep.subr.bf16.mxu0 0
    %732 = vmatpush1.bf16.msra.mxu0 0
    %733 = vmatprep.subr.bf16.mxu0 0
    %734 = vmatpush1.bf16.msra.mxu0 0
    %735 = vmatprep.subr.bf16.mxu0 0
    %736 = vmatpush1.bf16.msra.mxu0 0
    %737 = vmatprep.mubr.bf16.mxu0 0
    %738 = vmatmul.mubr.bf16.gmra.mrb[0].mxu0 %v703
    %v739 = vpop.f32.mrb[0].mxu0
    %v740 = vadd.f32 0.0, %v739
    %v741 = vpop.f32.mrb[0].mxu0
    %v742 = vpop.f32.mrb[0].mxu0
    %v743 = vpop.f32.mrb[0].mxu0
    %744 = vdwg.mxu0
    %v745 = vadd.f32 %v699, %v740
    %v746 = vxor.u32 %v745, 2147483648
    %v747 = vmul.f32 %v746, 1.442695
    %v748 = vpow.pop %v747
    %v749 = vadd.f32 %v748, 1.0
    %v750 = vrcp.pop %v749
    %v751 = vmul.f32 1.0, %v750
    %v752 = vtanh.pop %v745
    %v753 = vmul.f32 %v751, %v681
    %755 = vrot.lane.b32.xlu0 %v752, 96
    %v756 = vpop.permute.xlu0 %755
    %v758 = vmul.f32 %v751, %v756
    %760 = vrot.lane.b32.xlu0 %v758, 16
    %v761 = vpop.permute.xlu0 %760
    %v763 = vadd.f32 %v753, %v761
    %v764 = vtanh.pop %v763
    %766 = vrot.lane.b32.xlu0 %v764, 32
    %v767 = vpop.permute.xlu0 %766
    %v769 = vmul.f32 %v751, %v767
    %771 = vrot.lane.b32.xlu0 %v769, 80
    %v772 = vpop.permute.xlu0 %771
    %774 = vst.msk [vmem:[%s359] sm:$0x3] %vm266, %v772
    %775 = vrot.lane.b32.xlu0 %v769, 32
    %v776 = vpop.permute.xlu0 %775
    %778 = vst.msk [vmem:[%s354] sm:$0x3] %vm272, %v776
    %v779 = vld [vmem:[%s178] sm:$0x3]
    %v780 = vld [vmem:[#allocation2] sm:$0x3]
    %v781 = vsel %vm176, %v779, %v780
    %v782 = vsel %vm279, %v772, %v776
    %v783 = vpack.c.bf16 %v782, %v782
    %v785 = vsel %vm123, %v783, 0
    %787 = vmatprep.subr.bf16.mxu0 0
    %788 = vmatpush1.bf16.msra.mxu0 %v190
    %789 = vmatprep.subr.bf16.mxu0 0
    %790 = vmatpush1.bf16.msra.mxu0 %v191
    %791 = vmatprep.subr.bf16.mxu0 0
    %792 = vmatpush1.bf16.msra.mxu0 0
    %793 = vmatprep.subr.bf16.mxu0 0
    %794 = vmatpush1.bf16.msra.mxu0 0
    %795 = vmatprep.subr.bf16.mxu0 0
    %796 = vmatpush1.bf16.msra.mxu0 0
    %797 = vmatprep.subr.bf16.mxu0 0
    %798 = vmatpush1.bf16.msra.mxu0 0
    %799 = vmatprep.subr.bf16.mxu0 0
    %800 = vmatpush1.bf16.msra.mxu0 0
    %801 = vmatprep.subr.bf16.mxu0 0
    %802 = vmatpush1.bf16.msra.mxu0 0
    %803 = vmatprep.subr.bf16.mxu0 0
    %804 = vmatpush1.bf16.msra.mxu0 0
    %805 = vmatprep.subr.bf16.mxu0 0
    %806 = vmatpush1.bf16.msra.mxu0 0
    %807 = vmatprep.subr.bf16.mxu0 0
    %808 = vmatpush1.bf16.msra.mxu0 0
    %809 = vmatprep.subr.bf16.mxu0 0
    %810 = vmatpush1.bf16.msra.mxu0 0
    %811 = vmatprep.subr.bf16.mxu0 0
    %812 = vmatpush1.bf16.msra.mxu0 0
    %813 = vmatprep.subr.bf16.mxu0 0
    %814 = vmatpush1.bf16.msra.mxu0 0
    %815 = vmatprep.subr.bf16.mxu0 0
    %816 = vmatpush1.bf16.msra.mxu0 0
    %817 = vmatprep.subr.bf16.mxu0 0
    %818 = vmatpush1.bf16.msra.mxu0 0
    %819 = vmatprep.mubr.bf16.mxu0 0
    %820 = vmatmul.mubr.bf16.gmra.mrb[0].mxu0 %v785
    %v821 = vpop.f32.mrb[0].mxu0
    %v822 = vadd.f32 0.0, %v821
    %v823 = vpop.f32.mrb[0].mxu0
    %v824 = vpop.f32.mrb[0].mxu0
    %v825 = vpop.f32.mrb[0].mxu0
    %826 = vdwg.mxu0
    %v827 = vadd.f32 %v781, %v822
    %v828 = vxor.u32 %v827, 2147483648
    %v829 = vmul.f32 %v828, 1.442695
    %v830 = vpow.pop %v829
    %v831 = vadd.f32 %v830, 1.0
    %v832 = vrcp.pop %v831
    %v833 = vmul.f32 1.0, %v832
    %v834 = vtanh.pop %v827
    %v835 = vmul.f32 %v833, %v763
    %837 = vrot.lane.b32.xlu0 %v834, 96
    %v838 = vpop.permute.xlu0 %837
    %v840 = vmul.f32 %v833, %v838
    %842 = vrot.lane.b32.xlu0 %v840, 16
    %v843 = vpop.permute.xlu0 %842
    %v845 = vadd.f32 %v835, %v843
    %v846 = vtanh.pop %v845
    %848 = vrot.lane.b32.xlu0 %v846, 32
    %v849 = vpop.permute.xlu0 %848
    %v851 = vmul.f32 %v833, %v849
    %853 = vrot.lane.b32.xlu0 %v851, 80
    %v854 = vpop.permute.xlu0 %853
    %856 = vst.msk [vmem:[%s271] sm:$0x3] %vm266, %v854
    %857 = vrot.lane.b32.xlu0 %v851, 32
    %v858 = vpop.permute.xlu0 %857
    %860 = vst.msk [vmem:[#allocation3] sm:$0x3] %vm272, %v858
    %v861 = vld [vmem:[#allocation3] sm:$0xff]
    %v862 = vld [vmem:[#allocation3 + $0x8] sm:$0xff]
    %v863 = vpack.c.bf16 %v862, %v861
    %v864 = vld [vmem:[%s4] sm:$0xf]
    %v865 = vld [vmem:[%s4 + $0x4] sm:$0xf]
    %v866 = vld [vmem:[%s4 + $0x8] sm:$0xf]
    %v867 = vld [vmem:[%s4 + $0xc] sm:$0xf]
    %v868 = vld [vmem:[%s5] sm:$0x1]
    %v870 = vlaneseq
    %v871 = vshrl.u32 %v870, 7
    %v872 = vsub.s32 0, %v871
    %v873 = vrot.slane %v868, %v872
    %v879 = vunpack.c.l.b16 %v864
    %v880 = vunpack.c.l.b16 %v865
    %v881 = vunpack.c.l.b16 %v866
    %v882 = vunpack.c.l.b16 %v867
    %v883 = vpack.c.b16 %v880, %v879
    %v884 = vpack.c.b16 %v882, %v881
    %v888 = vsel %vm123, %v863, 0
    %890 = vmatprep.subr.bf16.mxu0 0
    %891 = vmatpush1.bf16.msra.mxu0 %v883
    %892 = vmatprep.subr.bf16.mxu0 0
    %893 = vmatpush1.bf16.msra.mxu0 %v884
    %894 = vmatprep.subr.bf16.mxu0 0
    %895 = vmatpush1.bf16.msra.mxu0 0
    %896 = vmatprep.subr.bf16.mxu0 0
    %897 = vmatpush1.bf16.msra.mxu0 0
    %898 = vmatprep.subr.bf16.mxu0 0
    %899 = vmatpush1.bf16.msra.mxu0 0
    %900 = vmatprep.subr.bf16.mxu0 0
    %901 = vmatpush1.bf16.msra.mxu0 0
    %902 = vmatprep.subr.bf16.mxu0 0
    %903 = vmatpush1.bf16.msra.mxu0 0
    %904 = vmatprep.subr.bf16.mxu0 0
    %905 = vmatpush1.bf16.msra.mxu0 0
    %906 = vmatprep.subr.bf16.mxu0 0
    %907 = vmatpush1.bf16.msra.mxu0 0
    %908 = vmatprep.subr.bf16.mxu0 0
    %909 = vmatpush1.bf16.msra.mxu0 0
    %910 = vmatprep.subr.bf16.mxu0 0
    %911 = vmatpush1.bf16.msra.mxu0 0
    %912 = vmatprep.subr.bf16.mxu0 0
    %913 = vmatpush1.bf16.msra.mxu0 0
    %914 = vmatprep.subr.bf16.mxu0 0
    %915 = vmatpush1.bf16.msra.mxu0 0
    %916 = vmatprep.subr.bf16.mxu0 0
    %917 = vmatpush1.bf16.msra.mxu0 0
    %918 = vmatprep.subr.bf16.mxu0 0
    %919 = vmatpush1.bf16.msra.mxu0 0
    %920 = vmatprep.subr.bf16.mxu0 0
    %921 = vmatpush1.bf16.msra.mxu0 0
    %922 = vmatprep.mubr.bf16.mxu0 0
    %923 = vmatmul.mubr.bf16.gmra.mrb[0].mxu0 %v888
    %v924 = vpop.f32.mrb[0].mxu0
    %v925 = vadd.f32 %v873, %v924
    %v926 = vpop.f32.mrb[0].mxu0
    %v927 = vpop.f32.mrb[0].mxu0
    %v928 = vadd.f32 %v873, %v927
    %v929 = vpop.f32.mrb[0].mxu0
    %930 = vdwg.mxu0
    %v931 = vld [vmem:[%s6] sm:$0xff]
    %v932 = vld [vmem:[%s6 + $0x8] sm:$0xff]
    %934 = vset.pattern.permute.xlu0 0
    %935 = vperm.xlu0 %934, %v931
    %v936 = vpop.permute.xlu0 %935
    %939 = vset.pattern.permute.xlu0 0
    %940 = vperm.xlu0 %939, %v932
    %v941 = vpop.permute.xlu0 %940
    %v943 = vmul.f32 %v925, %v936
    %v944 = vmul.f32 %v928, %v941
    %945 = vst [vmem:[#allocation4] sm:$0xff] %v943
    %946 = vst [vmem:[#allocation4 + $0x8] sm:$0xff] %v944
    %v947 = vld [vmem:[%s6] sm:$0xff]
    %v948 = vld [vmem:[%s6 + $0x8] sm:$0xff]
    %950 = vset.pattern.permute.xlu0 0
    %951 = vperm.xlu0 %950, %v947
    %v952 = vpop.permute.xlu0 %951
    %955 = vset.pattern.permute.xlu0 0
    %956 = vperm.xlu0 %955, %v948
    %v957 = vpop.permute.xlu0 %956
    %959 = vst [vmem:[#allocation5] sm:$0xff] %v952
    %960 = vst [vmem:[#allocation5 + $0x8] sm:$0xff] %v957
    %v961 = vld [vmem:[#allocation12] sm:$0xff]
    %v962 = vld [vmem:[#allocation12 + $0x8] sm:$0xff]
    %v963 = vld [vmem:[#allocation12 + $0x10] sm:$0xff]
    %v964 = vld [vmem:[#allocation12 + $0x18] sm:$0xff]
    %v965 = vld [vmem:[#allocation12 + $0x20] sm:$0xff]
    %v966 = vld [vmem:[#allocation12 + $0x28] sm:$0xff]
    %v967 = vld [vmem:[#allocation12 + $0x30] sm:$0xff]
    %v968 = vld [vmem:[#allocation12 + $0x38] sm:$0xff]
    %v969 = vld [vmem:[#allocation12 + $0x40] sm:$0xff]
    %v970 = vld [vmem:[#allocation12 + $0x48] sm:$0xff]
    %v971 = vld [vmem:[#allocation12 + $0x50] sm:$0xff]
    %v972 = vld [vmem:[#allocation12 + $0x58] sm:$0xff]
    %v973 = vld [vmem:[#allocation12 + $0x60] sm:$0xff]
    %v974 = vld [vmem:[#allocation12 + $0x68] sm:$0xff]
    %v975 = vld [vmem:[#allocation12 + $0x70] sm:$0xff]
    %v976 = vld [vmem:[#allocation12 + $0x78] sm:$0xff]
    %v977 = vlaneseq
    %v978 = vshrl.u32 %v977, 7
    %v979 = vadd.s32 %v978, 8
    %v980 = vadd.s32 %v978, 16
    %v981 = vadd.s32 %v978, 24
    %v982 = vadd.s32 %v978, 32
    %v983 = vadd.s32 %v978, 40
    %v984 = vadd.s32 %v978, 48
    %v985 = vadd.s32 %v978, 56
    %v986 = vadd.s32 %v978, 64
    %v987 = vadd.s32 %v978, 72
    %v988 = vadd.s32 %v978, 80
    %v989 = vadd.s32 %v978, 88
    %v990 = vadd.s32 %v978, 96
    %v991 = vadd.s32 %v978, 104
    %v992 = vadd.s32 %v978, 112
    %v993 = vadd.s32 %v978, 120
    %994 = vst [vmem:[#allocation14] sm:$0x3] 0
    %v995 = vld [vmem:[%s8] sm:$0x1]
    %v996 = vld [vmem:[#allocation4] sm:$0x3]
    %v998 = vlaneseq
    %v999 = vshrl.u32 %v998, 7
    %v1000 = vsub.s32 0, %v999
    %v1001 = vrot.slane %v995, %v1000
    %v1003 = vadd.f32 %v1001, %v996
    %s1004 = scalar_lea.vmem [#allocation4], 2
    %v1005 = vld [vmem:[%s1004] sm:$0x3]
    %v1006 = vlaneseq
    %v1007 = vshrl.u32 %v1006, 7
    %v1008 = vsub.s32 0, %v1007
    %v1009 = vrot.slane %v1003, %v1008
    %1011 = vbcast.lane.b32.xlu0 %v1009, 256
    %v1012 = vpop.permute.xlu0 %1011
    %s1014 = sor.u32 256, 8
    %1015 = vbcast.lane.b32.xlu0 %v1009, %s1014
    %v1016 = vpop.permute.xlu0 %1015
    %s1018 = sor.u32 256, 16
    %1019 = vbcast.lane.b32.xlu0 %v1009, %s1018
    %v1020 = vpop.permute.xlu0 %1019
    %s1022 = sor.u32 256, 24
    %1023 = vbcast.lane.b32.xlu0 %v1009, %s1022
    %v1024 = vpop.permute.xlu0 %1023
    %s1026 = sor.u32 256, 32
    %1027 = vbcast.lane.b32.xlu0 %v1009, %s1026
    %v1028 = vpop.permute.xlu0 %1027
    %s1030 = sor.u32 256, 40
    %1031 = vbcast.lane.b32.xlu0 %v1009, %s1030
    %v1032 = vpop.permute.xlu0 %1031
    %s1034 = sor.u32 256, 48
    %1035 = vbcast.lane.b32.xlu0 %v1009, %s1034
    %v1036 = vpop.permute.xlu0 %1035
    %s1038 = sor.u32 256, 56
    %1039 = vbcast.lane.b32.xlu0 %v1009, %s1038
    %v1040 = vpop.permute.xlu0 %1039
    %s1042 = sor.u32 256, 64
    %1043 = vbcast.lane.b32.xlu0 %v1009, %s1042
    %v1044 = vpop.permute.xlu0 %1043
    %s1046 = sor.u32 256, 72
    %1047 = vbcast.lane.b32.xlu0 %v1009, %s1046
    %v1048 = vpop.permute.xlu0 %1047
    %s1050 = sor.u32 256, 80
    %1051 = vbcast.lane.b32.xlu0 %v1009, %s1050
    %v1052 = vpop.permute.xlu0 %1051
    %s1054 = sor.u32 256, 88
    %1055 = vbcast.lane.b32.xlu0 %v1009, %s1054
    %v1056 = vpop.permute.xlu0 %1055
    %s1058 = sor.u32 256, 96
    %1059 = vbcast.lane.b32.xlu0 %v1009, %s1058
    %v1060 = vpop.permute.xlu0 %1059
    %s1062 = sor.u32 256, 104
    %1063 = vbcast.lane.b32.xlu0 %v1009, %s1062
    %v1064 = vpop.permute.xlu0 %1063
    %s1066 = sor.u32 256, 112
    %1067 = vbcast.lane.b32.xlu0 %v1009, %s1066
    %v1068 = vpop.permute.xlu0 %1067
    %s1070 = sor.u32 256, 120
    %1071 = vbcast.lane.b32.xlu0 %v1009, %s1070
    %v1072 = vpop.permute.xlu0 %1071
    %v1073 = vlaneseq
    %v1074 = vshrl.u32 %v1073, 7
    %v1075 = vsub.s32 1, %v1074
    %v1076 = vrot.slane %v1003, %v1075
    %1078 = vbcast.lane.b32.xlu0 %v1076, 256
    %v1079 = vpop.permute.xlu0 %1078
    %s1081 = sor.u32 256, 8
    %1082 = vbcast.lane.b32.xlu0 %v1076, %s1081
    %v1083 = vpop.permute.xlu0 %1082
    %s1085 = sor.u32 256, 16
    %1086 = vbcast.lane.b32.xlu0 %v1076, %s1085
    %v1087 = vpop.permute.xlu0 %1086
    %s1089 = sor.u32 256, 24
    %1090 = vbcast.lane.b32.xlu0 %v1076, %s1089
    %v1091 = vpop.permute.xlu0 %1090
    %s1093 = sor.u32 256, 32
    %1094 = vbcast.lane.b32.xlu0 %v1076, %s1093
    %v1095 = vpop.permute.xlu0 %1094
    %s1097 = sor.u32 256, 40
    %1098 = vbcast.lane.b32.xlu0 %v1076, %s1097
    %v1099 = vpop.permute.xlu0 %1098
    %s1101 = sor.u32 256, 48
    %1102 = vbcast.lane.b32.xlu0 %v1076, %s1101
    %v1103 = vpop.permute.xlu0 %1102
    %s1105 = sor.u32 256, 56
    %1106 = vbcast.lane.b32.xlu0 %v1076, %s1105
    %v1107 = vpop.permute.xlu0 %1106
    %s1109 = sor.u32 256, 64
    %1110 = vbcast.lane.b32.xlu0 %v1076, %s1109
    %v1111 = vpop.permute.xlu0 %1110
    %s1113 = sor.u32 256, 72
    %1114 = vbcast.lane.b32.xlu0 %v1076, %s1113
    %v1115 = vpop.permute.xlu0 %1114
    %s1117 = sor.u32 256, 80
    %1118 = vbcast.lane.b32.xlu0 %v1076, %s1117
    %v1119 = vpop.permute.xlu0 %1118
    %s1121 = sor.u32 256, 88
    %1122 = vbcast.lane.b32.xlu0 %v1076, %s1121
    %v1123 = vpop.permute.xlu0 %1122
    %s1125 = sor.u32 256, 96
    %1126 = vbcast.lane.b32.xlu0 %v1076, %s1125
    %v1127 = vpop.permute.xlu0 %1126
    %s1129 = sor.u32 256, 104
    %1130 = vbcast.lane.b32.xlu0 %v1076, %s1129
    %v1131 = vpop.permute.xlu0 %1130
    %s1133 = sor.u32 256, 112
    %1134 = vbcast.lane.b32.xlu0 %v1076, %s1133
    %v1135 = vpop.permute.xlu0 %1134
    %s1137 = sor.u32 256, 120
    %1138 = vbcast.lane.b32.xlu0 %v1076, %s1137
    %v1139 = vpop.permute.xlu0 %1138
    %v1140 = vadd.f32 %v1012, %v961
    %v1141 = vadd.f32 %v1016, %v962
    %v1142 = vadd.f32 %v1020, %v963
    %v1143 = vadd.f32 %v1024, %v964
    %v1144 = vadd.f32 %v1028, %v965
    %v1145 = vadd.f32 %v1032, %v966
    %v1146 = vadd.f32 %v1036, %v967
    %v1147 = vadd.f32 %v1040, %v968
    %v1148 = vadd.f32 %v1044, %v969
    %v1149 = vadd.f32 %v1048, %v970
    %v1150 = vadd.f32 %v1052, %v971
    %v1151 = vadd.f32 %v1056, %v972
    %v1152 = vadd.f32 %v1060, %v973
    %v1153 = vadd.f32 %v1064, %v974
    %v1154 = vadd.f32 %v1068, %v975
    %v1155 = vadd.f32 %v1072, %v976
    %v1156 = vadd.f32 %v1079, %v961
    %v1157 = vadd.f32 %v1083, %v962
    %v1158 = vadd.f32 %v1087, %v963
    %v1159 = vadd.f32 %v1091, %v964
    %v1160 = vadd.f32 %v1095, %v965
    %v1161 = vadd.f32 %v1099, %v966
    %v1162 = vadd.f32 %v1103, %v967
    %v1163 = vadd.f32 %v1107, %v968
    %v1164 = vadd.f32 %v1111, %v969
    %v1165 = vadd.f32 %v1115, %v970
    %v1166 = vadd.f32 %v1119, %v971
    %v1167 = vadd.f32 %v1123, %v972
    %v1168 = vadd.f32 %v1127, %v973
    %v1169 = vadd.f32 %v1131, %v974
    %v1170 = vadd.f32 %v1135, %v975
    %v1171 = vadd.f32 %v1139, %v976
    %v1174 = vunpack.c.l.s4 1966171168
    %v1175 = vunpack.c.0.s8 %v1174
    %v1176 = vlaneseq
    %v1177 = vshrl.u32 %v1176, 7
    %v1178 = vsub.s32 %v1175, %v1177
    %v1179 = vrot.slane %v1005, %v1178
    %v1180 = vcombine.high %v1179, %v1179
    %v1182 = vunpack.c.l.s4 1966171168
    %v1183 = vunpack.c.0.s8 %v1182
    %v1184 = vlaneseq
    %v1185 = vshrl.u32 %v1184, 7
    %v1186 = vsub.s32 %v1183, %v1185
    %v1187 = vrot.slane %v1179, %v1186
    %v1189 = vunpack.c.l.s4 1966171168
    %v1190 = vunpack.c.0.s8 %v1189
    %v1191 = vlaneseq
    %v1192 = vshrl.u32 %v1191, 7
    %v1193 = vsub.s32 %v1190, %v1192
    %v1194 = vrot.slane %v1180, %v1193
    %v1195 = vlaneseq
    %v1196 = vshrl.u32 %v1195, 7
    %v1197 = vsub.s32 0, %v1196
    %v1198 = vrot.slane %v1187, %v1197
    %v1199 = vlaneseq
    %v1200 = vshrl.u32 %v1199, 7
    %v1201 = vsub.s32 0, %v1200
    %v1202 = vrot.slane %v1194, %v1201
    %v1205 = vadd.f32 %v1140, %v1198
    %v1206 = vadd.f32 %v1141, %v1198
    %v1207 = vadd.f32 %v1142, %v1198
    %v1208 = vadd.f32 %v1143, %v1198
    %v1209 = vadd.f32 %v1144, %v1198
    %v1210 = vadd.f32 %v1145, %v1198
    %v1211 = vadd.f32 %v1146, %v1198
    %v1212 = vadd.f32 %v1147, %v1198
    %v1213 = vadd.f32 %v1148, %v1198
    %v1214 = vadd.f32 %v1149, %v1198
    %v1215 = vadd.f32 %v1150, %v1198
    %v1216 = vadd.f32 %v1151, %v1198
    %v1217 = vadd.f32 %v1152, %v1198
    %v1218 = vadd.f32 %v1153, %v1198
    %v1219 = vadd.f32 %v1154, %v1198
    %v1220 = vadd.f32 %v1155, %v1198
    %v1221 = vadd.f32 %v1156, %v1202
    %v1222 = vadd.f32 %v1157, %v1202
    %v1223 = vadd.f32 %v1158, %v1202
    %v1224 = vadd.f32 %v1159, %v1202
    %v1225 = vadd.f32 %v1160, %v1202
    %v1226 = vadd.f32 %v1161, %v1202
    %v1227 = vadd.f32 %v1162, %v1202
    %v1228 = vadd.f32 %v1163, %v1202
    %v1229 = vadd.f32 %v1164, %v1202
    %v1230 = vadd.f32 %v1165, %v1202
    %v1231 = vadd.f32 %v1166, %v1202
    %v1232 = vadd.f32 %v1167, %v1202
    %v1233 = vadd.f32 %v1168, %v1202
    %v1234 = vadd.f32 %v1169, %v1202
    %v1235 = vadd.f32 %v1170, %v1202
    %v1236 = vadd.f32 %v1171, %v1202
    %v1237 = vmax.f32 %v1205, %v1207
    %v1238 = vmax.f32 %v1206, %v1208
    %v1239 = vmax.f32 %v1237, %v1209
    %v1240 = vmax.f32 %v1238, %v1210
    %v1241 = vmax.f32 %v1239, %v1211
    %v1242 = vmax.f32 %v1240, %v1212
    %v1243 = vmax.f32 %v1241, %v1213
    %v1244 = vmax.f32 %v1242, %v1214
    %v1245 = vmax.f32 %v1243, %v1215
    %v1246 = vmax.f32 %v1244, %v1216
    %v1247 = vmax.f32 %v1245, %v1217
    %v1248 = vmax.f32 %v1246, %v1218
    %v1249 = vmax.f32 %v1247, %v1219
    %v1250 = vmax.f32 %v1248, %v1220
    %v1251 = vmax.f32 %v1249, %v1250
    %v1252 = vrot.slane %v1251, 4
    %v1253 = vmax.f32 %v1251, %v1252
    %v1254 = vrot.slane %v1253, 2
    %v1255 = vmax.f32 %v1253, %v1254
    %v1256 = vrot.slane %v1255, 1
    %v1257 = vmax.f32 %v1255, %v1256
    %v1258 = vmax.f32 %v1221, %v1223
    %v1259 = vmax.f32 %v1222, %v1224
    %v1260 = vmax.f32 %v1258, %v1225
    %v1261 = vmax.f32 %v1259, %v1226
    %v1262 = vmax.f32 %v1260, %v1227
    %v1263 = vmax.f32 %v1261, %v1228
    %v1264 = vmax.f32 %v1262, %v1229
    %v1265 = vmax.f32 %v1263, %v1230
    %v1266 = vmax.f32 %v1264, %v1231
    %v1267 = vmax.f32 %v1265, %v1232
    %v1268 = vmax.f32 %v1266, %v1233
    %v1269 = vmax.f32 %v1267, %v1234
    %v1270 = vmax.f32 %v1268, %v1235
    %v1271 = vmax.f32 %v1269, %v1236
    %v1272 = vmax.f32 %v1270, %v1271
    %v1273 = vrot.slane %v1272, 4
    %v1274 = vmax.f32 %v1272, %v1273
    %v1275 = vrot.slane %v1274, 2
    %v1276 = vmax.f32 %v1274, %v1275
    %v1277 = vrot.slane %v1276, 1
    %v1278 = vmax.f32 %v1276, %v1277
    %vm1279 = vcmp.eq.f32.partialorder %v1205, %v1257
    %vm1280 = vcmp.eq.f32.partialorder %v1206, %v1257
    %vm1281 = vcmp.eq.f32.partialorder %v1207, %v1257
    %vm1282 = vcmp.eq.f32.partialorder %v1208, %v1257
    %vm1283 = vcmp.eq.f32.partialorder %v1209, %v1257
    %vm1284 = vcmp.eq.f32.partialorder %v1210, %v1257
    %vm1285 = vcmp.eq.f32.partialorder %v1211, %v1257
    %vm1286 = vcmp.eq.f32.partialorder %v1212, %v1257
    %vm1287 = vcmp.eq.f32.partialorder %v1213, %v1257
    %vm1288 = vcmp.eq.f32.partialorder %v1214, %v1257
    %vm1289 = vcmp.eq.f32.partialorder %v1215, %v1257
    %vm1290 = vcmp.eq.f32.partialorder %v1216, %v1257
    %vm1291 = vcmp.eq.f32.partialorder %v1217, %v1257
    %vm1292 = vcmp.eq.f32.partialorder %v1218, %v1257
    %vm1293 = vcmp.eq.f32.partialorder %v1219, %v1257
    %vm1294 = vcmp.eq.f32.partialorder %v1220, %v1257
    %vm1295 = vcmp.eq.f32.partialorder %v1221, %v1278
    %vm1296 = vcmp.eq.f32.partialorder %v1222, %v1278
    %vm1297 = vcmp.eq.f32.partialorder %v1223, %v1278
    %vm1298 = vcmp.eq.f32.partialorder %v1224, %v1278
    %vm1299 = vcmp.eq.f32.partialorder %v1225, %v1278
    %vm1300 = vcmp.eq.f32.partialorder %v1226, %v1278
    %vm1301 = vcmp.eq.f32.partialorder %v1227, %v1278
    %vm1302 = vcmp.eq.f32.partialorder %v1228, %v1278
    %vm1303 = vcmp.eq.f32.partialorder %v1229, %v1278
    %vm1304 = vcmp.eq.f32.partialorder %v1230, %v1278
    %vm1305 = vcmp.eq.f32.partialorder %v1231, %v1278
    %vm1306 = vcmp.eq.f32.partialorder %v1232, %v1278
    %vm1307 = vcmp.eq.f32.partialorder %v1233, %v1278
    %vm1308 = vcmp.eq.f32.partialorder %v1234, %v1278
    %vm1309 = vcmp.eq.f32.partialorder %v1235, %v1278
    %vm1310 = vcmp.eq.f32.partialorder %v1236, %v1278
    %v1311 = vsel %vm1279, %v978, 128
    %v1312 = vsel %vm1280, %v979, 128
    %v1313 = vsel %vm1281, %v980, 128
    %v1314 = vsel %vm1282, %v981, 128
    %v1315 = vsel %vm1283, %v982, 128
    %v1316 = vsel %vm1284, %v983, 128
    %v1317 = vsel %vm1285, %v984, 128
    %v1318 = vsel %vm1286, %v985, 128
    %v1319 = vsel %vm1287, %v986, 128
    %v1320 = vsel %vm1288, %v987, 128
    %v1321 = vsel %vm1289, %v988, 128
    %v1322 = vsel %vm1290, %v989, 128
    %v1323 = vsel %vm1291, %v990, 128
    %v1324 = vsel %vm1292, %v991, 128
    %v1325 = vsel %vm1293, %v992, 128
    %v1326 = vsel %vm1294, %v993, 128
    %v1327 = vsel %vm1295, %v978, 128
    %v1328 = vsel %vm1296, %v979, 128
    %v1329 = vsel %vm1297, %v980, 128
    %v1330 = vsel %vm1298, %v981, 128
    %v1331 = vsel %vm1299, %v982, 128
    %v1332 = vsel %vm1300, %v983, 128
    %v1333 = vsel %vm1301, %v984, 128
    %v1334 = vsel %vm1302, %v985, 128
    %v1335 = vsel %vm1303, %v986, 128
    %v1336 = vsel %vm1304, %v987, 128
    %v1337 = vsel %vm1305, %v988, 128
    %v1338 = vsel %vm1306, %v989, 128
    %v1339 = vsel %vm1307, %v990, 128
    %v1340 = vsel %vm1308, %v991, 128
    %v1341 = vsel %vm1309, %v992, 128
    %v1342 = vsel %vm1310, %v993, 128
    %vm1343 = vcmp.lt.s32.totalorder %v1311, %v1313
    %v1344 = vsel %vm1343, %v1311, %v1313
    %vm1345 = vcmp.lt.s32.totalorder %v1312, %v1314
    %v1346 = vsel %vm1345, %v1312, %v1314
    %vm1347 = vcmp.lt.s32.totalorder %v1344, %v1315
    %v1348 = vsel %vm1347, %v1344, %v1315
    %vm1349 = vcmp.lt.s32.totalorder %v1346, %v1316
    %v1350 = vsel %vm1349, %v1346, %v1316
    %vm1351 = vcmp.lt.s32.totalorder %v1348, %v1317
    %v1352 = vsel %vm1351, %v1348, %v1317
    %vm1353 = vcmp.lt.s32.totalorder %v1350, %v1318
    %v1354 = vsel %vm1353, %v1350, %v1318
    %vm1355 = vcmp.lt.s32.totalorder %v1352, %v1319
    %v1356 = vsel %vm1355, %v1352, %v1319
    %vm1357 = vcmp.lt.s32.totalorder %v1354, %v1320
    %v1358 = vsel %vm1357, %v1354, %v1320
    %vm1359 = vcmp.lt.s32.totalorder %v1356, %v1321
    %v1360 = vsel %vm1359, %v1356, %v1321
    %vm1361 = vcmp.lt.s32.totalorder %v1358, %v1322
    %v1362 = vsel %vm1361, %v1358, %v1322
    %vm1363 = vcmp.lt.s32.totalorder %v1360, %v1323
    %v1364 = vsel %vm1363, %v1360, %v1323
    %vm1365 = vcmp.lt.s32.totalorder %v1362, %v1324
    %v1366 = vsel %vm1365, %v1362, %v1324
    %vm1367 = vcmp.lt.s32.totalorder %v1364, %v1325
    %v1368 = vsel %vm1367, %v1364, %v1325
    %vm1369 = vcmp.lt.s32.totalorder %v1366, %v1326
    %v1370 = vsel %vm1369, %v1366, %v1326
    %vm1371 = vcmp.lt.s32.totalorder %v1368, %v1370
    %v1372 = vsel %vm1371, %v1368, %v1370
    %v1373 = vrot.slane %v1372, 4
    %vm1374 = vcmp.lt.s32.totalorder %v1372, %v1373
    %v1375 = vsel %vm1374, %v1372, %v1373
    %v1376 = vrot.slane %v1375, 2
    %vm1377 = vcmp.lt.s32.totalorder %v1375, %v1376
    %v1378 = vsel %vm1377, %v1375, %v1376
    %v1379 = vrot.slane %v1378, 1
    %vm1380 = vcmp.lt.s32.totalorder %v1378, %v1379
    %v1381 = vsel %vm1380, %v1378, %v1379
    %vm1382 = vcmp.lt.s32.totalorder %v1327, %v1329
    %v1383 = vsel %vm1382, %v1327, %v1329
    %vm1384 = vcmp.lt.s32.totalorder %v1328, %v1330
    %v1385 = vsel %vm1384, %v1328, %v1330
    %vm1386 = vcmp.lt.s32.totalorder %v1383, %v1331
    %v1387 = vsel %vm1386, %v1383, %v1331
    %vm1388 = vcmp.lt.s32.totalorder %v1385, %v1332
    %v1389 = vsel %vm1388, %v1385, %v1332
    %vm1390 = vcmp.lt.s32.totalorder %v1387, %v1333
    %v1391 = vsel %vm1390, %v1387, %v1333
    %vm1392 = vcmp.lt.s32.totalorder %v1389, %v1334
    %v1393 = vsel %vm1392, %v1389, %v1334
    %vm1394 = vcmp.lt.s32.totalorder %v1391, %v1335
    %v1395 = vsel %vm1394, %v1391, %v1335
    %vm1396 = vcmp.lt.s32.totalorder %v1393, %v1336
    %v1397 = vsel %vm1396, %v1393, %v1336
    %vm1398 = vcmp.lt.s32.totalorder %v1395, %v1337
    %v1399 = vsel %vm1398, %v1395, %v1337
    %vm1400 = vcmp.lt.s32.totalorder %v1397, %v1338
    %v1401 = vsel %vm1400, %v1397, %v1338
    %vm1402 = vcmp.lt.s32.totalorder %v1399, %v1339
    %v1403 = vsel %vm1402, %v1399, %v1339
    %vm1404 = vcmp.lt.s32.totalorder %v1401, %v1340
    %v1405 = vsel %vm1404, %v1401, %v1340
    %vm1406 = vcmp.lt.s32.totalorder %v1403, %v1341
    %v1407 = vsel %vm1406, %v1403, %v1341
    %vm1408 = vcmp.lt.s32.totalorder %v1405, %v1342
    %v1409 = vsel %vm1408, %v1405, %v1342
    %vm1410 = vcmp.lt.s32.totalorder %v1407, %v1409
    %v1411 = vsel %vm1410, %v1407, %v1409
    %v1412 = vrot.slane %v1411, 4
    %vm1413 = vcmp.lt.s32.totalorder %v1411, %v1412
    %v1414 = vsel %vm1413, %v1411, %v1412
    %v1415 = vrot.slane %v1414, 2
    %vm1416 = vcmp.lt.s32.totalorder %v1414, %v1415
    %v1417 = vsel %vm1416, %v1414, %v1415
    %v1418 = vrot.slane %v1417, 1
    %vm1419 = vcmp.lt.s32.totalorder %v1417, %v1418
    %v1420 = vsel %vm1419, %v1417, %v1418
    %vm1421 = vcmask 1041409
    %v1422 = vsel %vm1421, %v1420, %v1381
    %s1423 = scalar_lea.vmem [#allocation14], 2
    %1424 = vst [vmem:[%s1423] sm:$0x3] %v1422
    %s1425 = scalar_lea.vmem [#allocation5], 2
    %v1426 = vld [vmem:[%s1425] sm:$0x3]
    %vm1427 = vcmp.gt.f32.partialorder %v1426, 0.0
    %v1430 = vsel %vm1421, %v1278, %v1257
    %v1432 = vsel %vm1427, %v1430, %v1003
    %s1433 = scalar_lea.vmem [#allocation4], 4
    %v1434 = vld [vmem:[%s1433] sm:$0x3]
    %v1435 = vlaneseq
    %v1436 = vshrl.u32 %v1435, 7
    %v1437 = vsub.s32 0, %v1436
    %v1438 = vrot.slane %v1432, %v1437
    %1440 = vbcast.lane.b32.xlu0 %v1438, 256
    %v1441 = vpop.permute.xlu0 %1440
    %s1443 = sor.u32 256, 8
    %1444 = vbcast.lane.b32.xlu0 %v1438, %s1443
    %v1445 = vpop.permute.xlu0 %1444
    %s1447 = sor.u32 256, 16
    %1448 = vbcast.lane.b32.xlu0 %v1438, %s1447
    %v1449 = vpop.permute.xlu0 %1448
    %s1451 = sor.u32 256, 24
    %1452 = vbcast.lane.b32.xlu0 %v1438, %s1451
    %v1453 = vpop.permute.xlu0 %1452
    %s1455 = sor.u32 256, 32
    %1456 = vbcast.lane.b32.xlu0 %v1438, %s1455
    %v1457 = vpop.permute.xlu0 %1456
    %s1459 = sor.u32 256, 40
    %1460 = vbcast.lane.b32.xlu0 %v1438, %s1459
    %v1461 = vpop.permute.xlu0 %1460
    %s1463 = sor.u32 256, 48
    %1464 = vbcast.lane.b32.xlu0 %v1438, %s1463
    %v1465 = vpop.permute.xlu0 %1464
    %s1467 = sor.u32 256, 56
    %1468 = vbcast.lane.b32.xlu0 %v1438, %s1467
    %v1469 = vpop.permute.xlu0 %1468
    %s1471 = sor.u32 256, 64
    %1472 = vbcast.lane.b32.xlu0 %v1438, %s1471
    %v1473 = vpop.permute.xlu0 %1472
    %s1475 = sor.u32 256, 72
    %1476 = vbcast.lane.b32.xlu0 %v1438, %s1475
    %v1477 = vpop.permute.xlu0 %1476
    %s1479 = sor.u32 256, 80
    %1480 = vbcast.lane.b32.xlu0 %v1438, %s1479
    %v1481 = vpop.permute.xlu0 %1480
    %s1483 = sor.u32 256, 88
    %1484 = vbcast.lane.b32.xlu0 %v1438, %s1483
    %v1485 = vpop.permute.xlu0 %1484
    %s1487 = sor.u32 256, 96
    %1488 = vbcast.lane.b32.xlu0 %v1438, %s1487
    %v1489 = vpop.permute.xlu0 %1488
    %s1491 = sor.u32 256, 104
    %1492 = vbcast.lane.b32.xlu0 %v1438, %s1491
    %v1493 = vpop.permute.xlu0 %1492
    %s1495 = sor.u32 256, 112
    %1496 = vbcast.lane.b32.xlu0 %v1438, %s1495
    %v1497 = vpop.permute.xlu0 %1496
    %s1499 = sor.u32 256, 120
    %1500 = vbcast.lane.b32.xlu0 %v1438, %s1499
    %v1501 = vpop.permute.xlu0 %1500
    %v1502 = vlaneseq
    %v1503 = vshrl.u32 %v1502, 7
    %v1504 = vsub.s32 1, %v1503
    %v1505 = vrot.slane %v1432, %v1504
    %1507 = vbcast.lane.b32.xlu0 %v1505, 256
    %v1508 = vpop.permute.xlu0 %1507
    %s1510 = sor.u32 256, 8
    %1511 = vbcast.lane.b32.xlu0 %v1505, %s1510
    %v1512 = vpop.permute.xlu0 %1511
    %s1514 = sor.u32 256, 16
    %1515 = vbcast.lane.b32.xlu0 %v1505, %s1514
    %v1516 = vpop.permute.xlu0 %1515
    %s1518 = sor.u32 256, 24
    %1519 = vbcast.lane.b32.xlu0 %v1505, %s1518
    %v1520 = vpop.permute.xlu0 %1519
    %s1522 = sor.u32 256, 32
    %1523 = vbcast.lane.b32.xlu0 %v1505, %s1522
    %v1524 = vpop.permute.xlu0 %1523
    %s1526 = sor.u32 256, 40
    %1527 = vbcast.lane.b32.xlu0 %v1505, %s1526
    %v1528 = vpop.permute.xlu0 %1527
    %s1530 = sor.u32 256, 48
    %1531 = vbcast.lane.b32.xlu0 %v1505, %s1530
    %v1532 = vpop.permute.xlu0 %1531
    %s1534 = sor.u32 256, 56
    %1535 = vbcast.lane.b32.xlu0 %v1505, %s1534
    %v1536 = vpop.permute.xlu0 %1535
    %s1538 = sor.u32 256, 64
    %1539 = vbcast.lane.b32.xlu0 %v1505, %s1538
    %v1540 = vpop.permute.xlu0 %1539
    %s1542 = sor.u32 256, 72
    %1543 = vbcast.lane.b32.xlu0 %v1505, %s1542
    %v1544 = vpop.permute.xlu0 %1543
    %s1546 = sor.u32 256, 80
    %1547 = vbcast.lane.b32.xlu0 %v1505, %s1546
    %v1548 = vpop.permute.xlu0 %1547
    %s1550 = sor.u32 256, 88
    %1551 = vbcast.lane.b32.xlu0 %v1505, %s1550
    %v1552 = vpop.permute.xlu0 %1551
    %s1554 = sor.u32 256, 96
    %1555 = vbcast.lane.b32.xlu0 %v1505, %s1554
    %v1556 = vpop.permute.xlu0 %1555
    %s1558 = sor.u32 256, 104
    %1559 = vbcast.lane.b32.xlu0 %v1505, %s1558
    %v1560 = vpop.permute.xlu0 %1559
    %s1562 = sor.u32 256, 112
    %1563 = vbcast.lane.b32.xlu0 %v1505, %s1562
    %v1564 = vpop.permute.xlu0 %1563
    %s1566 = sor.u32 256, 120
    %1567 = vbcast.lane.b32.xlu0 %v1505, %s1566
    %v1568 = vpop.permute.xlu0 %1567
    %v1569 = vadd.f32 %v1441, %v961
    %v1570 = vadd.f32 %v1445, %v962
    %v1571 = vadd.f32 %v1449, %v963
    %v1572 = vadd.f32 %v1453, %v964
    %v1573 = vadd.f32 %v1457, %v965
    %v1574 = vadd.f32 %v1461, %v966
    %v1575 = vadd.f32 %v1465, %v967
    %v1576 = vadd.f32 %v1469, %v968
    %v1577 = vadd.f32 %v1473, %v969
    %v1578 = vadd.f32 %v1477, %v970
    %v1579 = vadd.f32 %v1481, %v971
    %v1580 = vadd.f32 %v1485, %v972
    %v1581 = vadd.f32 %v1489, %v973
    %v1582 = vadd.f32 %v1493, %v974
    %v1583 = vadd.f32 %v1497, %v975
    %v1584 = vadd.f32 %v1501, %v976
    %v1585 = vadd.f32 %v1508, %v961
    %v1586 = vadd.f32 %v1512, %v962
    %v1587 = vadd.f32 %v1516, %v963
    %v1588 = vadd.f32 %v1520, %v964
    %v1589 = vadd.f32 %v1524, %v965
    %v1590 = vadd.f32 %v1528, %v966
    %v1591 = vadd.f32 %v1532, %v967
    %v1592 = vadd.f32 %v1536, %v968
    %v1593 = vadd.f32 %v1540, %v969
    %v1594 = vadd.f32 %v1544, %v970
    %v1595 = vadd.f32 %v1548, %v971
    %v1596 = vadd.f32 %v1552, %v972
    %v1597 = vadd.f32 %v1556, %v973
    %v1598 = vadd.f32 %v1560, %v974
    %v1599 = vadd.f32 %v1564, %v975
    %v1600 = vadd.f32 %v1568, %v976
    %v1603 = vunpack.c.l.s4 1966171168
    %v1604 = vunpack.c.0.s8 %v1603
    %v1605 = vlaneseq
    %v1606 = vshrl.u32 %v1605, 7
    %v1607 = vsub.s32 %v1604, %v1606
    %v1608 = vrot.slane %v1434, %v1607
    %v1609 = vcombine.high %v1608, %v1608
    %v1611 = vunpack.c.l.s4 1966171168
    %v1612 = vunpack.c.0.s8 %v1611
    %v1613 = vlaneseq
    %v1614 = vshrl.u32 %v1613, 7
    %v1615 = vsub.s32 %v1612, %v1614
    %v1616 = vrot.slane %v1608, %v1615
    %v1618 = vunpack.c.l.s4 1966171168
    %v1619 = vunpack.c.0.s8 %v1618
    %v1620 = vlaneseq
    %v1621 = vshrl.u32 %v1620, 7
    %v1622 = vsub.s32 %v1619, %v1621
    %v1623 = vrot.slane %v1609, %v1622
    %v1624 = vlaneseq
    %v1625 = vshrl.u32 %v1624, 7
    %v1626 = vsub.s32 0, %v1625
    %v1627 = vrot.slane %v1616, %v1626
    %v1628 = vlaneseq
    %v1629 = vshrl.u32 %v1628, 7
    %v1630 = vsub.s32 0, %v1629
    %v1631 = vrot.slane %v1623, %v1630
    %v1634 = vadd.f32 %v1569, %v1627
    %v1635 = vadd.f32 %v1570, %v1627
    %v1636 = vadd.f32 %v1571, %v1627
    %v1637 = vadd.f32 %v1572, %v1627
    %v1638 = vadd.f32 %v1573, %v1627
    %v1639 = vadd.f32 %v1574, %v1627
    %v1640 = vadd.f32 %v1575, %v1627
    %v1641 = vadd.f32 %v1576, %v1627
    %v1642 = vadd.f32 %v1577, %v1627
    %v1643 = vadd.f32 %v1578, %v1627
    %v1644 = vadd.f32 %v1579, %v1627
    %v1645 = vadd.f32 %v1580, %v1627
    %v1646 = vadd.f32 %v1581, %v1627
    %v1647 = vadd.f32 %v1582, %v1627
    %v1648 = vadd.f32 %v1583, %v1627
    %v1649 = vadd.f32 %v1584, %v1627
    %v1650 = vadd.f32 %v1585, %v1631
    %v1651 = vadd.f32 %v1586, %v1631
    %v1652 = vadd.f32 %v1587, %v1631
    %v1653 = vadd.f32 %v1588, %v1631
    %v1654 = vadd.f32 %v1589, %v1631
    %v1655 = vadd.f32 %v1590, %v1631
    %v1656 = vadd.f32 %v1591, %v1631
    %v1657 = vadd.f32 %v1592, %v1631
    %v1658 = vadd.f32 %v1593, %v1631
    %v1659 = vadd.f32 %v1594, %v1631
    %v1660 = vadd.f32 %v1595, %v1631
    %v1661 = vadd.f32 %v1596, %v1631
    %v1662 = vadd.f32 %v1597, %v1631
    %v1663 = vadd.f32 %v1598, %v1631
    %v1664 = vadd.f32 %v1599, %v1631
    %v1665 = vadd.f32 %v1600, %v1631
    %v1666 = vmax.f32 %v1634, %v1636
    %v1667 = vmax.f32 %v1635, %v1637
    %v1668 = vmax.f32 %v1666, %v1638
    %v1669 = vmax.f32 %v1667, %v1639
    %v1670 = vmax.f32 %v1668, %v1640
    %v1671 = vmax.f32 %v1669, %v1641
    %v1672 = vmax.f32 %v1670, %v1642
    %v1673 = vmax.f32 %v1671, %v1643
    %v1674 = vmax.f32 %v1672, %v1644
    %v1675 = vmax.f32 %v1673, %v1645
    %v1676 = vmax.f32 %v1674, %v1646
    %v1677 = vmax.f32 %v1675, %v1647
    %v1678 = vmax.f32 %v1676, %v1648
    %v1679 = vmax.f32 %v1677, %v1649
    %v1680 = vmax.f32 %v1678, %v1679
    %v1681 = vrot.slane %v1680, 4
    %v1682 = vmax.f32 %v1680, %v1681
    %v1683 = vrot.slane %v1682, 2
    %v1684 = vmax.f32 %v1682, %v1683
    %v1685 = vrot.slane %v1684, 1
    %v1686 = vmax.f32 %v1684, %v1685
    %v1687 = vmax.f32 %v1650, %v1652
    %v1688 = vmax.f32 %v1651, %v1653
    %v1689 = vmax.f32 %v1687, %v1654
    %v1690 = vmax.f32 %v1688, %v1655
    %v1691 = vmax.f32 %v1689, %v1656
    %v1692 = vmax.f32 %v1690, %v1657
    %v1693 = vmax.f32 %v1691, %v1658
    %v1694 = vmax.f32 %v1692, %v1659
    %v1695 = vmax.f32 %v1693, %v1660
    %v1696 = vmax.f32 %v1694, %v1661
    %v1697 = vmax.f32 %v1695, %v1662
    %v1698 = vmax.f32 %v1696, %v1663
    %v1699 = vmax.f32 %v1697, %v1664
    %v1700 = vmax.f32 %v1698, %v1665
    %v1701 = vmax.f32 %v1699, %v1700
    %v1702 = vrot.slane %v1701, 4
    %v1703 = vmax.f32 %v1701, %v1702
    %v1704 = vrot.slane %v1703, 2
    %v1705 = vmax.f32 %v1703, %v1704
    %v1706 = vrot.slane %v1705, 1
    %v1707 = vmax.f32 %v1705, %v1706
    %vm1708 = vcmp.eq.f32.partialorder %v1634, %v1686
    %vm1709 = vcmp.eq.f32.partialorder %v1635, %v1686
    %vm1710 = vcmp.eq.f32.partialorder %v1636, %v1686
    %vm1711 = vcmp.eq.f32.partialorder %v1637, %v1686
    %vm1712 = vcmp.eq.f32.partialorder %v1638, %v1686
    %vm1713 = vcmp.eq.f32.partialorder %v1639, %v1686
    %vm1714 = vcmp.eq.f32.partialorder %v1640, %v1686
    %vm1715 = vcmp.eq.f32.partialorder %v1641, %v1686
    %vm1716 = vcmp.eq.f32.partialorder %v1642, %v1686
    %vm1717 = vcmp.eq.f32.partialorder %v1643, %v1686
    %vm1718 = vcmp.eq.f32.partialorder %v1644, %v1686
    %vm1719 = vcmp.eq.f32.partialorder %v1645, %v1686
    %vm1720 = vcmp.eq.f32.partialorder %v1646, %v1686
    %vm1721 = vcmp.eq.f32.partialorder %v1647, %v1686
    %vm1722 = vcmp.eq.f32.partialorder %v1648, %v1686
    %vm1723 = vcmp.eq.f32.partialorder %v1649, %v1686
    %vm1724 = vcmp.eq.f32.partialorder %v1650, %v1707
    %vm1725 = vcmp.eq.f32.partialorder %v1651, %v1707
    %vm1726 = vcmp.eq.f32.partialorder %v1652, %v1707
    %vm1727 = vcmp.eq.f32.partialorder %v1653, %v1707
    %vm1728 = vcmp.eq.f32.partialorder %v1654, %v1707
    %vm1729 = vcmp.eq.f32.partialorder %v1655, %v1707
    %vm1730 = vcmp.eq.f32.partialorder %v1656, %v1707
    %vm1731 = vcmp.eq.f32.partialorder %v1657, %v1707
    %vm1732 = vcmp.eq.f32.partialorder %v1658, %v1707
    %vm1733 = vcmp.eq.f32.partialorder %v1659, %v1707
    %vm1734 = vcmp.eq.f32.partialorder %v1660, %v1707
    %vm1735 = vcmp.eq.f32.partialorder %v1661, %v1707
    %vm1736 = vcmp.eq.f32.partialorder %v1662, %v1707
    %vm1737 = vcmp.eq.f32.partialorder %v1663, %v1707
    %vm1738 = vcmp.eq.f32.partialorder %v1664, %v1707
    %vm1739 = vcmp.eq.f32.partialorder %v1665, %v1707
    %v1740 = vsel %vm1708, %v978, 128
    %v1741 = vsel %vm1709, %v979, 128
    %v1742 = vsel %vm1710, %v980, 128
    %v1743 = vsel %vm1711, %v981, 128
    %v1744 = vsel %vm1712, %v982, 128
    %v1745 = vsel %vm1713, %v983, 128
    %v1746 = vsel %vm1714, %v984, 128
    %v1747 = vsel %vm1715, %v985, 128
    %v1748 = vsel %vm1716, %v986, 128
    %v1749 = vsel %vm1717, %v987, 128
    %v1750 = vsel %vm1718, %v988, 128
    %v1751 = vsel %vm1719, %v989, 128
    %v1752 = vsel %vm1720, %v990, 128
    %v1753 = vsel %vm1721, %v991, 128
    %v1754 = vsel %vm1722, %v992, 128
    %v1755 = vsel %vm1723, %v993, 128
    %v1756 = vsel %vm1724, %v978, 128
    %v1757 = vsel %vm1725, %v979, 128
    %v1758 = vsel %vm1726, %v980, 128
    %v1759 = vsel %vm1727, %v981, 128
    %v1760 = vsel %vm1728, %v982, 128
    %v1761 = vsel %vm1729, %v983, 128
    %v1762 = vsel %vm1730, %v984, 128
    %v1763 = vsel %vm1731, %v985, 128
    %v1764 = vsel %vm1732, %v986, 128
    %v1765 = vsel %vm1733, %v987, 128
    %v1766 = vsel %vm1734, %v988, 128
    %v1767 = vsel %vm1735, %v989, 128
    %v1768 = vsel %vm1736, %v990, 128
    %v1769 = vsel %vm1737, %v991, 128
    %v1770 = vsel %vm1738, %v992, 128
    %v1771 = vsel %vm1739, %v993, 128
    %vm1772 = vcmp.lt.s32.totalorder %v1740, %v1742
    %v1773 = vsel %vm1772, %v1740, %v1742
    %vm1774 = vcmp.lt.s32.totalorder %v1741, %v1743
    %v1775 = vsel %vm1774, %v1741, %v1743
    %vm1776 = vcmp.lt.s32.totalorder %v1773, %v1744
    %v1777 = vsel %vm1776, %v1773, %v1744
    %vm1778 = vcmp.lt.s32.totalorder %v1775, %v1745
    %v1779 = vsel %vm1778, %v1775, %v1745
    %vm1780 = vcmp.lt.s32.totalorder %v1777, %v1746
    %v1781 = vsel %vm1780, %v1777, %v1746
    %vm1782 = vcmp.lt.s32.totalorder %v1779, %v1747
    %v1783 = vsel %vm1782, %v1779, %v1747
    %vm1784 = vcmp.lt.s32.totalorder %v1781, %v1748
    %v1785 = vsel %vm1784, %v1781, %v1748
    %vm1786 = vcmp.lt.s32.totalorder %v1783, %v1749
    %v1787 = vsel %vm1786, %v1783, %v1749
    %vm1788 = vcmp.lt.s32.totalorder %v1785, %v1750
    %v1789 = vsel %vm1788, %v1785, %v1750
    %vm1790 = vcmp.lt.s32.totalorder %v1787, %v1751
    %v1791 = vsel %vm1790, %v1787, %v1751
    %vm1792 = vcmp.lt.s32.totalorder %v1789, %v1752
    %v1793 = vsel %vm1792, %v1789, %v1752
    %vm1794 = vcmp.lt.s32.totalorder %v1791, %v1753
    %v1795 = vsel %vm1794, %v1791, %v1753
    %vm1796 = vcmp.lt.s32.totalorder %v1793, %v1754
    %v1797 = vsel %vm1796, %v1793, %v1754
    %vm1798 = vcmp.lt.s32.totalorder %v1795, %v1755
    %v1799 = vsel %vm1798, %v1795, %v1755
    %vm1800 = vcmp.lt.s32.totalorder %v1797, %v1799
    %v1801 = vsel %vm1800, %v1797, %v1799
    %v1802 = vrot.slane %v1801, 4
    %vm1803 = vcmp.lt.s32.totalorder %v1801, %v1802
    %v1804 = vsel %vm1803, %v1801, %v1802
    %v1805 = vrot.slane %v1804, 2
    %vm1806 = vcmp.lt.s32.totalorder %v1804, %v1805
    %v1807 = vsel %vm1806, %v1804, %v1805
    %v1808 = vrot.slane %v1807, 1
    %vm1809 = vcmp.lt.s32.totalorder %v1807, %v1808
    %v1810 = vsel %vm1809, %v1807, %v1808
    %vm1811 = vcmp.lt.s32.totalorder %v1756, %v1758
    %v1812 = vsel %vm1811, %v1756, %v1758
    %vm1813 = vcmp.lt.s32.totalorder %v1757, %v1759
    %v1814 = vsel %vm1813, %v1757, %v1759
    %vm1815 = vcmp.lt.s32.totalorder %v1812, %v1760
    %v1816 = vsel %vm1815, %v1812, %v1760
    %vm1817 = vcmp.lt.s32.totalorder %v1814, %v1761
    %v1818 = vsel %vm1817, %v1814, %v1761
    %vm1819 = vcmp.lt.s32.totalorder %v1816, %v1762
    %v1820 = vsel %vm1819, %v1816, %v1762
    %vm1821 = vcmp.lt.s32.totalorder %v1818, %v1763
    %v1822 = vsel %vm1821, %v1818, %v1763
    %vm1823 = vcmp.lt.s32.totalorder %v1820, %v1764
    %v1824 = vsel %vm1823, %v1820, %v1764
    %vm1825 = vcmp.lt.s32.totalorder %v1822, %v1765
    %v1826 = vsel %vm1825, %v1822, %v1765
    %vm1827 = vcmp.lt.s32.totalorder %v1824, %v1766
    %v1828 = vsel %vm1827, %v1824, %v1766
    %vm1829 = vcmp.lt.s32.totalorder %v1826, %v1767
    %v1830 = vsel %vm1829, %v1826, %v1767
    %vm1831 = vcmp.lt.s32.totalorder %v1828, %v1768
    %v1832 = vsel %vm1831, %v1828, %v1768
    %vm1833 = vcmp.lt.s32.totalorder %v1830, %v1769
    %v1834 = vsel %vm1833, %v1830, %v1769
    %vm1835 = vcmp.lt.s32.totalorder %v1832, %v1770
    %v1836 = vsel %vm1835, %v1832, %v1770
    %vm1837 = vcmp.lt.s32.totalorder %v1834, %v1771
    %v1838 = vsel %vm1837, %v1834, %v1771
    %vm1839 = vcmp.lt.s32.totalorder %v1836, %v1838
    %v1840 = vsel %vm1839, %v1836, %v1838
    %v1841 = vrot.slane %v1840, 4
    %vm1842 = vcmp.lt.s32.totalorder %v1840, %v1841
    %v1843 = vsel %vm1842, %v1840, %v1841
    %v1844 = vrot.slane %v1843, 2
    %vm1845 = vcmp.lt.s32.totalorder %v1843, %v1844
    %v1846 = vsel %vm1845, %v1843, %v1844
    %v1847 = vrot.slane %v1846, 1
    %vm1848 = vcmp.lt.s32.totalorder %v1846, %v1847
    %v1849 = vsel %vm1848, %v1846, %v1847
    %v1850 = vsel %vm1421, %v1849, %v1810
    %s1851 = scalar_lea.vmem [#allocation14], 4
    %1852 = vst [vmem:[%s1851] sm:$0x3] %v1850
    %s1853 = scalar_lea.vmem [#allocation5], 4
    %v1854 = vld [vmem:[%s1853] sm:$0x3]
    %vm1855 = vcmp.gt.f32.partialorder %v1854, 0.0
    %v1858 = vsel %vm1421, %v1707, %v1686
    %v1860 = vsel %vm1855, %v1858, %v1432
    %s1861 = scalar_lea.vmem [#allocation4], 6
    %v1862 = vld [vmem:[%s1861] sm:$0x3]
    %v1863 = vlaneseq
    %v1864 = vshrl.u32 %v1863, 7
    %v1865 = vsub.s32 0, %v1864
    %v1866 = vrot.slane %v1860, %v1865
    %1868 = vbcast.lane.b32.xlu0 %v1866, 256
    %v1869 = vpop.permute.xlu0 %1868
    %s1871 = sor.u32 256, 8
    %1872 = vbcast.lane.b32.xlu0 %v1866, %s1871
    %v1873 = vpop.permute.xlu0 %1872
    %s1875 = sor.u32 256, 16
    %1876 = vbcast.lane.b32.xlu0 %v1866, %s1875
    %v1877 = vpop.permute.xlu0 %1876
    %s1879 = sor.u32 256, 24
    %1880 = vbcast.lane.b32.xlu0 %v1866, %s1879
    %v1881 = vpop.permute.xlu0 %1880
    %s1883 = sor.u32 256, 32
    %1884 = vbcast.lane.b32.xlu0 %v1866, %s1883
    %v1885 = vpop.permute.xlu0 %1884
    %s1887 = sor.u32 256, 40
    %1888 = vbcast.lane.b32.xlu0 %v1866, %s1887
    %v1889 = vpop.permute.xlu0 %1888
    %s1891 = sor.u32 256, 48
    %1892 = vbcast.lane.b32.xlu0 %v1866, %s1891
    %v1893 = vpop.permute.xlu0 %1892
    %s1895 = sor.u32 256, 56
    %1896 = vbcast.lane.b32.xlu0 %v1866, %s1895
    %v1897 = vpop.permute.xlu0 %1896
    %s1899 = sor.u32 256, 64
    %1900 = vbcast.lane.b32.xlu0 %v1866, %s1899
    %v1901 = vpop.permute.xlu0 %1900
    %s1903 = sor.u32 256, 72
    %1904 = vbcast.lane.b32.xlu0 %v1866, %s1903
    %v1905 = vpop.permute.xlu0 %1904
    %s1907 = sor.u32 256, 80
    %1908 = vbcast.lane.b32.xlu0 %v1866, %s1907
    %v1909 = vpop.permute.xlu0 %1908
    %s1911 = sor.u32 256, 88
    %1912 = vbcast.lane.b32.xlu0 %v1866, %s1911
    %v1913 = vpop.permute.xlu0 %1912
    %s1915 = sor.u32 256, 96
    %1916 = vbcast.lane.b32.xlu0 %v1866, %s1915
    %v1917 = vpop.permute.xlu0 %1916
    %s1919 = sor.u32 256, 104
    %1920 = vbcast.lane.b32.xlu0 %v1866, %s1919
    %v1921 = vpop.permute.xlu0 %1920
    %s1923 = sor.u32 256, 112
    %1924 = vbcast.lane.b32.xlu0 %v1866, %s1923
    %v1925 = vpop.permute.xlu0 %1924
    %s1927 = sor.u32 256, 120
    %1928 = vbcast.lane.b32.xlu0 %v1866, %s1927
    %v1929 = vpop.permute.xlu0 %1928
    %v1930 = vlaneseq
    %v1931 = vshrl.u32 %v1930, 7
    %v1932 = vsub.s32 1, %v1931
    %v1933 = vrot.slane %v1860, %v1932
    %1935 = vbcast.lane.b32.xlu0 %v1933, 256
    %v1936 = vpop.permute.xlu0 %1935
    %s1938 = sor.u32 256, 8
    %1939 = vbcast.lane.b32.xlu0 %v1933, %s1938
    %v1940 = vpop.permute.xlu0 %1939
    %s1942 = sor.u32 256, 16
    %1943 = vbcast.lane.b32.xlu0 %v1933, %s1942
    %v1944 = vpop.permute.xlu0 %1943
    %s1946 = sor.u32 256, 24
    %1947 = vbcast.lane.b32.xlu0 %v1933, %s1946
    %v1948 = vpop.permute.xlu0 %1947
    %s1950 = sor.u32 256, 32
    %1951 = vbcast.lane.b32.xlu0 %v1933, %s1950
    %v1952 = vpop.permute.xlu0 %1951
    %s1954 = sor.u32 256, 40
    %1955 = vbcast.lane.b32.xlu0 %v1933, %s1954
    %v1956 = vpop.permute.xlu0 %1955
    %s1958 = sor.u32 256, 48
    %1959 = vbcast.lane.b32.xlu0 %v1933, %s1958
    %v1960 = vpop.permute.xlu0 %1959
    %s1962 = sor.u32 256, 56
    %1963 = vbcast.lane.b32.xlu0 %v1933, %s1962
    %v1964 = vpop.permute.xlu0 %1963
    %s1966 = sor.u32 256, 64
    %1967 = vbcast.lane.b32.xlu0 %v1933, %s1966
    %v1968 = vpop.permute.xlu0 %1967
    %s1970 = sor.u32 256, 72
    %1971 = vbcast.lane.b32.xlu0 %v1933, %s1970
    %v1972 = vpop.permute.xlu0 %1971
    %s1974 = sor.u32 256, 80
    %1975 = vbcast.lane.b32.xlu0 %v1933, %s1974
    %v1976 = vpop.permute.xlu0 %1975
    %s1978 = sor.u32 256, 88
    %1979 = vbcast.lane.b32.xlu0 %v1933, %s1978
    %v1980 = vpop.permute.xlu0 %1979
    %s1982 = sor.u32 256, 96
    %1983 = vbcast.lane.b32.xlu0 %v1933, %s1982
    %v1984 = vpop.permute.xlu0 %1983
    %s1986 = sor.u32 256, 104
    %1987 = vbcast.lane.b32.xlu0 %v1933, %s1986
    %v1988 = vpop.permute.xlu0 %1987
    %s1990 = sor.u32 256, 112
    %1991 = vbcast.lane.b32.xlu0 %v1933, %s1990
    %v1992 = vpop.permute.xlu0 %1991
    %s1994 = sor.u32 256, 120
    %1995 = vbcast.lane.b32.xlu0 %v1933, %s1994
    %v1996 = vpop.permute.xlu0 %1995
    %v1997 = vadd.f32 %v1869, %v961
    %v1998 = vadd.f32 %v1873, %v962
    %v1999 = vadd.f32 %v1877, %v963
    %v2000 = vadd.f32 %v1881, %v964
    %v2001 = vadd.f32 %v1885, %v965
    %v2002 = vadd.f32 %v1889, %v966
    %v2003 = vadd.f32 %v1893, %v967
    %v2004 = vadd.f32 %v1897, %v968
    %v2005 = vadd.f32 %v1901, %v969
    %v2006 = vadd.f32 %v1905, %v970
    %v2007 = vadd.f32 %v1909, %v971
    %v2008 = vadd.f32 %v1913, %v972
    %v2009 = vadd.f32 %v1917, %v973
    %v2010 = vadd.f32 %v1921, %v974
    %v2011 = vadd.f32 %v1925, %v975
    %v2012 = vadd.f32 %v1929, %v976
    %v2013 = vadd.f32 %v1936, %v961
    %v2014 = vadd.f32 %v1940, %v962
    %v2015 = vadd.f32 %v1944, %v963
    %v2016 = vadd.f32 %v1948, %v964
    %v2017 = vadd.f32 %v1952, %v965
    %v2018 = vadd.f32 %v1956, %v966
    %v2019 = vadd.f32 %v1960, %v967
    %v2020 = vadd.f32 %v1964, %v968
    %v2021 = vadd.f32 %v1968, %v969
    %v2022 = vadd.f32 %v1972, %v970
    %v2023 = vadd.f32 %v1976, %v971
    %v2024 = vadd.f32 %v1980, %v972
    %v2025 = vadd.f32 %v1984, %v973
    %v2026 = vadd.f32 %v1988, %v974
    %v2027 = vadd.f32 %v1992, %v975
    %v2028 = vadd.f32 %v1996, %v976
    %v2031 = vunpack.c.l.s4 1966171168
    %v2032 = vunpack.c.0.s8 %v2031
    %v2033 = vlaneseq
    %v2034 = vshrl.u32 %v2033, 7
    %v2035 = vsub.s32 %v2032, %v2034
    %v2036 = vrot.slane %v1862, %v2035
    %v2037 = vcombine.high %v2036, %v2036
    %v2039 = vunpack.c.l.s4 1966171168
    %v2040 = vunpack.c.0.s8 %v2039
    %v2041 = vlaneseq
    %v2042 = vshrl.u32 %v2041, 7
    %v2043 = vsub.s32 %v2040, %v2042
    %v2044 = vrot.slane %v2036, %v2043
    %v2046 = vunpack.c.l.s4 1966171168
    %v2047 = vunpack.c.0.s8 %v2046
    %v2048 = vlaneseq
    %v2049 = vshrl.u32 %v2048, 7
    %v2050 = vsub.s32 %v2047, %v2049
    %v2051 = vrot.slane %v2037, %v2050
    %v2052 = vlaneseq
    %v2053 = vshrl.u32 %v2052, 7
    %v2054 = vsub.s32 0, %v2053
    %v2055 = vrot.slane %v2044, %v2054
    %v2056 = vlaneseq
    %v2057 = vshrl.u32 %v2056, 7
    %v2058 = vsub.s32 0, %v2057
    %v2059 = vrot.slane %v2051, %v2058
    %v2062 = vadd.f32 %v1997, %v2055
    %v2063 = vadd.f32 %v1998, %v2055
    %v2064 = vadd.f32 %v1999, %v2055
    %v2065 = vadd.f32 %v2000, %v2055
    %v2066 = vadd.f32 %v2001, %v2055
    %v2067 = vadd.f32 %v2002, %v2055
    %v2068 = vadd.f32 %v2003, %v2055
    %v2069 = vadd.f32 %v2004, %v2055
    %v2070 = vadd.f32 %v2005, %v2055
    %v2071 = vadd.f32 %v2006, %v2055
    %v2072 = vadd.f32 %v2007, %v2055
    %v2073 = vadd.f32 %v2008, %v2055
    %v2074 = vadd.f32 %v2009, %v2055
    %v2075 = vadd.f32 %v2010, %v2055
    %v2076 = vadd.f32 %v2011, %v2055
    %v2077 = vadd.f32 %v2012, %v2055
    %v2078 = vadd.f32 %v2013, %v2059
    %v2079 = vadd.f32 %v2014, %v2059
    %v2080 = vadd.f32 %v2015, %v2059
    %v2081 = vadd.f32 %v2016, %v2059
    %v2082 = vadd.f32 %v2017, %v2059
    %v2083 = vadd.f32 %v2018, %v2059
    %v2084 = vadd.f32 %v2019, %v2059
    %v2085 = vadd.f32 %v2020, %v2059
    %v2086 = vadd.f32 %v2021, %v2059
    %v2087 = vadd.f32 %v2022, %v2059
    %v2088 = vadd.f32 %v2023, %v2059
    %v2089 = vadd.f32 %v2024, %v2059
    %v2090 = vadd.f32 %v2025, %v2059
    %v2091 = vadd.f32 %v2026, %v2059
    %v2092 = vadd.f32 %v2027, %v2059
    %v2093 = vadd.f32 %v2028, %v2059
    %v2094 = vmax.f32 %v2062, %v2064
    %v2095 = vmax.f32 %v2063, %v2065
    %v2096 = vmax.f32 %v2094, %v2066
    %v2097 = vmax.f32 %v2095, %v2067
    %v2098 = vmax.f32 %v2096, %v2068
    %v2099 = vmax.f32 %v2097, %v2069
    %v2100 = vmax.f32 %v2098, %v2070
    %v2101 = vmax.f32 %v2099, %v2071
    %v2102 = vmax.f32 %v2100, %v2072
    %v2103 = vmax.f32 %v2101, %v2073
    %v2104 = vmax.f32 %v2102, %v2074
    %v2105 = vmax.f32 %v2103, %v2075
    %v2106 = vmax.f32 %v2104, %v2076
    %v2107 = vmax.f32 %v2105, %v2077
    %v2108 = vmax.f32 %v2106, %v2107
    %v2109 = vrot.slane %v2108, 4
    %v2110 = vmax.f32 %v2108, %v2109
    %v2111 = vrot.slane %v2110, 2
    %v2112 = vmax.f32 %v2110, %v2111
    %v2113 = vrot.slane %v2112, 1
    %v2114 = vmax.f32 %v2112, %v2113
    %v2115 = vmax.f32 %v2078, %v2080
    %v2116 = vmax.f32 %v2079, %v2081
    %v2117 = vmax.f32 %v2115, %v2082
    %v2118 = vmax.f32 %v2116, %v2083
    %v2119 = vmax.f32 %v2117, %v2084
    %v2120 = vmax.f32 %v2118, %v2085
    %v2121 = vmax.f32 %v2119, %v2086
    %v2122 = vmax.f32 %v2120, %v2087
    %v2123 = vmax.f32 %v2121, %v2088
    %v2124 = vmax.f32 %v2122, %v2089
    %v2125 = vmax.f32 %v2123, %v2090
    %v2126 = vmax.f32 %v2124, %v2091
    %v2127 = vmax.f32 %v2125, %v2092
    %v2128 = vmax.f32 %v2126, %v2093
    %v2129 = vmax.f32 %v2127, %v2128
    %v2130 = vrot.slane %v2129, 4
    %v2131 = vmax.f32 %v2129, %v2130
    %v2132 = vrot.slane %v2131, 2
    %v2133 = vmax.f32 %v2131, %v2132
    %v2134 = vrot.slane %v2133, 1
    %v2135 = vmax.f32 %v2133, %v2134
    %vm2136 = vcmp.eq.f32.partialorder %v2062, %v2114
    %vm2137 = vcmp.eq.f32.partialorder %v2063, %v2114
    %vm2138 = vcmp.eq.f32.partialorder %v2064, %v2114
    %vm2139 = vcmp.eq.f32.partialorder %v2065, %v2114
    %vm2140 = vcmp.eq.f32.partialorder %v2066, %v2114
    %vm2141 = vcmp.eq.f32.partialorder %v2067, %v2114
    %vm2142 = vcmp.eq.f32.partialorder %v2068, %v2114
    %vm2143 = vcmp.eq.f32.partialorder %v2069, %v2114
    %vm2144 = vcmp.eq.f32.partialorder %v2070, %v2114
    %vm2145 = vcmp.eq.f32.partialorder %v2071, %v2114
    %vm2146 = vcmp.eq.f32.partialorder %v2072, %v2114
    %vm2147 = vcmp.eq.f32.partialorder %v2073, %v2114
    %vm2148 = vcmp.eq.f32.partialorder %v2074, %v2114
    %vm2149 = vcmp.eq.f32.partialorder %v2075, %v2114
    %vm2150 = vcmp.eq.f32.partialorder %v2076, %v2114
    %vm2151 = vcmp.eq.f32.partialorder %v2077, %v2114
    %vm2152 = vcmp.eq.f32.partialorder %v2078, %v2135
    %vm2153 = vcmp.eq.f32.partialorder %v2079, %v2135
    %vm2154 = vcmp.eq.f32.partialorder %v2080, %v2135
    %vm2155 = vcmp.eq.f32.partialorder %v2081, %v2135
    %vm2156 = vcmp.eq.f32.partialorder %v2082, %v2135
    %vm2157 = vcmp.eq.f32.partialorder %v2083, %v2135
    %vm2158 = vcmp.eq.f32.partialorder %v2084, %v2135
    %vm2159 = vcmp.eq.f32.partialorder %v2085, %v2135
    %vm2160 = vcmp.eq.f32.partialorder %v2086, %v2135
    %vm2161 = vcmp.eq.f32.partialorder %v2087, %v2135
    %vm2162 = vcmp.eq.f32.partialorder %v2088, %v2135
    %vm2163 = vcmp.eq.f32.partialorder %v2089, %v2135
    %vm2164 = vcmp.eq.f32.partialorder %v2090, %v2135
    %vm2165 = vcmp.eq.f32.partialorder %v2091, %v2135
    %vm2166 = vcmp.eq.f32.partialorder %v2092, %v2135
    %vm2167 = vcmp.eq.f32.partialorder %v2093, %v2135
    %v2168 = vsel %vm2136, %v978, 128
    %v2169 = vsel %vm2137, %v979, 128
    %v2170 = vsel %vm2138, %v980, 128
    %v2171 = vsel %vm2139, %v981, 128
    %v2172 = vsel %vm2140, %v982, 128
    %v2173 = vsel %vm2141, %v983, 128
    %v2174 = vsel %vm2142, %v984, 128
    %v2175 = vsel %vm2143, %v985, 128
    %v2176 = vsel %vm2144, %v986, 128
    %v2177 = vsel %vm2145, %v987, 128
    %v2178 = vsel %vm2146, %v988, 128
    %v2179 = vsel %vm2147, %v989, 128
    %v2180 = vsel %vm2148, %v990, 128
    %v2181 = vsel %vm2149, %v991, 128
    %v2182 = vsel %vm2150, %v992, 128
    %v2183 = vsel %vm2151, %v993, 128
    %v2184 = vsel %vm2152, %v978, 128
    %v2185 = vsel %vm2153, %v979, 128
    %v2186 = vsel %vm2154, %v980, 128
    %v2187 = vsel %vm2155, %v981, 128
    %v2188 = vsel %vm2156, %v982, 128
    %v2189 = vsel %vm2157, %v983, 128
    %v2190 = vsel %vm2158, %v984, 128
    %v2191 = vsel %vm2159, %v985, 128
    %v2192 = vsel %vm2160, %v986, 128
    %v2193 = vsel %vm2161, %v987, 128
    %v2194 = vsel %vm2162, %v988, 128
    %v2195 = vsel %vm2163, %v989, 128
    %v2196 = vsel %vm2164, %v990, 128
    %v2197 = vsel %vm2165, %v991, 128
    %v2198 = vsel %vm2166, %v992, 128
    %v2199 = vsel %vm2167, %v993, 128
    %vm2200 = vcmp.lt.s32.totalorder %v2168, %v2170
    %v2201 = vsel %vm2200, %v2168, %v2170
    %vm2202 = vcmp.lt.s32.totalorder %v2169, %v2171
    %v2203 = vsel %vm2202, %v2169, %v2171
    %vm2204 = vcmp.lt.s32.totalorder %v2201, %v2172
    %v2205 = vsel %vm2204, %v2201, %v2172
    %vm2206 = vcmp.lt.s32.totalorder %v2203, %v2173
    %v2207 = vsel %vm2206, %v2203, %v2173
    %vm2208 = vcmp.lt.s32.totalorder %v2205, %v2174
    %v2209 = vsel %vm2208, %v2205, %v2174
    %vm2210 = vcmp.lt.s32.totalorder %v2207, %v2175
    %v2211 = vsel %vm2210, %v2207, %v2175
    %vm2212 = vcmp.lt.s32.totalorder %v2209, %v2176
    %v2213 = vsel %vm2212, %v2209, %v2176
    %vm2214 = vcmp.lt.s32.totalorder %v2211, %v2177
    %v2215 = vsel %vm2214, %v2211, %v2177
    %vm2216 = vcmp.lt.s32.totalorder %v2213, %v2178
    %v2217 = vsel %vm2216, %v2213, %v2178
    %vm2218 = vcmp.lt.s32.totalorder %v2215, %v2179
    %v2219 = vsel %vm2218, %v2215, %v2179
    %vm2220 = vcmp.lt.s32.totalorder %v2217, %v2180
    %v2221 = vsel %vm2220, %v2217, %v2180
    %vm2222 = vcmp.lt.s32.totalorder %v2219, %v2181
    %v2223 = vsel %vm2222, %v2219, %v2181
    %vm2224 = vcmp.lt.s32.totalorder %v2221, %v2182
    %v2225 = vsel %vm2224, %v2221, %v2182
    %vm2226 = vcmp.lt.s32.totalorder %v2223, %v2183
    %v2227 = vsel %vm2226, %v2223, %v2183
    %vm2228 = vcmp.lt.s32.totalorder %v2225, %v2227
    %v2229 = vsel %vm2228, %v2225, %v2227
    %v2230 = vrot.slane %v2229, 4
    %vm2231 = vcmp.lt.s32.totalorder %v2229, %v2230
    %v2232 = vsel %vm2231, %v2229, %v2230
    %v2233 = vrot.slane %v2232, 2
    %vm2234 = vcmp.lt.s32.totalorder %v2232, %v2233
    %v2235 = vsel %vm2234, %v2232, %v2233
    %v2236 = vrot.slane %v2235, 1
    %vm2237 = vcmp.lt.s32.totalorder %v2235, %v2236
    %v2238 = vsel %vm2237, %v2235, %v2236
    %vm2239 = vcmp.lt.s32.totalorder %v2184, %v2186
    %v2240 = vsel %vm2239, %v2184, %v2186
    %vm2241 = vcmp.lt.s32.totalorder %v2185, %v2187
    %v2242 = vsel %vm2241, %v2185, %v2187
    %vm2243 = vcmp.lt.s32.totalorder %v2240, %v2188
    %v2244 = vsel %vm2243, %v2240, %v2188
    %vm2245 = vcmp.lt.s32.totalorder %v2242, %v2189
    %v2246 = vsel %vm2245, %v2242, %v2189
    %vm2247 = vcmp.lt.s32.totalorder %v2244, %v2190
    %v2248 = vsel %vm2247, %v2244, %v2190
    %vm2249 = vcmp.lt.s32.totalorder %v2246, %v2191
    %v2250 = vsel %vm2249, %v2246, %v2191
    %vm2251 = vcmp.lt.s32.totalorder %v2248, %v2192
    %v2252 = vsel %vm2251, %v2248, %v2192
    %vm2253 = vcmp.lt.s32.totalorder %v2250, %v2193
    %v2254 = vsel %vm2253, %v2250, %v2193
    %vm2255 = vcmp.lt.s32.totalorder %v2252, %v2194
    %v2256 = vsel %vm2255, %v2252, %v2194
    %vm2257 = vcmp.lt.s32.totalorder %v2254, %v2195
    %v2258 = vsel %vm2257, %v2254, %v2195
    %vm2259 = vcmp.lt.s32.totalorder %v2256, %v2196
    %v2260 = vsel %vm2259, %v2256, %v2196
    %vm2261 = vcmp.lt.s32.totalorder %v2258, %v2197
    %v2262 = vsel %vm2261, %v2258, %v2197
    %vm2263 = vcmp.lt.s32.totalorder %v2260, %v2198
    %v2264 = vsel %vm2263, %v2260, %v2198
    %vm2265 = vcmp.lt.s32.totalorder %v2262, %v2199
    %v2266 = vsel %vm2265, %v2262, %v2199
    %vm2267 = vcmp.lt.s32.totalorder %v2264, %v2266
    %v2268 = vsel %vm2267, %v2264, %v2266
    %v2269 = vrot.slane %v2268, 4
    %vm2270 = vcmp.lt.s32.totalorder %v2268, %v2269
    %v2271 = vsel %vm2270, %v2268, %v2269
    %v2272 = vrot.slane %v2271, 2
    %vm2273 = vcmp.lt.s32.totalorder %v2271, %v2272
    %v2274 = vsel %vm2273, %v2271, %v2272
    %v2275 = vrot.slane %v2274, 1
    %vm2276 = vcmp.lt.s32.totalorder %v2274, %v2275
    %v2277 = vsel %vm2276, %v2274, %v2275
    %v2278 = vsel %vm1421, %v2277, %v2238
    %s2279 = scalar_lea.vmem [#allocation14], 6
    %2280 = vst [vmem:[%s2279] sm:$0x3] %v2278
    %s2281 = scalar_lea.vmem [#allocation5], 6
    %v2282 = vld [vmem:[%s2281] sm:$0x3]
    %vm2283 = vcmp.gt.f32.partialorder %v2282, 0.0
    %v2286 = vsel %vm1421, %v2135, %v2114
    %v2288 = vsel %vm2283, %v2286, %v1860
    %s2289 = scalar_lea.vmem [#allocation4], 8
    %v2290 = vld [vmem:[%s2289] sm:$0x3]
    %v2291 = vlaneseq
    %v2292 = vshrl.u32 %v2291, 7
    %v2293 = vsub.s32 0, %v2292
    %v2294 = vrot.slane %v2288, %v2293
    %2296 = vbcast.lane.b32.xlu0 %v2294, 256
    %v2297 = vpop.permute.xlu0 %2296
    %s2299 = sor.u32 256, 8
    %2300 = vbcast.lane.b32.xlu0 %v2294, %s2299
    %v2301 = vpop.permute.xlu0 %2300
    %s2303 = sor.u32 256, 16
    %2304 = vbcast.lane.b32.xlu0 %v2294, %s2303
    %v2305 = vpop.permute.xlu0 %2304
    %s2307 = sor.u32 256, 24
    %2308 = vbcast.lane.b32.xlu0 %v2294, %s2307
    %v2309 = vpop.permute.xlu0 %2308
    %s2311 = sor.u32 256, 32
    %2312 = vbcast.lane.b32.xlu0 %v2294, %s2311
    %v2313 = vpop.permute.xlu0 %2312
    %s2315 = sor.u32 256, 40
    %2316 = vbcast.lane.b32.xlu0 %v2294, %s2315
    %v2317 = vpop.permute.xlu0 %2316
    %s2319 = sor.u32 256, 48
    %2320 = vbcast.lane.b32.xlu0 %v2294, %s2319
    %v2321 = vpop.permute.xlu0 %2320
    %s2323 = sor.u32 256, 56
    %2324 = vbcast.lane.b32.xlu0 %v2294, %s2323
    %v2325 = vpop.permute.xlu0 %2324
    %s2327 = sor.u32 256, 64
    %2328 = vbcast.lane.b32.xlu0 %v2294, %s2327
    %v2329 = vpop.permute.xlu0 %2328
    %s2331 = sor.u32 256, 72
    %2332 = vbcast.lane.b32.xlu0 %v2294, %s2331
    %v2333 = vpop.permute.xlu0 %2332
    %s2335 = sor.u32 256, 80
    %2336 = vbcast.lane.b32.xlu0 %v2294, %s2335
    %v2337 = vpop.permute.xlu0 %2336
    %s2339 = sor.u32 256, 88
    %2340 = vbcast.lane.b32.xlu0 %v2294, %s2339
    %v2341 = vpop.permute.xlu0 %2340
    %s2343 = sor.u32 256, 96
    %2344 = vbcast.lane.b32.xlu0 %v2294, %s2343
    %v2345 = vpop.permute.xlu0 %2344
    %s2347 = sor.u32 256, 104
    %2348 = vbcast.lane.b32.xlu0 %v2294, %s2347
    %v2349 = vpop.permute.xlu0 %2348
    %s2351 = sor.u32 256, 112
    %2352 = vbcast.lane.b32.xlu0 %v2294, %s2351
    %v2353 = vpop.permute.xlu0 %2352
    %s2355 = sor.u32 256, 120
    %2356 = vbcast.lane.b32.xlu0 %v2294, %s2355
    %v2357 = vpop.permute.xlu0 %2356
    %v2358 = vlaneseq
    %v2359 = vshrl.u32 %v2358, 7
    %v2360 = vsub.s32 1, %v2359
    %v2361 = vrot.slane %v2288, %v2360
    %2363 = vbcast.lane.b32.xlu0 %v2361, 256
    %v2364 = vpop.permute.xlu0 %2363
    %s2366 = sor.u32 256, 8
    %2367 = vbcast.lane.b32.xlu0 %v2361, %s2366
    %v2368 = vpop.permute.xlu0 %2367
    %s2370 = sor.u32 256, 16
    %2371 = vbcast.lane.b32.xlu0 %v2361, %s2370
    %v2372 = vpop.permute.xlu0 %2371
    %s2374 = sor.u32 256, 24
    %2375 = vbcast.lane.b32.xlu0 %v2361, %s2374
    %v2376 = vpop.permute.xlu0 %2375
    %s2378 = sor.u32 256, 32
    %2379 = vbcast.lane.b32.xlu0 %v2361, %s2378
    %v2380 = vpop.permute.xlu0 %2379
    %s2382 = sor.u32 256, 40
    %2383 = vbcast.lane.b32.xlu0 %v2361, %s2382
    %v2384 = vpop.permute.xlu0 %2383
    %s2386 = sor.u32 256, 48
    %2387 = vbcast.lane.b32.xlu0 %v2361, %s2386
    %v2388 = vpop.permute.xlu0 %2387
    %s2390 = sor.u32 256, 56
    %2391 = vbcast.lane.b32.xlu0 %v2361, %s2390
    %v2392 = vpop.permute.xlu0 %2391
    %s2394 = sor.u32 256, 64
    %2395 = vbcast.lane.b32.xlu0 %v2361, %s2394
    %v2396 = vpop.permute.xlu0 %2395
    %s2398 = sor.u32 256, 72
    %2399 = vbcast.lane.b32.xlu0 %v2361, %s2398
    %v2400 = vpop.permute.xlu0 %2399
    %s2402 = sor.u32 256, 80
    %2403 = vbcast.lane.b32.xlu0 %v2361, %s2402
    %v2404 = vpop.permute.xlu0 %2403
    %s2406 = sor.u32 256, 88
    %2407 = vbcast.lane.b32.xlu0 %v2361, %s2406
    %v2408 = vpop.permute.xlu0 %2407
    %s2410 = sor.u32 256, 96
    %2411 = vbcast.lane.b32.xlu0 %v2361, %s2410
    %v2412 = vpop.permute.xlu0 %2411
    %s2414 = sor.u32 256, 104
    %2415 = vbcast.lane.b32.xlu0 %v2361, %s2414
    %v2416 = vpop.permute.xlu0 %2415
    %s2418 = sor.u32 256, 112
    %2419 = vbcast.lane.b32.xlu0 %v2361, %s2418
    %v2420 = vpop.permute.xlu0 %2419
    %s2422 = sor.u32 256, 120
    %2423 = vbcast.lane.b32.xlu0 %v2361, %s2422
    %v2424 = vpop.permute.xlu0 %2423
    %v2425 = vadd.f32 %v2297, %v961
    %v2426 = vadd.f32 %v2301, %v962
    %v2427 = vadd.f32 %v2305, %v963
    %v2428 = vadd.f32 %v2309, %v964
    %v2429 = vadd.f32 %v2313, %v965
    %v2430 = vadd.f32 %v2317, %v966
    %v2431 = vadd.f32 %v2321, %v967
    %v2432 = vadd.f32 %v2325, %v968
    %v2433 = vadd.f32 %v2329, %v969
    %v2434 = vadd.f32 %v2333, %v970
    %v2435 = vadd.f32 %v2337, %v971
    %v2436 = vadd.f32 %v2341, %v972
    %v2437 = vadd.f32 %v2345, %v973
    %v2438 = vadd.f32 %v2349, %v974
    %v2439 = vadd.f32 %v2353, %v975
    %v2440 = vadd.f32 %v2357, %v976
    %v2441 = vadd.f32 %v2364, %v961
    %v2442 = vadd.f32 %v2368, %v962
    %v2443 = vadd.f32 %v2372, %v963
    %v2444 = vadd.f32 %v2376, %v964
    %v2445 = vadd.f32 %v2380, %v965
    %v2446 = vadd.f32 %v2384, %v966
    %v2447 = vadd.f32 %v2388, %v967
    %v2448 = vadd.f32 %v2392, %v968
    %v2449 = vadd.f32 %v2396, %v969
    %v2450 = vadd.f32 %v2400, %v970
    %v2451 = vadd.f32 %v2404, %v971
    %v2452 = vadd.f32 %v2408, %v972
    %v2453 = vadd.f32 %v2412, %v973
    %v2454 = vadd.f32 %v2416, %v974
    %v2455 = vadd.f32 %v2420, %v975
    %v2456 = vadd.f32 %v2424, %v976
    %v2459 = vunpack.c.l.s4 1966171168
    %v2460 = vunpack.c.0.s8 %v2459
    %v2461 = vlaneseq
    %v2462 = vshrl.u32 %v2461, 7
    %v2463 = vsub.s32 %v2460, %v2462
    %v2464 = vrot.slane %v2290, %v2463
    %v2465 = vcombine.high %v2464, %v2464
    %v2467 = vunpack.c.l.s4 1966171168
    %v2468 = vunpack.c.0.s8 %v2467
    %v2469 = vlaneseq
    %v2470 = vshrl.u32 %v2469, 7
    %v2471 = vsub.s32 %v2468, %v2470
    %v2472 = vrot.slane %v2464, %v2471
    %v2474 = vunpack.c.l.s4 1966171168
    %v2475 = vunpack.c.0.s8 %v2474
    %v2476 = vlaneseq
    %v2477 = vshrl.u32 %v2476, 7
    %v2478 = vsub.s32 %v2475, %v2477
    %v2479 = vrot.slane %v2465, %v2478
    %v2480 = vlaneseq
    %v2481 = vshrl.u32 %v2480, 7
    %v2482 = vsub.s32 0, %v2481
    %v2483 = vrot.slane %v2472, %v2482
    %v2484 = vlaneseq
    %v2485 = vshrl.u32 %v2484, 7
    %v2486 = vsub.s32 0, %v2485
    %v2487 = vrot.slane %v2479, %v2486
    %v2490 = vadd.f32 %v2425, %v2483
    %v2491 = vadd.f32 %v2426, %v2483
    %v2492 = vadd.f32 %v2427, %v2483
    %v2493 = vadd.f32 %v2428, %v2483
    %v2494 = vadd.f32 %v2429, %v2483
    %v2495 = vadd.f32 %v2430, %v2483
    %v2496 = vadd.f32 %v2431, %v2483
    %v2497 = vadd.f32 %v2432, %v2483
    %v2498 = vadd.f32 %v2433, %v2483
    %v2499 = vadd.f32 %v2434, %v2483
    %v2500 = vadd.f32 %v2435, %v2483
    %v2501 = vadd.f32 %v2436, %v2483
    %v2502 = vadd.f32 %v2437, %v2483
    %v2503 = vadd.f32 %v2438, %v2483
    %v2504 = vadd.f32 %v2439, %v2483
    %v2505 = vadd.f32 %v2440, %v2483
    %v2506 = vadd.f32 %v2441, %v2487
    %v2507 = vadd.f32 %v2442, %v2487
    %v2508 = vadd.f32 %v2443, %v2487
    %v2509 = vadd.f32 %v2444, %v2487
    %v2510 = vadd.f32 %v2445, %v2487
    %v2511 = vadd.f32 %v2446, %v2487
    %v2512 = vadd.f32 %v2447, %v2487
    %v2513 = vadd.f32 %v2448, %v2487
    %v2514 = vadd.f32 %v2449, %v2487
    %v2515 = vadd.f32 %v2450, %v2487
    %v2516 = vadd.f32 %v2451, %v2487
    %v2517 = vadd.f32 %v2452, %v2487
    %v2518 = vadd.f32 %v2453, %v2487
    %v2519 = vadd.f32 %v2454, %v2487
    %v2520 = vadd.f32 %v2455, %v2487
    %v2521 = vadd.f32 %v2456, %v2487
    %v2522 = vmax.f32 %v2490, %v2492
    %v2523 = vmax.f32 %v2491, %v2493
    %v2524 = vmax.f32 %v2522, %v2494
    %v2525 = vmax.f32 %v2523, %v2495
    %v2526 = vmax.f32 %v2524, %v2496
    %v2527 = vmax.f32 %v2525, %v2497
    %v2528 = vmax.f32 %v2526, %v2498
    %v2529 = vmax.f32 %v2527, %v2499
    %v2530 = vmax.f32 %v2528, %v2500
    %v2531 = vmax.f32 %v2529, %v2501
    %v2532 = vmax.f32 %v2530, %v2502
    %v2533 = vmax.f32 %v2531, %v2503
    %v2534 = vmax.f32 %v2532, %v2504
    %v2535 = vmax.f32 %v2533, %v2505
    %v2536 = vmax.f32 %v2534, %v2535
    %v2537 = vrot.slane %v2536, 4
    %v2538 = vmax.f32 %v2536, %v2537
    %v2539 = vrot.slane %v2538, 2
    %v2540 = vmax.f32 %v2538, %v2539
    %v2541 = vrot.slane %v2540, 1
    %v2542 = vmax.f32 %v2540, %v2541
    %v2543 = vmax.f32 %v2506, %v2508
    %v2544 = vmax.f32 %v2507, %v2509
    %v2545 = vmax.f32 %v2543, %v2510
    %v2546 = vmax.f32 %v2544, %v2511
    %v2547 = vmax.f32 %v2545, %v2512
    %v2548 = vmax.f32 %v2546, %v2513
    %v2549 = vmax.f32 %v2547, %v2514
    %v2550 = vmax.f32 %v2548, %v2515
    %v2551 = vmax.f32 %v2549, %v2516
    %v2552 = vmax.f32 %v2550, %v2517
    %v2553 = vmax.f32 %v2551, %v2518
    %v2554 = vmax.f32 %v2552, %v2519
    %v2555 = vmax.f32 %v2553, %v2520
    %v2556 = vmax.f32 %v2554, %v2521
    %v2557 = vmax.f32 %v2555, %v2556
    %v2558 = vrot.slane %v2557, 4
    %v2559 = vmax.f32 %v2557, %v2558
    %v2560 = vrot.slane %v2559, 2
    %v2561 = vmax.f32 %v2559, %v2560
    %v2562 = vrot.slane %v2561, 1
    %v2563 = vmax.f32 %v2561, %v2562
    %vm2564 = vcmp.eq.f32.partialorder %v2490, %v2542
    %vm2565 = vcmp.eq.f32.partialorder %v2491, %v2542
    %vm2566 = vcmp.eq.f32.partialorder %v2492, %v2542
    %vm2567 = vcmp.eq.f32.partialorder %v2493, %v2542
    %vm2568 = vcmp.eq.f32.partialorder %v2494, %v2542
    %vm2569 = vcmp.eq.f32.partialorder %v2495, %v2542
    %vm2570 = vcmp.eq.f32.partialorder %v2496, %v2542
    %vm2571 = vcmp.eq.f32.partialorder %v2497, %v2542
    %vm2572 = vcmp.eq.f32.partialorder %v2498, %v2542
    %vm2573 = vcmp.eq.f32.partialorder %v2499, %v2542
    %vm2574 = vcmp.eq.f32.partialorder %v2500, %v2542
    %vm2575 = vcmp.eq.f32.partialorder %v2501, %v2542
    %vm2576 = vcmp.eq.f32.partialorder %v2502, %v2542
    %vm2577 = vcmp.eq.f32.partialorder %v2503, %v2542
    %vm2578 = vcmp.eq.f32.partialorder %v2504, %v2542
    %vm2579 = vcmp.eq.f32.partialorder %v2505, %v2542
    %vm2580 = vcmp.eq.f32.partialorder %v2506, %v2563
    %vm2581 = vcmp.eq.f32.partialorder %v2507, %v2563
    %vm2582 = vcmp.eq.f32.partialorder %v2508, %v2563
    %vm2583 = vcmp.eq.f32.partialorder %v2509, %v2563
    %vm2584 = vcmp.eq.f32.partialorder %v2510, %v2563
    %vm2585 = vcmp.eq.f32.partialorder %v2511, %v2563
    %vm2586 = vcmp.eq.f32.partialorder %v2512, %v2563
    %vm2587 = vcmp.eq.f32.partialorder %v2513, %v2563
    %vm2588 = vcmp.eq.f32.partialorder %v2514, %v2563
    %vm2589 = vcmp.eq.f32.partialorder %v2515, %v2563
    %vm2590 = vcmp.eq.f32.partialorder %v2516, %v2563
    %vm2591 = vcmp.eq.f32.partialorder %v2517, %v2563
    %vm2592 = vcmp.eq.f32.partialorder %v2518, %v2563
    %vm2593 = vcmp.eq.f32.partialorder %v2519, %v2563
    %vm2594 = vcmp.eq.f32.partialorder %v2520, %v2563
    %vm2595 = vcmp.eq.f32.partialorder %v2521, %v2563
    %v2596 = vsel %vm2564, %v978, 128
    %v2597 = vsel %vm2565, %v979, 128
    %v2598 = vsel %vm2566, %v980, 128
    %v2599 = vsel %vm2567, %v981, 128
    %v2600 = vsel %vm2568, %v982, 128
    %v2601 = vsel %vm2569, %v983, 128
    %v2602 = vsel %vm2570, %v984, 128
    %v2603 = vsel %vm2571, %v985, 128
    %v2604 = vsel %vm2572, %v986, 128
    %v2605 = vsel %vm2573, %v987, 128
    %v2606 = vsel %vm2574, %v988, 128
    %v2607 = vsel %vm2575, %v989, 128
    %v2608 = vsel %vm2576, %v990, 128
    %v2609 = vsel %vm2577, %v991, 128
    %v2610 = vsel %vm2578, %v992, 128
    %v2611 = vsel %vm2579, %v993, 128
    %v2612 = vsel %vm2580, %v978, 128
    %v2613 = vsel %vm2581, %v979, 128
    %v2614 = vsel %vm2582, %v980, 128
    %v2615 = vsel %vm2583, %v981, 128
    %v2616 = vsel %vm2584, %v982, 128
    %v2617 = vsel %vm2585, %v983, 128
    %v2618 = vsel %vm2586, %v984, 128
    %v2619 = vsel %vm2587, %v985, 128
    %v2620 = vsel %vm2588, %v986, 128
    %v2621 = vsel %vm2589, %v987, 128
    %v2622 = vsel %vm2590, %v988, 128
    %v2623 = vsel %vm2591, %v989, 128
    %v2624 = vsel %vm2592, %v990, 128
    %v2625 = vsel %vm2593, %v991, 128
    %v2626 = vsel %vm2594, %v992, 128
    %v2627 = vsel %vm2595, %v993, 128
    %vm2628 = vcmp.lt.s32.totalorder %v2596, %v2598
    %v2629 = vsel %vm2628, %v2596, %v2598
    %vm2630 = vcmp.lt.s32.totalorder %v2597, %v2599
    %v2631 = vsel %vm2630, %v2597, %v2599
    %vm2632 = vcmp.lt.s32.totalorder %v2629, %v2600
    %v2633 = vsel %vm2632, %v2629, %v2600
    %vm2634 = vcmp.lt.s32.totalorder %v2631, %v2601
    %v2635 = vsel %vm2634, %v2631, %v2601
    %vm2636 = vcmp.lt.s32.totalorder %v2633, %v2602
    %v2637 = vsel %vm2636, %v2633, %v2602
    %vm2638 = vcmp.lt.s32.totalorder %v2635, %v2603
    %v2639 = vsel %vm2638, %v2635, %v2603
    %vm2640 = vcmp.lt.s32.totalorder %v2637, %v2604
    %v2641 = vsel %vm2640, %v2637, %v2604
    %vm2642 = vcmp.lt.s32.totalorder %v2639, %v2605
    %v2643 = vsel %vm2642, %v2639, %v2605
    %vm2644 = vcmp.lt.s32.totalorder %v2641, %v2606
    %v2645 = vsel %vm2644, %v2641, %v2606
    %vm2646 = vcmp.lt.s32.totalorder %v2643, %v2607
    %v2647 = vsel %vm2646, %v2643, %v2607
    %vm2648 = vcmp.lt.s32.totalorder %v2645, %v2608
    %v2649 = vsel %vm2648, %v2645, %v2608
    %vm2650 = vcmp.lt.s32.totalorder %v2647, %v2609
    %v2651 = vsel %vm2650, %v2647, %v2609
    %vm2652 = vcmp.lt.s32.totalorder %v2649, %v2610
    %v2653 = vsel %vm2652, %v2649, %v2610
    %vm2654 = vcmp.lt.s32.totalorder %v2651, %v2611
    %v2655 = vsel %vm2654, %v2651, %v2611
    %vm2656 = vcmp.lt.s32.totalorder %v2653, %v2655
    %v2657 = vsel %vm2656, %v2653, %v2655
    %v2658 = vrot.slane %v2657, 4
    %vm2659 = vcmp.lt.s32.totalorder %v2657, %v2658
    %v2660 = vsel %vm2659, %v2657, %v2658
    %v2661 = vrot.slane %v2660, 2
    %vm2662 = vcmp.lt.s32.totalorder %v2660, %v2661
    %v2663 = vsel %vm2662, %v2660, %v2661
    %v2664 = vrot.slane %v2663, 1
    %vm2665 = vcmp.lt.s32.totalorder %v2663, %v2664
    %v2666 = vsel %vm2665, %v2663, %v2664
    %vm2667 = vcmp.lt.s32.totalorder %v2612, %v2614
    %v2668 = vsel %vm2667, %v2612, %v2614
    %vm2669 = vcmp.lt.s32.totalorder %v2613, %v2615
    %v2670 = vsel %vm2669, %v2613, %v2615
    %vm2671 = vcmp.lt.s32.totalorder %v2668, %v2616
    %v2672 = vsel %vm2671, %v2668, %v2616
    %vm2673 = vcmp.lt.s32.totalorder %v2670, %v2617
    %v2674 = vsel %vm2673, %v2670, %v2617
    %vm2675 = vcmp.lt.s32.totalorder %v2672, %v2618
    %v2676 = vsel %vm2675, %v2672, %v2618
    %vm2677 = vcmp.lt.s32.totalorder %v2674, %v2619
    %v2678 = vsel %vm2677, %v2674, %v2619
    %vm2679 = vcmp.lt.s32.totalorder %v2676, %v2620
    %v2680 = vsel %vm2679, %v2676, %v2620
    %vm2681 = vcmp.lt.s32.totalorder %v2678, %v2621
    %v2682 = vsel %vm2681, %v2678, %v2621
    %vm2683 = vcmp.lt.s32.totalorder %v2680, %v2622
    %v2684 = vsel %vm2683, %v2680, %v2622
    %vm2685 = vcmp.lt.s32.totalorder %v2682, %v2623
    %v2686 = vsel %vm2685, %v2682, %v2623
    %vm2687 = vcmp.lt.s32.totalorder %v2684, %v2624
    %v2688 = vsel %vm2687, %v2684, %v2624
    %vm2689 = vcmp.lt.s32.totalorder %v2686, %v2625
    %v2690 = vsel %vm2689, %v2686, %v2625
    %vm2691 = vcmp.lt.s32.totalorder %v2688, %v2626
    %v2692 = vsel %vm2691, %v2688, %v2626
    %vm2693 = vcmp.lt.s32.totalorder %v2690, %v2627
    %v2694 = vsel %vm2693, %v2690, %v2627
    %vm2695 = vcmp.lt.s32.totalorder %v2692, %v2694
    %v2696 = vsel %vm2695, %v2692, %v2694
    %v2697 = vrot.slane %v2696, 4
    %vm2698 = vcmp.lt.s32.totalorder %v2696, %v2697
    %v2699 = vsel %vm2698, %v2696, %v2697
    %v2700 = vrot.slane %v2699, 2
    %vm2701 = vcmp.lt.s32.totalorder %v2699, %v2700
    %v2702 = vsel %vm2701, %v2699, %v2700
    %v2703 = vrot.slane %v2702, 1
    %vm2704 = vcmp.lt.s32.totalorder %v2702, %v2703
    %v2705 = vsel %vm2704, %v2702, %v2703
    %v2706 = vsel %vm1421, %v2705, %v2666
    %s2707 = scalar_lea.vmem [#allocation14], 8
    %2708 = vst [vmem:[%s2707] sm:$0x3] %v2706
    %s2709 = scalar_lea.vmem [#allocation5], 8
    %v2710 = vld [vmem:[%s2709] sm:$0x3]
    %vm2711 = vcmp.gt.f32.partialorder %v2710, 0.0
    %v2714 = vsel %vm1421, %v2563, %v2542
    %v2716 = vsel %vm2711, %v2714, %v2288
    %s2717 = scalar_lea.vmem [#allocation4], 10
    %v2718 = vld [vmem:[%s2717] sm:$0x3]
    %v2719 = vlaneseq
    %v2720 = vshrl.u32 %v2719, 7
    %v2721 = vsub.s32 0, %v2720
    %v2722 = vrot.slane %v2716, %v2721
    %2724 = vbcast.lane.b32.xlu0 %v2722, 256
    %v2725 = vpop.permute.xlu0 %2724
    %s2727 = sor.u32 256, 8
    %2728 = vbcast.lane.b32.xlu0 %v2722, %s2727
    %v2729 = vpop.permute.xlu0 %2728
    %s2731 = sor.u32 256, 16
    %2732 = vbcast.lane.b32.xlu0 %v2722, %s2731
    %v2733 = vpop.permute.xlu0 %2732
    %s2735 = sor.u32 256, 24
    %2736 = vbcast.lane.b32.xlu0 %v2722, %s2735
    %v2737 = vpop.permute.xlu0 %2736
    %s2739 = sor.u32 256, 32
    %2740 = vbcast.lane.b32.xlu0 %v2722, %s2739
    %v2741 = vpop.permute.xlu0 %2740
    %s2743 = sor.u32 256, 40
    %2744 = vbcast.lane.b32.xlu0 %v2722, %s2743
    %v2745 = vpop.permute.xlu0 %2744
    %s2747 = sor.u32 256, 48
    %2748 = vbcast.lane.b32.xlu0 %v2722, %s2747
    %v2749 = vpop.permute.xlu0 %2748
    %s2751 = sor.u32 256, 56
    %2752 = vbcast.lane.b32.xlu0 %v2722, %s2751
    %v2753 = vpop.permute.xlu0 %2752
    %s2755 = sor.u32 256, 64
    %2756 = vbcast.lane.b32.xlu0 %v2722, %s2755
    %v2757 = vpop.permute.xlu0 %2756
    %s2759 = sor.u32 256, 72
    %2760 = vbcast.lane.b32.xlu0 %v2722, %s2759
    %v2761 = vpop.permute.xlu0 %2760
    %s2763 = sor.u32 256, 80
    %2764 = vbcast.lane.b32.xlu0 %v2722, %s2763
    %v2765 = vpop.permute.xlu0 %2764
    %s2767 = sor.u32 256, 88
    %2768 = vbcast.lane.b32.xlu0 %v2722, %s2767
    %v2769 = vpop.permute.xlu0 %2768
    %s2771 = sor.u32 256, 96
    %2772 = vbcast.lane.b32.xlu0 %v2722, %s2771
    %v2773 = vpop.permute.xlu0 %2772
    %s2775 = sor.u32 256, 104
    %2776 = vbcast.lane.b32.xlu0 %v2722, %s2775
    %v2777 = vpop.permute.xlu0 %2776
    %s2779 = sor.u32 256, 112
    %2780 = vbcast.lane.b32.xlu0 %v2722, %s2779
    %v2781 = vpop.permute.xlu0 %2780
    %s2783 = sor.u32 256, 120
    %2784 = vbcast.lane.b32.xlu0 %v2722, %s2783
    %v2785 = vpop.permute.xlu0 %2784
    %v2786 = vlaneseq
    %v2787 = vshrl.u32 %v2786, 7
    %v2788 = vsub.s32 1, %v2787
    %v2789 = vrot.slane %v2716, %v2788
    %2791 = vbcast.lane.b32.xlu0 %v2789, 256
    %v2792 = vpop.permute.xlu0 %2791
    %s2794 = sor.u32 256, 8
    %2795 = vbcast.lane.b32.xlu0 %v2789, %s2794
    %v2796 = vpop.permute.xlu0 %2795
    %s2798 = sor.u32 256, 16
    %2799 = vbcast.lane.b32.xlu0 %v2789, %s2798
    %v2800 = vpop.permute.xlu0 %2799
    %s2802 = sor.u32 256, 24
    %2803 = vbcast.lane.b32.xlu0 %v2789, %s2802
    %v2804 = vpop.permute.xlu0 %2803
    %s2806 = sor.u32 256, 32
    %2807 = vbcast.lane.b32.xlu0 %v2789, %s2806
    %v2808 = vpop.permute.xlu0 %2807
    %s2810 = sor.u32 256, 40
    %2811 = vbcast.lane.b32.xlu0 %v2789, %s2810
    %v2812 = vpop.permute.xlu0 %2811
    %s2814 = sor.u32 256, 48
    %2815 = vbcast.lane.b32.xlu0 %v2789, %s2814
    %v2816 = vpop.permute.xlu0 %2815
    %s2818 = sor.u32 256, 56
    %2819 = vbcast.lane.b32.xlu0 %v2789, %s2818
    %v2820 = vpop.permute.xlu0 %2819
    %s2822 = sor.u32 256, 64
    %2823 = vbcast.lane.b32.xlu0 %v2789, %s2822
    %v2824 = vpop.permute.xlu0 %2823
    %s2826 = sor.u32 256, 72
    %2827 = vbcast.lane.b32.xlu0 %v2789, %s2826
    %v2828 = vpop.permute.xlu0 %2827
    %s2830 = sor.u32 256, 80
    %2831 = vbcast.lane.b32.xlu0 %v2789, %s2830
    %v2832 = vpop.permute.xlu0 %2831
    %s2834 = sor.u32 256, 88
    %2835 = vbcast.lane.b32.xlu0 %v2789, %s2834
    %v2836 = vpop.permute.xlu0 %2835
    %s2838 = sor.u32 256, 96
    %2839 = vbcast.lane.b32.xlu0 %v2789, %s2838
    %v2840 = vpop.permute.xlu0 %2839
    %s2842 = sor.u32 256, 104
    %2843 = vbcast.lane.b32.xlu0 %v2789, %s2842
    %v2844 = vpop.permute.xlu0 %2843
    %s2846 = sor.u32 256, 112
    %2847 = vbcast.lane.b32.xlu0 %v2789, %s2846
    %v2848 = vpop.permute.xlu0 %2847
    %s2850 = sor.u32 256, 120
    %2851 = vbcast.lane.b32.xlu0 %v2789, %s2850
    %v2852 = vpop.permute.xlu0 %2851
    %v2853 = vadd.f32 %v2725, %v961
    %v2854 = vadd.f32 %v2729, %v962
    %v2855 = vadd.f32 %v2733, %v963
    %v2856 = vadd.f32 %v2737, %v964
    %v2857 = vadd.f32 %v2741, %v965
    %v2858 = vadd.f32 %v2745, %v966
    %v2859 = vadd.f32 %v2749, %v967
    %v2860 = vadd.f32 %v2753, %v968
    %v2861 = vadd.f32 %v2757, %v969
    %v2862 = vadd.f32 %v2761, %v970
    %v2863 = vadd.f32 %v2765, %v971
    %v2864 = vadd.f32 %v2769, %v972
    %v2865 = vadd.f32 %v2773, %v973
    %v2866 = vadd.f32 %v2777, %v974
    %v2867 = vadd.f32 %v2781, %v975
    %v2868 = vadd.f32 %v2785, %v976
    %v2869 = vadd.f32 %v2792, %v961
    %v2870 = vadd.f32 %v2796, %v962
    %v2871 = vadd.f32 %v2800, %v963
    %v2872 = vadd.f32 %v2804, %v964
    %v2873 = vadd.f32 %v2808, %v965
    %v2874 = vadd.f32 %v2812, %v966
    %v2875 = vadd.f32 %v2816, %v967
    %v2876 = vadd.f32 %v2820, %v968
    %v2877 = vadd.f32 %v2824, %v969
    %v2878 = vadd.f32 %v2828, %v970
    %v2879 = vadd.f32 %v2832, %v971
    %v2880 = vadd.f32 %v2836, %v972
    %v2881 = vadd.f32 %v2840, %v973
    %v2882 = vadd.f32 %v2844, %v974
    %v2883 = vadd.f32 %v2848, %v975
    %v2884 = vadd.f32 %v2852, %v976
    %v2887 = vunpack.c.l.s4 1966171168
    %v2888 = vunpack.c.0.s8 %v2887
    %v2889 = vlaneseq
    %v2890 = vshrl.u32 %v2889, 7
    %v2891 = vsub.s32 %v2888, %v2890
    %v2892 = vrot.slane %v2718, %v2891
    %v2893 = vcombine.high %v2892, %v2892
    %v2895 = vunpack.c.l.s4 1966171168
    %v2896 = vunpack.c.0.s8 %v2895
    %v2897 = vlaneseq
    %v2898 = vshrl.u32 %v2897, 7
    %v2899 = vsub.s32 %v2896, %v2898
    %v2900 = vrot.slane %v2892, %v2899
    %v2902 = vunpack.c.l.s4 1966171168
    %v2903 = vunpack.c.0.s8 %v2902
    %v2904 = vlaneseq
    %v2905 = vshrl.u32 %v2904, 7
    %v2906 = vsub.s32 %v2903, %v2905
    %v2907 = vrot.slane %v2893, %v2906
    %v2908 = vlaneseq
    %v2909 = vshrl.u32 %v2908, 7
    %v2910 = vsub.s32 0, %v2909
    %v2911 = vrot.slane %v2900, %v2910
    %v2912 = vlaneseq
    %v2913 = vshrl.u32 %v2912, 7
    %v2914 = vsub.s32 0, %v2913
    %v2915 = vrot.slane %v2907, %v2914
    %v2918 = vadd.f32 %v2853, %v2911
    %v2919 = vadd.f32 %v2854, %v2911
    %v2920 = vadd.f32 %v2855, %v2911
    %v2921 = vadd.f32 %v2856, %v2911
    %v2922 = vadd.f32 %v2857, %v2911
    %v2923 = vadd.f32 %v2858, %v2911
    %v2924 = vadd.f32 %v2859, %v2911
    %v2925 = vadd.f32 %v2860, %v2911
    %v2926 = vadd.f32 %v2861, %v2911
    %v2927 = vadd.f32 %v2862, %v2911
    %v2928 = vadd.f32 %v2863, %v2911
    %v2929 = vadd.f32 %v2864, %v2911
    %v2930 = vadd.f32 %v2865, %v2911
    %v2931 = vadd.f32 %v2866, %v2911
    %v2932 = vadd.f32 %v2867, %v2911
    %v2933 = vadd.f32 %v2868, %v2911
    %v2934 = vadd.f32 %v2869, %v2915
    %v2935 = vadd.f32 %v2870, %v2915
    %v2936 = vadd.f32 %v2871, %v2915
    %v2937 = vadd.f32 %v2872, %v2915
    %v2938 = vadd.f32 %v2873, %v2915
    %v2939 = vadd.f32 %v2874, %v2915
    %v2940 = vadd.f32 %v2875, %v2915
    %v2941 = vadd.f32 %v2876, %v2915
    %v2942 = vadd.f32 %v2877, %v2915
    %v2943 = vadd.f32 %v2878, %v2915
    %v2944 = vadd.f32 %v2879, %v2915
    %v2945 = vadd.f32 %v2880, %v2915
    %v2946 = vadd.f32 %v2881, %v2915
    %v2947 = vadd.f32 %v2882, %v2915
    %v2948 = vadd.f32 %v2883, %v2915
    %v2949 = vadd.f32 %v2884, %v2915
    %v2950 = vmax.f32 %v2918, %v2920
    %v2951 = vmax.f32 %v2919, %v2921
    %v2952 = vmax.f32 %v2950, %v2922
    %v2953 = vmax.f32 %v2951, %v2923
    %v2954 = vmax.f32 %v2952, %v2924
    %v2955 = vmax.f32 %v2953, %v2925
    %v2956 = vmax.f32 %v2954, %v2926
    %v2957 = vmax.f32 %v2955, %v2927
    %v2958 = vmax.f32 %v2956, %v2928
    %v2959 = vmax.f32 %v2957, %v2929
    %v2960 = vmax.f32 %v2958, %v2930
    %v2961 = vmax.f32 %v2959, %v2931
    %v2962 = vmax.f32 %v2960, %v2932
    %v2963 = vmax.f32 %v2961, %v2933
    %v2964 = vmax.f32 %v2962, %v2963
    %v2965 = vrot.slane %v2964, 4
    %v2966 = vmax.f32 %v2964, %v2965
    %v2967 = vrot.slane %v2966, 2
    %v2968 = vmax.f32 %v2966, %v2967
    %v2969 = vrot.slane %v2968, 1
    %v2970 = vmax.f32 %v2968, %v2969
    %v2971 = vmax.f32 %v2934, %v2936
    %v2972 = vmax.f32 %v2935, %v2937
    %v2973 = vmax.f32 %v2971, %v2938
    %v2974 = vmax.f32 %v2972, %v2939
    %v2975 = vmax.f32 %v2973, %v2940
    %v2976 = vmax.f32 %v2974, %v2941
    %v2977 = vmax.f32 %v2975, %v2942
    %v2978 = vmax.f32 %v2976, %v2943
    %v2979 = vmax.f32 %v2977, %v2944
    %v2980 = vmax.f32 %v2978, %v2945
    %v2981 = vmax.f32 %v2979, %v2946
    %v2982 = vmax.f32 %v2980, %v2947
    %v2983 = vmax.f32 %v2981, %v2948
    %v2984 = vmax.f32 %v2982, %v2949
    %v2985 = vmax.f32 %v2983, %v2984
    %v2986 = vrot.slane %v2985, 4
    %v2987 = vmax.f32 %v2985, %v2986
    %v2988 = vrot.slane %v2987, 2
    %v2989 = vmax.f32 %v2987, %v2988
    %v2990 = vrot.slane %v2989, 1
    %v2991 = vmax.f32 %v2989, %v2990
    %vm2992 = vcmp.eq.f32.partialorder %v2918, %v2970
    %vm2993 = vcmp.eq.f32.partialorder %v2919, %v2970
    %vm2994 = vcmp.eq.f32.partialorder %v2920, %v2970
    %vm2995 = vcmp.eq.f32.partialorder %v2921, %v2970
    %vm2996 = vcmp.eq.f32.partialorder %v2922, %v2970
    %vm2997 = vcmp.eq.f32.partialorder %v2923, %v2970
    %vm2998 = vcmp.eq.f32.partialorder %v2924, %v2970
    %vm2999 = vcmp.eq.f32.partialorder %v2925, %v2970
    %vm3000 = vcmp.eq.f32.partialorder %v2926, %v2970
    %vm3001 = vcmp.eq.f32.partialorder %v2927, %v2970
    %vm3002 = vcmp.eq.f32.partialorder %v2928, %v2970
    %vm3003 = vcmp.eq.f32.partialorder %v2929, %v2970
    %vm3004 = vcmp.eq.f32.partialorder %v2930, %v2970
    %vm3005 = vcmp.eq.f32.partialorder %v2931, %v2970
    %vm3006 = vcmp.eq.f32.partialorder %v2932, %v2970
    %vm3007 = vcmp.eq.f32.partialorder %v2933, %v2970
    %vm3008 = vcmp.eq.f32.partialorder %v2934, %v2991
    %vm3009 = vcmp.eq.f32.partialorder %v2935, %v2991
    %vm3010 = vcmp.eq.f32.partialorder %v2936, %v2991
    %vm3011 = vcmp.eq.f32.partialorder %v2937, %v2991
    %vm3012 = vcmp.eq.f32.partialorder %v2938, %v2991
    %vm3013 = vcmp.eq.f32.partialorder %v2939, %v2991
    %vm3014 = vcmp.eq.f32.partialorder %v2940, %v2991
    %vm3015 = vcmp.eq.f32.partialorder %v2941, %v2991
    %vm3016 = vcmp.eq.f32.partialorder %v2942, %v2991
    %vm3017 = vcmp.eq.f32.partialorder %v2943, %v2991
    %vm3018 = vcmp.eq.f32.partialorder %v2944, %v2991
    %vm3019 = vcmp.eq.f32.partialorder %v2945, %v2991
    %vm3020 = vcmp.eq.f32.partialorder %v2946, %v2991
    %vm3021 = vcmp.eq.f32.partialorder %v2947, %v2991
    %vm3022 = vcmp.eq.f32.partialorder %v2948, %v2991
    %vm3023 = vcmp.eq.f32.partialorder %v2949, %v2991
    %v3024 = vsel %vm2992, %v978, 128
    %v3025 = vsel %vm2993, %v979, 128
    %v3026 = vsel %vm2994, %v980, 128
    %v3027 = vsel %vm2995, %v981, 128
    %v3028 = vsel %vm2996, %v982, 128
    %v3029 = vsel %vm2997, %v983, 128
    %v3030 = vsel %vm2998, %v984, 128
    %v3031 = vsel %vm2999, %v985, 128
    %v3032 = vsel %vm3000, %v986, 128
    %v3033 = vsel %vm3001, %v987, 128
    %v3034 = vsel %vm3002, %v988, 128
    %v3035 = vsel %vm3003, %v989, 128
    %v3036 = vsel %vm3004, %v990, 128
    %v3037 = vsel %vm3005, %v991, 128
    %v3038 = vsel %vm3006, %v992, 128
    %v3039 = vsel %vm3007, %v993, 128
    %v3040 = vsel %vm3008, %v978, 128
    %v3041 = vsel %vm3009, %v979, 128
    %v3042 = vsel %vm3010, %v980, 128
    %v3043 = vsel %vm3011, %v981, 128
    %v3044 = vsel %vm3012, %v982, 128
    %v3045 = vsel %vm3013, %v983, 128
    %v3046 = vsel %vm3014, %v984, 128
    %v3047 = vsel %vm3015, %v985, 128
    %v3048 = vsel %vm3016, %v986, 128
    %v3049 = vsel %vm3017, %v987, 128
    %v3050 = vsel %vm3018, %v988, 128
    %v3051 = vsel %vm3019, %v989, 128
    %v3052 = vsel %vm3020, %v990, 128
    %v3053 = vsel %vm3021, %v991, 128
    %v3054 = vsel %vm3022, %v992, 128
    %v3055 = vsel %vm3023, %v993, 128
    %vm3056 = vcmp.lt.s32.totalorder %v3024, %v3026
    %v3057 = vsel %vm3056, %v3024, %v3026
    %vm3058 = vcmp.lt.s32.totalorder %v3025, %v3027
    %v3059 = vsel %vm3058, %v3025, %v3027
    %vm3060 = vcmp.lt.s32.totalorder %v3057, %v3028
    %v3061 = vsel %vm3060, %v3057, %v3028
    %vm3062 = vcmp.lt.s32.totalorder %v3059, %v3029
    %v3063 = vsel %vm3062, %v3059, %v3029
    %vm3064 = vcmp.lt.s32.totalorder %v3061, %v3030
    %v3065 = vsel %vm3064, %v3061, %v3030
    %vm3066 = vcmp.lt.s32.totalorder %v3063, %v3031
    %v3067 = vsel %vm3066, %v3063, %v3031
    %vm3068 = vcmp.lt.s32.totalorder %v3065, %v3032
    %v3069 = vsel %vm3068, %v3065, %v3032
    %vm3070 = vcmp.lt.s32.totalorder %v3067, %v3033
    %v3071 = vsel %vm3070, %v3067, %v3033
    %vm3072 = vcmp.lt.s32.totalorder %v3069, %v3034
    %v3073 = vsel %vm3072, %v3069, %v3034
    %vm3074 = vcmp.lt.s32.totalorder %v3071, %v3035
    %v3075 = vsel %vm3074, %v3071, %v3035
    %vm3076 = vcmp.lt.s32.totalorder %v3073, %v3036
    %v3077 = vsel %vm3076, %v3073, %v3036
    %vm3078 = vcmp.lt.s32.totalorder %v3075, %v3037
    %v3079 = vsel %vm3078, %v3075, %v3037
    %vm3080 = vcmp.lt.s32.totalorder %v3077, %v3038
    %v3081 = vsel %vm3080, %v3077, %v3038
    %vm3082 = vcmp.lt.s32.totalorder %v3079, %v3039
    %v3083 = vsel %vm3082, %v3079, %v3039
    %vm3084 = vcmp.lt.s32.totalorder %v3081, %v3083
    %v3085 = vsel %vm3084, %v3081, %v3083
    %v3086 = vrot.slane %v3085, 4
    %vm3087 = vcmp.lt.s32.totalorder %v3085, %v3086
    %v3088 = vsel %vm3087, %v3085, %v3086
    %v3089 = vrot.slane %v3088, 2
    %vm3090 = vcmp.lt.s32.totalorder %v3088, %v3089
    %v3091 = vsel %vm3090, %v3088, %v3089
    %v3092 = vrot.slane %v3091, 1
    %vm3093 = vcmp.lt.s32.totalorder %v3091, %v3092
    %v3094 = vsel %vm3093, %v3091, %v3092
    %vm3095 = vcmp.lt.s32.totalorder %v3040, %v3042
    %v3096 = vsel %vm3095, %v3040, %v3042
    %vm3097 = vcmp.lt.s32.totalorder %v3041, %v3043
    %v3098 = vsel %vm3097, %v3041, %v3043
    %vm3099 = vcmp.lt.s32.totalorder %v3096, %v3044
    %v3100 = vsel %vm3099, %v3096, %v3044
    %vm3101 = vcmp.lt.s32.totalorder %v3098, %v3045
    %v3102 = vsel %vm3101, %v3098, %v3045
    %vm3103 = vcmp.lt.s32.totalorder %v3100, %v3046
    %v3104 = vsel %vm3103, %v3100, %v3046
    %vm3105 = vcmp.lt.s32.totalorder %v3102, %v3047
    %v3106 = vsel %vm3105, %v3102, %v3047
    %vm3107 = vcmp.lt.s32.totalorder %v3104, %v3048
    %v3108 = vsel %vm3107, %v3104, %v3048
    %vm3109 = vcmp.lt.s32.totalorder %v3106, %v3049
    %v3110 = vsel %vm3109, %v3106, %v3049
    %vm3111 = vcmp.lt.s32.totalorder %v3108, %v3050
    %v3112 = vsel %vm3111, %v3108, %v3050
    %vm3113 = vcmp.lt.s32.totalorder %v3110, %v3051
    %v3114 = vsel %vm3113, %v3110, %v3051
    %vm3115 = vcmp.lt.s32.totalorder %v3112, %v3052
    %v3116 = vsel %vm3115, %v3112, %v3052
    %vm3117 = vcmp.lt.s32.totalorder %v3114, %v3053
    %v3118 = vsel %vm3117, %v3114, %v3053
    %vm3119 = vcmp.lt.s32.totalorder %v3116, %v3054
    %v3120 = vsel %vm3119, %v3116, %v3054
    %vm3121 = vcmp.lt.s32.totalorder %v3118, %v3055
    %v3122 = vsel %vm3121, %v3118, %v3055
    %vm3123 = vcmp.lt.s32.totalorder %v3120, %v3122
    %v3124 = vsel %vm3123, %v3120, %v3122
    %v3125 = vrot.slane %v3124, 4
    %vm3126 = vcmp.lt.s32.totalorder %v3124, %v3125
    %v3127 = vsel %vm3126, %v3124, %v3125
    %v3128 = vrot.slane %v3127, 2
    %vm3129 = vcmp.lt.s32.totalorder %v3127, %v3128
    %v3130 = vsel %vm3129, %v3127, %v3128
    %v3131 = vrot.slane %v3130, 1
    %vm3132 = vcmp.lt.s32.totalorder %v3130, %v3131
    %v3133 = vsel %vm3132, %v3130, %v3131
    %v3134 = vsel %vm1421, %v3133, %v3094
    %s3135 = scalar_lea.vmem [#allocation14], 10
    %3136 = vst [vmem:[%s3135] sm:$0x3] %v3134
    %s3137 = scalar_lea.vmem [#allocation5], 10
    %v3138 = vld [vmem:[%s3137] sm:$0x3]
    %vm3139 = vcmp.gt.f32.partialorder %v3138, 0.0
    %v3142 = vsel %vm1421, %v2991, %v2970
    %v3144 = vsel %vm3139, %v3142, %v2716
    %s3145 = scalar_lea.vmem [#allocation4], 12
    %v3146 = vld [vmem:[%s3145] sm:$0x3]
    %v3147 = vlaneseq
    %v3148 = vshrl.u32 %v3147, 7
    %v3149 = vsub.s32 0, %v3148
    %v3150 = vrot.slane %v3144, %v3149
    %3152 = vbcast.lane.b32.xlu0 %v3150, 256
    %v3153 = vpop.permute.xlu0 %3152
    %s3155 = sor.u32 256, 8
    %3156 = vbcast.lane.b32.xlu0 %v3150, %s3155
    %v3157 = vpop.permute.xlu0 %3156
    %s3159 = sor.u32 256, 16
    %3160 = vbcast.lane.b32.xlu0 %v3150, %s3159
    %v3161 = vpop.permute.xlu0 %3160
    %s3163 = sor.u32 256, 24
    %3164 = vbcast.lane.b32.xlu0 %v3150, %s3163
    %v3165 = vpop.permute.xlu0 %3164
    %s3167 = sor.u32 256, 32
    %3168 = vbcast.lane.b32.xlu0 %v3150, %s3167
    %v3169 = vpop.permute.xlu0 %3168
    %s3171 = sor.u32 256, 40
    %3172 = vbcast.lane.b32.xlu0 %v3150, %s3171
    %v3173 = vpop.permute.xlu0 %3172
    %s3175 = sor.u32 256, 48
    %3176 = vbcast.lane.b32.xlu0 %v3150, %s3175
    %v3177 = vpop.permute.xlu0 %3176
    %s3179 = sor.u32 256, 56
    %3180 = vbcast.lane.b32.xlu0 %v3150, %s3179
    %v3181 = vpop.permute.xlu0 %3180
    %s3183 = sor.u32 256, 64
    %3184 = vbcast.lane.b32.xlu0 %v3150, %s3183
    %v3185 = vpop.permute.xlu0 %3184
    %s3187 = sor.u32 256, 72
    %3188 = vbcast.lane.b32.xlu0 %v3150, %s3187
    %v3189 = vpop.permute.xlu0 %3188
    %s3191 = sor.u32 256, 80
    %3192 = vbcast.lane.b32.xlu0 %v3150, %s3191
    %v3193 = vpop.permute.xlu0 %3192
    %s3195 = sor.u32 256, 88
    %3196 = vbcast.lane.b32.xlu0 %v3150, %s3195
    %v3197 = vpop.permute.xlu0 %3196
    %s3199 = sor.u32 256, 96
    %3200 = vbcast.lane.b32.xlu0 %v3150, %s3199
    %v3201 = vpop.permute.xlu0 %3200
    %s3203 = sor.u32 256, 104
    %3204 = vbcast.lane.b32.xlu0 %v3150, %s3203
    %v3205 = vpop.permute.xlu0 %3204
    %s3207 = sor.u32 256, 112
    %3208 = vbcast.lane.b32.xlu0 %v3150, %s3207
    %v3209 = vpop.permute.xlu0 %3208
    %s3211 = sor.u32 256, 120
    %3212 = vbcast.lane.b32.xlu0 %v3150, %s3211
    %v3213 = vpop.permute.xlu0 %3212
    %v3214 = vlaneseq
    %v3215 = vshrl.u32 %v3214, 7
    %v3216 = vsub.s32 1, %v3215
    %v3217 = vrot.slane %v3144, %v3216
    %3219 = vbcast.lane.b32.xlu0 %v3217, 256
    %v3220 = vpop.permute.xlu0 %3219
    %s3222 = sor.u32 256, 8
    %3223 = vbcast.lane.b32.xlu0 %v3217, %s3222
    %v3224 = vpop.permute.xlu0 %3223
    %s3226 = sor.u32 256, 16
    %3227 = vbcast.lane.b32.xlu0 %v3217, %s3226
    %v3228 = vpop.permute.xlu0 %3227
    %s3230 = sor.u32 256, 24
    %3231 = vbcast.lane.b32.xlu0 %v3217, %s3230
    %v3232 = vpop.permute.xlu0 %3231
    %s3234 = sor.u32 256, 32
    %3235 = vbcast.lane.b32.xlu0 %v3217, %s3234
    %v3236 = vpop.permute.xlu0 %3235
    %s3238 = sor.u32 256, 40
    %3239 = vbcast.lane.b32.xlu0 %v3217, %s3238
    %v3240 = vpop.permute.xlu0 %3239
    %s3242 = sor.u32 256, 48
    %3243 = vbcast.lane.b32.xlu0 %v3217, %s3242
    %v3244 = vpop.permute.xlu0 %3243
    %s3246 = sor.u32 256, 56
    %3247 = vbcast.lane.b32.xlu0 %v3217, %s3246
    %v3248 = vpop.permute.xlu0 %3247
    %s3250 = sor.u32 256, 64
    %3251 = vbcast.lane.b32.xlu0 %v3217, %s3250
    %v3252 = vpop.permute.xlu0 %3251
    %s3254 = sor.u32 256, 72
    %3255 = vbcast.lane.b32.xlu0 %v3217, %s3254
    %v3256 = vpop.permute.xlu0 %3255
    %s3258 = sor.u32 256, 80
    %3259 = vbcast.lane.b32.xlu0 %v3217, %s3258
    %v3260 = vpop.permute.xlu0 %3259
    %s3262 = sor.u32 256, 88
    %3263 = vbcast.lane.b32.xlu0 %v3217, %s3262
    %v3264 = vpop.permute.xlu0 %3263
    %s3266 = sor.u32 256, 96
    %3267 = vbcast.lane.b32.xlu0 %v3217, %s3266
    %v3268 = vpop.permute.xlu0 %3267
    %s3270 = sor.u32 256, 104
    %3271 = vbcast.lane.b32.xlu0 %v3217, %s3270
    %v3272 = vpop.permute.xlu0 %3271
    %s3274 = sor.u32 256, 112
    %3275 = vbcast.lane.b32.xlu0 %v3217, %s3274
    %v3276 = vpop.permute.xlu0 %3275
    %s3278 = sor.u32 256, 120
    %3279 = vbcast.lane.b32.xlu0 %v3217, %s3278
    %v3280 = vpop.permute.xlu0 %3279
    %v3281 = vadd.f32 %v3153, %v961
    %v3282 = vadd.f32 %v3157, %v962
    %v3283 = vadd.f32 %v3161, %v963
    %v3284 = vadd.f32 %v3165, %v964
    %v3285 = vadd.f32 %v3169, %v965
    %v3286 = vadd.f32 %v3173, %v966
    %v3287 = vadd.f32 %v3177, %v967
    %v3288 = vadd.f32 %v3181, %v968
    %v3289 = vadd.f32 %v3185, %v969
    %v3290 = vadd.f32 %v3189, %v970
    %v3291 = vadd.f32 %v3193, %v971
    %v3292 = vadd.f32 %v3197, %v972
    %v3293 = vadd.f32 %v3201, %v973
    %v3294 = vadd.f32 %v3205, %v974
    %v3295 = vadd.f32 %v3209, %v975
    %v3296 = vadd.f32 %v3213, %v976
    %v3297 = vadd.f32 %v3220, %v961
    %v3298 = vadd.f32 %v3224, %v962
    %v3299 = vadd.f32 %v3228, %v963
    %v3300 = vadd.f32 %v3232, %v964
    %v3301 = vadd.f32 %v3236, %v965
    %v3302 = vadd.f32 %v3240, %v966
    %v3303 = vadd.f32 %v3244, %v967
    %v3304 = vadd.f32 %v3248, %v968
    %v3305 = vadd.f32 %v3252, %v969
    %v3306 = vadd.f32 %v3256, %v970
    %v3307 = vadd.f32 %v3260, %v971
    %v3308 = vadd.f32 %v3264, %v972
    %v3309 = vadd.f32 %v3268, %v973
    %v3310 = vadd.f32 %v3272, %v974
    %v3311 = vadd.f32 %v3276, %v975
    %v3312 = vadd.f32 %v3280, %v976
    %v3315 = vunpack.c.l.s4 1966171168
    %v3316 = vunpack.c.0.s8 %v3315
    %v3317 = vlaneseq
    %v3318 = vshrl.u32 %v3317, 7
    %v3319 = vsub.s32 %v3316, %v3318
    %v3320 = vrot.slane %v3146, %v3319
    %v3321 = vcombine.high %v3320, %v3320
    %v3323 = vunpack.c.l.s4 1966171168
    %v3324 = vunpack.c.0.s8 %v3323
    %v3325 = vlaneseq
    %v3326 = vshrl.u32 %v3325, 7
    %v3327 = vsub.s32 %v3324, %v3326
    %v3328 = vrot.slane %v3320, %v3327
    %v3330 = vunpack.c.l.s4 1966171168
    %v3331 = vunpack.c.0.s8 %v3330
    %v3332 = vlaneseq
    %v3333 = vshrl.u32 %v3332, 7
    %v3334 = vsub.s32 %v3331, %v3333
    %v3335 = vrot.slane %v3321, %v3334
    %v3336 = vlaneseq
    %v3337 = vshrl.u32 %v3336, 7
    %v3338 = vsub.s32 0, %v3337
    %v3339 = vrot.slane %v3328, %v3338
    %v3340 = vlaneseq
    %v3341 = vshrl.u32 %v3340, 7
    %v3342 = vsub.s32 0, %v3341
    %v3343 = vrot.slane %v3335, %v3342
    %v3346 = vadd.f32 %v3281, %v3339
    %v3347 = vadd.f32 %v3282, %v3339
    %v3348 = vadd.f32 %v3283, %v3339
    %v3349 = vadd.f32 %v3284, %v3339
    %v3350 = vadd.f32 %v3285, %v3339
    %v3351 = vadd.f32 %v3286, %v3339
    %v3352 = vadd.f32 %v3287, %v3339
    %v3353 = vadd.f32 %v3288, %v3339
    %v3354 = vadd.f32 %v3289, %v3339
    %v3355 = vadd.f32 %v3290, %v3339
    %v3356 = vadd.f32 %v3291, %v3339
    %v3357 = vadd.f32 %v3292, %v3339
    %v3358 = vadd.f32 %v3293, %v3339
    %v3359 = vadd.f32 %v3294, %v3339
    %v3360 = vadd.f32 %v3295, %v3339
    %v3361 = vadd.f32 %v3296, %v3339
    %v3362 = vadd.f32 %v3297, %v3343
    %v3363 = vadd.f32 %v3298, %v3343
    %v3364 = vadd.f32 %v3299, %v3343
    %v3365 = vadd.f32 %v3300, %v3343
    %v3366 = vadd.f32 %v3301, %v3343
    %v3367 = vadd.f32 %v3302, %v3343
    %v3368 = vadd.f32 %v3303, %v3343
    %v3369 = vadd.f32 %v3304, %v3343
    %v3370 = vadd.f32 %v3305, %v3343
    %v3371 = vadd.f32 %v3306, %v3343
    %v3372 = vadd.f32 %v3307, %v3343
    %v3373 = vadd.f32 %v3308, %v3343
    %v3374 = vadd.f32 %v3309, %v3343
    %v3375 = vadd.f32 %v3310, %v3343
    %v3376 = vadd.f32 %v3311, %v3343
    %v3377 = vadd.f32 %v3312, %v3343
    %v3378 = vmax.f32 %v3346, %v3348
    %v3379 = vmax.f32 %v3347, %v3349
    %v3380 = vmax.f32 %v3378, %v3350
    %v3381 = vmax.f32 %v3379, %v3351
    %v3382 = vmax.f32 %v3380, %v3352
    %v3383 = vmax.f32 %v3381, %v3353
    %v3384 = vmax.f32 %v3382, %v3354
    %v3385 = vmax.f32 %v3383, %v3355
    %v3386 = vmax.f32 %v3384, %v3356
    %v3387 = vmax.f32 %v3385, %v3357
    %v3388 = vmax.f32 %v3386, %v3358
    %v3389 = vmax.f32 %v3387, %v3359
    %v3390 = vmax.f32 %v3388, %v3360
    %v3391 = vmax.f32 %v3389, %v3361
    %v3392 = vmax.f32 %v3390, %v3391
    %v3393 = vrot.slane %v3392, 4
    %v3394 = vmax.f32 %v3392, %v3393
    %v3395 = vrot.slane %v3394, 2
    %v3396 = vmax.f32 %v3394, %v3395
    %v3397 = vrot.slane %v3396, 1
    %v3398 = vmax.f32 %v3396, %v3397
    %v3399 = vmax.f32 %v3362, %v3364
    %v3400 = vmax.f32 %v3363, %v3365
    %v3401 = vmax.f32 %v3399, %v3366
    %v3402 = vmax.f32 %v3400, %v3367
    %v3403 = vmax.f32 %v3401, %v3368
    %v3404 = vmax.f32 %v3402, %v3369
    %v3405 = vmax.f32 %v3403, %v3370
    %v3406 = vmax.f32 %v3404, %v3371
    %v3407 = vmax.f32 %v3405, %v3372
    %v3408 = vmax.f32 %v3406, %v3373
    %v3409 = vmax.f32 %v3407, %v3374
    %v3410 = vmax.f32 %v3408, %v3375
    %v3411 = vmax.f32 %v3409, %v3376
    %v3412 = vmax.f32 %v3410, %v3377
    %v3413 = vmax.f32 %v3411, %v3412
    %v3414 = vrot.slane %v3413, 4
    %v3415 = vmax.f32 %v3413, %v3414
    %v3416 = vrot.slane %v3415, 2
    %v3417 = vmax.f32 %v3415, %v3416
    %v3418 = vrot.slane %v3417, 1
    %v3419 = vmax.f32 %v3417, %v3418
    %vm3420 = vcmp.eq.f32.partialorder %v3346, %v3398
    %vm3421 = vcmp.eq.f32.partialorder %v3347, %v3398
    %vm3422 = vcmp.eq.f32.partialorder %v3348, %v3398
    %vm3423 = vcmp.eq.f32.partialorder %v3349, %v3398
    %vm3424 = vcmp.eq.f32.partialorder %v3350, %v3398
    %vm3425 = vcmp.eq.f32.partialorder %v3351, %v3398
    %vm3426 = vcmp.eq.f32.partialorder %v3352, %v3398
    %vm3427 = vcmp.eq.f32.partialorder %v3353, %v3398
    %vm3428 = vcmp.eq.f32.partialorder %v3354, %v3398
    %vm3429 = vcmp.eq.f32.partialorder %v3355, %v3398
    %vm3430 = vcmp.eq.f32.partialorder %v3356, %v3398
    %vm3431 = vcmp.eq.f32.partialorder %v3357, %v3398
    %vm3432 = vcmp.eq.f32.partialorder %v3358, %v3398
    %vm3433 = vcmp.eq.f32.partialorder %v3359, %v3398
    %vm3434 = vcmp.eq.f32.partialorder %v3360, %v3398
    %vm3435 = vcmp.eq.f32.partialorder %v3361, %v3398
    %vm3436 = vcmp.eq.f32.partialorder %v3362, %v3419
    %vm3437 = vcmp.eq.f32.partialorder %v3363, %v3419
    %vm3438 = vcmp.eq.f32.partialorder %v3364, %v3419
    %vm3439 = vcmp.eq.f32.partialorder %v3365, %v3419
    %vm3440 = vcmp.eq.f32.partialorder %v3366, %v3419
    %vm3441 = vcmp.eq.f32.partialorder %v3367, %v3419
    %vm3442 = vcmp.eq.f32.partialorder %v3368, %v3419
    %vm3443 = vcmp.eq.f32.partialorder %v3369, %v3419
    %vm3444 = vcmp.eq.f32.partialorder %v3370, %v3419
    %vm3445 = vcmp.eq.f32.partialorder %v3371, %v3419
    %vm3446 = vcmp.eq.f32.partialorder %v3372, %v3419
    %vm3447 = vcmp.eq.f32.partialorder %v3373, %v3419
    %vm3448 = vcmp.eq.f32.partialorder %v3374, %v3419
    %vm3449 = vcmp.eq.f32.partialorder %v3375, %v3419
    %vm3450 = vcmp.eq.f32.partialorder %v3376, %v3419
    %vm3451 = vcmp.eq.f32.partialorder %v3377, %v3419
    %v3452 = vsel %vm3420, %v978, 128
    %v3453 = vsel %vm3421, %v979, 128
    %v3454 = vsel %vm3422, %v980, 128
    %v3455 = vsel %vm3423, %v981, 128
    %v3456 = vsel %vm3424, %v982, 128
    %v3457 = vsel %vm3425, %v983, 128
    %v3458 = vsel %vm3426, %v984, 128
    %v3459 = vsel %vm3427, %v985, 128
    %v3460 = vsel %vm3428, %v986, 128
    %v3461 = vsel %vm3429, %v987, 128
    %v3462 = vsel %vm3430, %v988, 128
    %v3463 = vsel %vm3431, %v989, 128
    %v3464 = vsel %vm3432, %v990, 128
    %v3465 = vsel %vm3433, %v991, 128
    %v3466 = vsel %vm3434, %v992, 128
    %v3467 = vsel %vm3435, %v993, 128
    %v3468 = vsel %vm3436, %v978, 128
    %v3469 = vsel %vm3437, %v979, 128
    %v3470 = vsel %vm3438, %v980, 128
    %v3471 = vsel %vm3439, %v981, 128
    %v3472 = vsel %vm3440, %v982, 128
    %v3473 = vsel %vm3441, %v983, 128
    %v3474 = vsel %vm3442, %v984, 128
    %v3475 = vsel %vm3443, %v985, 128
    %v3476 = vsel %vm3444, %v986, 128
    %v3477 = vsel %vm3445, %v987, 128
    %v3478 = vsel %vm3446, %v988, 128
    %v3479 = vsel %vm3447, %v989, 128
    %v3480 = vsel %vm3448, %v990, 128
    %v3481 = vsel %vm3449, %v991, 128
    %v3482 = vsel %vm3450, %v992, 128
    %v3483 = vsel %vm3451, %v993, 128
    %vm3484 = vcmp.lt.s32.totalorder %v3452, %v3454
    %v3485 = vsel %vm3484, %v3452, %v3454
    %vm3486 = vcmp.lt.s32.totalorder %v3453, %v3455
    %v3487 = vsel %vm3486, %v3453, %v3455
    %vm3488 = vcmp.lt.s32.totalorder %v3485, %v3456
    %v3489 = vsel %vm3488, %v3485, %v3456
    %vm3490 = vcmp.lt.s32.totalorder %v3487, %v3457
    %v3491 = vsel %vm3490, %v3487, %v3457
    %vm3492 = vcmp.lt.s32.totalorder %v3489, %v3458
    %v3493 = vsel %vm3492, %v3489, %v3458
    %vm3494 = vcmp.lt.s32.totalorder %v3491, %v3459
    %v3495 = vsel %vm3494, %v3491, %v3459
    %vm3496 = vcmp.lt.s32.totalorder %v3493, %v3460
    %v3497 = vsel %vm3496, %v3493, %v3460
    %vm3498 = vcmp.lt.s32.totalorder %v3495, %v3461
    %v3499 = vsel %vm3498, %v3495, %v3461
    %vm3500 = vcmp.lt.s32.totalorder %v3497, %v3462
    %v3501 = vsel %vm3500, %v3497, %v3462
    %vm3502 = vcmp.lt.s32.totalorder %v3499, %v3463
    %v3503 = vsel %vm3502, %v3499, %v3463
    %vm3504 = vcmp.lt.s32.totalorder %v3501, %v3464
    %v3505 = vsel %vm3504, %v3501, %v3464
    %vm3506 = vcmp.lt.s32.totalorder %v3503, %v3465
    %v3507 = vsel %vm3506, %v3503, %v3465
    %vm3508 = vcmp.lt.s32.totalorder %v3505, %v3466
    %v3509 = vsel %vm3508, %v3505, %v3466
    %vm3510 = vcmp.lt.s32.totalorder %v3507, %v3467
    %v3511 = vsel %vm3510, %v3507, %v3467
    %vm3512 = vcmp.lt.s32.totalorder %v3509, %v3511
    %v3513 = vsel %vm3512, %v3509, %v3511
    %v3514 = vrot.slane %v3513, 4
    %vm3515 = vcmp.lt.s32.totalorder %v3513, %v3514
    %v3516 = vsel %vm3515, %v3513, %v3514
    %v3517 = vrot.slane %v3516, 2
    %vm3518 = vcmp.lt.s32.totalorder %v3516, %v3517
    %v3519 = vsel %vm3518, %v3516, %v3517
    %v3520 = vrot.slane %v3519, 1
    %vm3521 = vcmp.lt.s32.totalorder %v3519, %v3520
    %v3522 = vsel %vm3521, %v3519, %v3520
    %vm3523 = vcmp.lt.s32.totalorder %v3468, %v3470
    %v3524 = vsel %vm3523, %v3468, %v3470
    %vm3525 = vcmp.lt.s32.totalorder %v3469, %v3471
    %v3526 = vsel %vm3525, %v3469, %v3471
    %vm3527 = vcmp.lt.s32.totalorder %v3524, %v3472
    %v3528 = vsel %vm3527, %v3524, %v3472
    %vm3529 = vcmp.lt.s32.totalorder %v3526, %v3473
    %v3530 = vsel %vm3529, %v3526, %v3473
    %vm3531 = vcmp.lt.s32.totalorder %v3528, %v3474
    %v3532 = vsel %vm3531, %v3528, %v3474
    %vm3533 = vcmp.lt.s32.totalorder %v3530, %v3475
    %v3534 = vsel %vm3533, %v3530, %v3475
    %vm3535 = vcmp.lt.s32.totalorder %v3532, %v3476
    %v3536 = vsel %vm3535, %v3532, %v3476
    %vm3537 = vcmp.lt.s32.totalorder %v3534, %v3477
    %v3538 = vsel %vm3537, %v3534, %v3477
    %vm3539 = vcmp.lt.s32.totalorder %v3536, %v3478
    %v3540 = vsel %vm3539, %v3536, %v3478
    %vm3541 = vcmp.lt.s32.totalorder %v3538, %v3479
    %v3542 = vsel %vm3541, %v3538, %v3479
    %vm3543 = vcmp.lt.s32.totalorder %v3540, %v3480
    %v3544 = vsel %vm3543, %v3540, %v3480
    %vm3545 = vcmp.lt.s32.totalorder %v3542, %v3481
    %v3546 = vsel %vm3545, %v3542, %v3481
    %vm3547 = vcmp.lt.s32.totalorder %v3544, %v3482
    %v3548 = vsel %vm3547, %v3544, %v3482
    %vm3549 = vcmp.lt.s32.totalorder %v3546, %v3483
    %v3550 = vsel %vm3549, %v3546, %v3483
    %vm3551 = vcmp.lt.s32.totalorder %v3548, %v3550
    %v3552 = vsel %vm3551, %v3548, %v3550
    %v3553 = vrot.slane %v3552, 4
    %vm3554 = vcmp.lt.s32.totalorder %v3552, %v3553
    %v3555 = vsel %vm3554, %v3552, %v3553
    %v3556 = vrot.slane %v3555, 2
    %vm3557 = vcmp.lt.s32.totalorder %v3555, %v3556
    %v3558 = vsel %vm3557, %v3555, %v3556
    %v3559 = vrot.slane %v3558, 1
    %vm3560 = vcmp.lt.s32.totalorder %v3558, %v3559
    %v3561 = vsel %vm3560, %v3558, %v3559
    %v3562 = vsel %vm1421, %v3561, %v3522
    %s3563 = scalar_lea.vmem [#allocation14], 12
    %3564 = vst [vmem:[%s3563] sm:$0x3] %v3562
    %s3565 = scalar_lea.vmem [#allocation5], 12
    %v3566 = vld [vmem:[%s3565] sm:$0x3]
    %vm3567 = vcmp.gt.f32.partialorder %v3566, 0.0
    %v3570 = vsel %vm1421, %v3419, %v3398
    %v3572 = vsel %vm3567, %v3570, %v3144
    %s3573 = scalar_lea.vmem [#allocation4], 14
    %v3574 = vld [vmem:[%s3573] sm:$0x3]
    %v3575 = vlaneseq
    %v3576 = vshrl.u32 %v3575, 7
    %v3577 = vsub.s32 0, %v3576
    %v3578 = vrot.slane %v3572, %v3577
    %3580 = vbcast.lane.b32.xlu0 %v3578, 256
    %v3581 = vpop.permute.xlu0 %3580
    %s3583 = sor.u32 256, 8
    %3584 = vbcast.lane.b32.xlu0 %v3578, %s3583
    %v3585 = vpop.permute.xlu0 %3584
    %s3587 = sor.u32 256, 16
    %3588 = vbcast.lane.b32.xlu0 %v3578, %s3587
    %v3589 = vpop.permute.xlu0 %3588
    %s3591 = sor.u32 256, 24
    %3592 = vbcast.lane.b32.xlu0 %v3578, %s3591
    %v3593 = vpop.permute.xlu0 %3592
    %s3595 = sor.u32 256, 32
    %3596 = vbcast.lane.b32.xlu0 %v3578, %s3595
    %v3597 = vpop.permute.xlu0 %3596
    %s3599 = sor.u32 256, 40
    %3600 = vbcast.lane.b32.xlu0 %v3578, %s3599
    %v3601 = vpop.permute.xlu0 %3600
    %s3603 = sor.u32 256, 48
    %3604 = vbcast.lane.b32.xlu0 %v3578, %s3603
    %v3605 = vpop.permute.xlu0 %3604
    %s3607 = sor.u32 256, 56
    %3608 = vbcast.lane.b32.xlu0 %v3578, %s3607
    %v3609 = vpop.permute.xlu0 %3608
    %s3611 = sor.u32 256, 64
    %3612 = vbcast.lane.b32.xlu0 %v3578, %s3611
    %v3613 = vpop.permute.xlu0 %3612
    %s3615 = sor.u32 256, 72
    %3616 = vbcast.lane.b32.xlu0 %v3578, %s3615
    %v3617 = vpop.permute.xlu0 %3616
    %s3619 = sor.u32 256, 80
    %3620 = vbcast.lane.b32.xlu0 %v3578, %s3619
    %v3621 = vpop.permute.xlu0 %3620
    %s3623 = sor.u32 256, 88
    %3624 = vbcast.lane.b32.xlu0 %v3578, %s3623
    %v3625 = vpop.permute.xlu0 %3624
    %s3627 = sor.u32 256, 96
    %3628 = vbcast.lane.b32.xlu0 %v3578, %s3627
    %v3629 = vpop.permute.xlu0 %3628
    %s3631 = sor.u32 256, 104
    %3632 = vbcast.lane.b32.xlu0 %v3578, %s3631
    %v3633 = vpop.permute.xlu0 %3632
    %s3635 = sor.u32 256, 112
    %3636 = vbcast.lane.b32.xlu0 %v3578, %s3635
    %v3637 = vpop.permute.xlu0 %3636
    %s3639 = sor.u32 256, 120
    %3640 = vbcast.lane.b32.xlu0 %v3578, %s3639
    %v3641 = vpop.permute.xlu0 %3640
    %v3642 = vlaneseq
    %v3643 = vshrl.u32 %v3642, 7
    %v3644 = vsub.s32 1, %v3643
    %v3645 = vrot.slane %v3572, %v3644
    %3647 = vbcast.lane.b32.xlu0 %v3645, 256
    %v3648 = vpop.permute.xlu0 %3647
    %s3650 = sor.u32 256, 8
    %3651 = vbcast.lane.b32.xlu0 %v3645, %s3650
    %v3652 = vpop.permute.xlu0 %3651
    %s3654 = sor.u32 256, 16
    %3655 = vbcast.lane.b32.xlu0 %v3645, %s3654
    %v3656 = vpop.permute.xlu0 %3655
    %s3658 = sor.u32 256, 24
    %3659 = vbcast.lane.b32.xlu0 %v3645, %s3658
    %v3660 = vpop.permute.xlu0 %3659
    %s3662 = sor.u32 256, 32
    %3663 = vbcast.lane.b32.xlu0 %v3645, %s3662
    %v3664 = vpop.permute.xlu0 %3663
    %s3666 = sor.u32 256, 40
    %3667 = vbcast.lane.b32.xlu0 %v3645, %s3666
    %v3668 = vpop.permute.xlu0 %3667
    %s3670 = sor.u32 256, 48
    %3671 = vbcast.lane.b32.xlu0 %v3645, %s3670
    %v3672 = vpop.permute.xlu0 %3671
    %s3674 = sor.u32 256, 56
    %3675 = vbcast.lane.b32.xlu0 %v3645, %s3674
    %v3676 = vpop.permute.xlu0 %3675
    %s3678 = sor.u32 256, 64
    %3679 = vbcast.lane.b32.xlu0 %v3645, %s3678
    %v3680 = vpop.permute.xlu0 %3679
    %s3682 = sor.u32 256, 72
    %3683 = vbcast.lane.b32.xlu0 %v3645, %s3682
    %v3684 = vpop.permute.xlu0 %3683
    %s3686 = sor.u32 256, 80
    %3687 = vbcast.lane.b32.xlu0 %v3645, %s3686
    %v3688 = vpop.permute.xlu0 %3687
    %s3690 = sor.u32 256, 88
    %3691 = vbcast.lane.b32.xlu0 %v3645, %s3690
    %v3692 = vpop.permute.xlu0 %3691
    %s3694 = sor.u32 256, 96
    %3695 = vbcast.lane.b32.xlu0 %v3645, %s3694
    %v3696 = vpop.permute.xlu0 %3695
    %s3698 = sor.u32 256, 104
    %3699 = vbcast.lane.b32.xlu0 %v3645, %s3698
    %v3700 = vpop.permute.xlu0 %3699
    %s3702 = sor.u32 256, 112
    %3703 = vbcast.lane.b32.xlu0 %v3645, %s3702
    %v3704 = vpop.permute.xlu0 %3703
    %s3706 = sor.u32 256, 120
    %3707 = vbcast.lane.b32.xlu0 %v3645, %s3706
    %v3708 = vpop.permute.xlu0 %3707
    %v3709 = vadd.f32 %v3581, %v961
    %v3710 = vadd.f32 %v3585, %v962
    %v3711 = vadd.f32 %v3589, %v963
    %v3712 = vadd.f32 %v3593, %v964
    %v3713 = vadd.f32 %v3597, %v965
    %v3714 = vadd.f32 %v3601, %v966
    %v3715 = vadd.f32 %v3605, %v967
    %v3716 = vadd.f32 %v3609, %v968
    %v3717 = vadd.f32 %v3613, %v969
    %v3718 = vadd.f32 %v3617, %v970
    %v3719 = vadd.f32 %v3621, %v971
    %v3720 = vadd.f32 %v3625, %v972
    %v3721 = vadd.f32 %v3629, %v973
    %v3722 = vadd.f32 %v3633, %v974
    %v3723 = vadd.f32 %v3637, %v975
    %v3724 = vadd.f32 %v3641, %v976
    %v3725 = vadd.f32 %v3648, %v961
    %v3726 = vadd.f32 %v3652, %v962
    %v3727 = vadd.f32 %v3656, %v963
    %v3728 = vadd.f32 %v3660, %v964
    %v3729 = vadd.f32 %v3664, %v965
    %v3730 = vadd.f32 %v3668, %v966
    %v3731 = vadd.f32 %v3672, %v967
    %v3732 = vadd.f32 %v3676, %v968
    %v3733 = vadd.f32 %v3680, %v969
    %v3734 = vadd.f32 %v3684, %v970
    %v3735 = vadd.f32 %v3688, %v971
    %v3736 = vadd.f32 %v3692, %v972
    %v3737 = vadd.f32 %v3696, %v973
    %v3738 = vadd.f32 %v3700, %v974
    %v3739 = vadd.f32 %v3704, %v975
    %v3740 = vadd.f32 %v3708, %v976
    %v3743 = vunpack.c.l.s4 1966171168
    %v3744 = vunpack.c.0.s8 %v3743
    %v3745 = vlaneseq
    %v3746 = vshrl.u32 %v3745, 7
    %v3747 = vsub.s32 %v3744, %v3746
    %v3748 = vrot.slane %v3574, %v3747
    %v3749 = vcombine.high %v3748, %v3748
    %v3751 = vunpack.c.l.s4 1966171168
    %v3752 = vunpack.c.0.s8 %v3751
    %v3753 = vlaneseq
    %v3754 = vshrl.u32 %v3753, 7
    %v3755 = vsub.s32 %v3752, %v3754
    %v3756 = vrot.slane %v3748, %v3755
    %v3758 = vunpack.c.l.s4 1966171168
    %v3759 = vunpack.c.0.s8 %v3758
    %v3760 = vlaneseq
    %v3761 = vshrl.u32 %v3760, 7
    %v3762 = vsub.s32 %v3759, %v3761
    %v3763 = vrot.slane %v3749, %v3762
    %v3764 = vlaneseq
    %v3765 = vshrl.u32 %v3764, 7
    %v3766 = vsub.s32 0, %v3765
    %v3767 = vrot.slane %v3756, %v3766
    %v3768 = vlaneseq
    %v3769 = vshrl.u32 %v3768, 7
    %v3770 = vsub.s32 0, %v3769
    %v3771 = vrot.slane %v3763, %v3770
    %v3774 = vadd.f32 %v3709, %v3767
    %v3775 = vadd.f32 %v3710, %v3767
    %v3776 = vadd.f32 %v3711, %v3767
    %v3777 = vadd.f32 %v3712, %v3767
    %v3778 = vadd.f32 %v3713, %v3767
    %v3779 = vadd.f32 %v3714, %v3767
    %v3780 = vadd.f32 %v3715, %v3767
    %v3781 = vadd.f32 %v3716, %v3767
    %v3782 = vadd.f32 %v3717, %v3767
    %v3783 = vadd.f32 %v3718, %v3767
    %v3784 = vadd.f32 %v3719, %v3767
    %v3785 = vadd.f32 %v3720, %v3767
    %v3786 = vadd.f32 %v3721, %v3767
    %v3787 = vadd.f32 %v3722, %v3767
    %v3788 = vadd.f32 %v3723, %v3767
    %v3789 = vadd.f32 %v3724, %v3767
    %v3790 = vadd.f32 %v3725, %v3771
    %v3791 = vadd.f32 %v3726, %v3771
    %v3792 = vadd.f32 %v3727, %v3771
    %v3793 = vadd.f32 %v3728, %v3771
    %v3794 = vadd.f32 %v3729, %v3771
    %v3795 = vadd.f32 %v3730, %v3771
    %v3796 = vadd.f32 %v3731, %v3771
    %v3797 = vadd.f32 %v3732, %v3771
    %v3798 = vadd.f32 %v3733, %v3771
    %v3799 = vadd.f32 %v3734, %v3771
    %v3800 = vadd.f32 %v3735, %v3771
    %v3801 = vadd.f32 %v3736, %v3771
    %v3802 = vadd.f32 %v3737, %v3771
    %v3803 = vadd.f32 %v3738, %v3771
    %v3804 = vadd.f32 %v3739, %v3771
    %v3805 = vadd.f32 %v3740, %v3771
    %v3806 = vmax.f32 %v3774, %v3776
    %v3807 = vmax.f32 %v3775, %v3777
    %v3808 = vmax.f32 %v3806, %v3778
    %v3809 = vmax.f32 %v3807, %v3779
    %v3810 = vmax.f32 %v3808, %v3780
    %v3811 = vmax.f32 %v3809, %v3781
    %v3812 = vmax.f32 %v3810, %v3782
    %v3813 = vmax.f32 %v3811, %v3783
    %v3814 = vmax.f32 %v3812, %v3784
    %v3815 = vmax.f32 %v3813, %v3785
    %v3816 = vmax.f32 %v3814, %v3786
    %v3817 = vmax.f32 %v3815, %v3787
    %v3818 = vmax.f32 %v3816, %v3788
    %v3819 = vmax.f32 %v3817, %v3789
    %v3820 = vmax.f32 %v3818, %v3819
    %v3821 = vrot.slane %v3820, 4
    %v3822 = vmax.f32 %v3820, %v3821
    %v3823 = vrot.slane %v3822, 2
    %v3824 = vmax.f32 %v3822, %v3823
    %v3825 = vrot.slane %v3824, 1
    %v3826 = vmax.f32 %v3824, %v3825
    %v3827 = vmax.f32 %v3790, %v3792
    %v3828 = vmax.f32 %v3791, %v3793
    %v3829 = vmax.f32 %v3827, %v3794
    %v3830 = vmax.f32 %v3828, %v3795
    %v3831 = vmax.f32 %v3829, %v3796
    %v3832 = vmax.f32 %v3830, %v3797
    %v3833 = vmax.f32 %v3831, %v3798
    %v3834 = vmax.f32 %v3832, %v3799
    %v3835 = vmax.f32 %v3833, %v3800
    %v3836 = vmax.f32 %v3834, %v3801
    %v3837 = vmax.f32 %v3835, %v3802
    %v3838 = vmax.f32 %v3836, %v3803
    %v3839 = vmax.f32 %v3837, %v3804
    %v3840 = vmax.f32 %v3838, %v3805
    %v3841 = vmax.f32 %v3839, %v3840
    %v3842 = vrot.slane %v3841, 4
    %v3843 = vmax.f32 %v3841, %v3842
    %v3844 = vrot.slane %v3843, 2
    %v3845 = vmax.f32 %v3843, %v3844
    %v3846 = vrot.slane %v3845, 1
    %v3847 = vmax.f32 %v3845, %v3846
    %vm3848 = vcmp.eq.f32.partialorder %v3774, %v3826
    %vm3849 = vcmp.eq.f32.partialorder %v3775, %v3826
    %vm3850 = vcmp.eq.f32.partialorder %v3776, %v3826
    %vm3851 = vcmp.eq.f32.partialorder %v3777, %v3826
    %vm3852 = vcmp.eq.f32.partialorder %v3778, %v3826
    %vm3853 = vcmp.eq.f32.partialorder %v3779, %v3826
    %vm3854 = vcmp.eq.f32.partialorder %v3780, %v3826
    %vm3855 = vcmp.eq.f32.partialorder %v3781, %v3826
    %vm3856 = vcmp.eq.f32.partialorder %v3782, %v3826
    %vm3857 = vcmp.eq.f32.partialorder %v3783, %v3826
    %vm3858 = vcmp.eq.f32.partialorder %v3784, %v3826
    %vm3859 = vcmp.eq.f32.partialorder %v3785, %v3826
    %vm3860 = vcmp.eq.f32.partialorder %v3786, %v3826
    %vm3861 = vcmp.eq.f32.partialorder %v3787, %v3826
    %vm3862 = vcmp.eq.f32.partialorder %v3788, %v3826
    %vm3863 = vcmp.eq.f32.partialorder %v3789, %v3826
    %vm3864 = vcmp.eq.f32.partialorder %v3790, %v3847
    %vm3865 = vcmp.eq.f32.partialorder %v3791, %v3847
    %vm3866 = vcmp.eq.f32.partialorder %v3792, %v3847
    %vm3867 = vcmp.eq.f32.partialorder %v3793, %v3847
    %vm3868 = vcmp.eq.f32.partialorder %v3794, %v3847
    %vm3869 = vcmp.eq.f32.partialorder %v3795, %v3847
    %vm3870 = vcmp.eq.f32.partialorder %v3796, %v3847
    %vm3871 = vcmp.eq.f32.partialorder %v3797, %v3847
    %vm3872 = vcmp.eq.f32.partialorder %v3798, %v3847
    %vm3873 = vcmp.eq.f32.partialorder %v3799, %v3847
    %vm3874 = vcmp.eq.f32.partialorder %v3800, %v3847
    %vm3875 = vcmp.eq.f32.partialorder %v3801, %v3847
    %vm3876 = vcmp.eq.f32.partialorder %v3802, %v3847
    %vm3877 = vcmp.eq.f32.partialorder %v3803, %v3847
    %vm3878 = vcmp.eq.f32.partialorder %v3804, %v3847
    %vm3879 = vcmp.eq.f32.partialorder %v3805, %v3847
    %v3880 = vsel %vm3848, %v978, 128
    %v3881 = vsel %vm3849, %v979, 128
    %v3882 = vsel %vm3850, %v980, 128
    %v3883 = vsel %vm3851, %v981, 128
    %v3884 = vsel %vm3852, %v982, 128
    %v3885 = vsel %vm3853, %v983, 128
    %v3886 = vsel %vm3854, %v984, 128
    %v3887 = vsel %vm3855, %v985, 128
    %v3888 = vsel %vm3856, %v986, 128
    %v3889 = vsel %vm3857, %v987, 128
    %v3890 = vsel %vm3858, %v988, 128
    %v3891 = vsel %vm3859, %v989, 128
    %v3892 = vsel %vm3860, %v990, 128
    %v3893 = vsel %vm3861, %v991, 128
    %v3894 = vsel %vm3862, %v992, 128
    %v3895 = vsel %vm3863, %v993, 128
    %v3896 = vsel %vm3864, %v978, 128
    %v3897 = vsel %vm3865, %v979, 128
    %v3898 = vsel %vm3866, %v980, 128
    %v3899 = vsel %vm3867, %v981, 128
    %v3900 = vsel %vm3868, %v982, 128
    %v3901 = vsel %vm3869, %v983, 128
    %v3902 = vsel %vm3870, %v984, 128
    %v3903 = vsel %vm3871, %v985, 128
    %v3904 = vsel %vm3872, %v986, 128
    %v3905 = vsel %vm3873, %v987, 128
    %v3906 = vsel %vm3874, %v988, 128
    %v3907 = vsel %vm3875, %v989, 128
    %v3908 = vsel %vm3876, %v990, 128
    %v3909 = vsel %vm3877, %v991, 128
    %v3910 = vsel %vm3878, %v992, 128
    %v3911 = vsel %vm3879, %v993, 128
    %vm3912 = vcmp.lt.s32.totalorder %v3880, %v3882
    %v3913 = vsel %vm3912, %v3880, %v3882
    %vm3914 = vcmp.lt.s32.totalorder %v3881, %v3883
    %v3915 = vsel %vm3914, %v3881, %v3883
    %vm3916 = vcmp.lt.s32.totalorder %v3913, %v3884
    %v3917 = vsel %vm3916, %v3913, %v3884
    %vm3918 = vcmp.lt.s32.totalorder %v3915, %v3885
    %v3919 = vsel %vm3918, %v3915, %v3885
    %vm3920 = vcmp.lt.s32.totalorder %v3917, %v3886
    %v3921 = vsel %vm3920, %v3917, %v3886
    %vm3922 = vcmp.lt.s32.totalorder %v3919, %v3887
    %v3923 = vsel %vm3922, %v3919, %v3887
    %vm3924 = vcmp.lt.s32.totalorder %v3921, %v3888
    %v3925 = vsel %vm3924, %v3921, %v3888
    %vm3926 = vcmp.lt.s32.totalorder %v3923, %v3889
    %v3927 = vsel %vm3926, %v3923, %v3889
    %vm3928 = vcmp.lt.s32.totalorder %v3925, %v3890
    %v3929 = vsel %vm3928, %v3925, %v3890
    %vm3930 = vcmp.lt.s32.totalorder %v3927, %v3891
    %v3931 = vsel %vm3930, %v3927, %v3891
    %vm3932 = vcmp.lt.s32.totalorder %v3929, %v3892
    %v3933 = vsel %vm3932, %v3929, %v3892
    %vm3934 = vcmp.lt.s32.totalorder %v3931, %v3893
    %v3935 = vsel %vm3934, %v3931, %v3893
    %vm3936 = vcmp.lt.s32.totalorder %v3933, %v3894
    %v3937 = vsel %vm3936, %v3933, %v3894
    %vm3938 = vcmp.lt.s32.totalorder %v3935, %v3895
    %v3939 = vsel %vm3938, %v3935, %v3895
    %vm3940 = vcmp.lt.s32.totalorder %v3937, %v3939
    %v3941 = vsel %vm3940, %v3937, %v3939
    %v3942 = vrot.slane %v3941, 4
    %vm3943 = vcmp.lt.s32.totalorder %v3941, %v3942
    %v3944 = vsel %vm3943, %v3941, %v3942
    %v3945 = vrot.slane %v3944, 2
    %vm3946 = vcmp.lt.s32.totalorder %v3944, %v3945
    %v3947 = vsel %vm3946, %v3944, %v3945
    %v3948 = vrot.slane %v3947, 1
    %vm3949 = vcmp.lt.s32.totalorder %v3947, %v3948
    %v3950 = vsel %vm3949, %v3947, %v3948
    %vm3951 = vcmp.lt.s32.totalorder %v3896, %v3898
    %v3952 = vsel %vm3951, %v3896, %v3898
    %vm3953 = vcmp.lt.s32.totalorder %v3897, %v3899
    %v3954 = vsel %vm3953, %v3897, %v3899
    %vm3955 = vcmp.lt.s32.totalorder %v3952, %v3900
    %v3956 = vsel %vm3955, %v3952, %v3900
    %vm3957 = vcmp.lt.s32.totalorder %v3954, %v3901
    %v3958 = vsel %vm3957, %v3954, %v3901
    %vm3959 = vcmp.lt.s32.totalorder %v3956, %v3902
    %v3960 = vsel %vm3959, %v3956, %v3902
    %vm3961 = vcmp.lt.s32.totalorder %v3958, %v3903
    %v3962 = vsel %vm3961, %v3958, %v3903
    %vm3963 = vcmp.lt.s32.totalorder %v3960, %v3904
    %v3964 = vsel %vm3963, %v3960, %v3904
    %vm3965 = vcmp.lt.s32.totalorder %v3962, %v3905
    %v3966 = vsel %vm3965, %v3962, %v3905
    %vm3967 = vcmp.lt.s32.totalorder %v3964, %v3906
    %v3968 = vsel %vm3967, %v3964, %v3906
    %vm3969 = vcmp.lt.s32.totalorder %v3966, %v3907
    %v3970 = vsel %vm3969, %v3966, %v3907
    %vm3971 = vcmp.lt.s32.totalorder %v3968, %v3908
    %v3972 = vsel %vm3971, %v3968, %v3908
    %vm3973 = vcmp.lt.s32.totalorder %v3970, %v3909
    %v3974 = vsel %vm3973, %v3970, %v3909
    %vm3975 = vcmp.lt.s32.totalorder %v3972, %v3910
    %v3976 = vsel %vm3975, %v3972, %v3910
    %vm3977 = vcmp.lt.s32.totalorder %v3974, %v3911
    %v3978 = vsel %vm3977, %v3974, %v3911
    %vm3979 = vcmp.lt.s32.totalorder %v3976, %v3978
    %v3980 = vsel %vm3979, %v3976, %v3978
    %v3981 = vrot.slane %v3980, 4
    %vm3982 = vcmp.lt.s32.totalorder %v3980, %v3981
    %v3983 = vsel %vm3982, %v3980, %v3981
    %v3984 = vrot.slane %v3983, 2
    %vm3985 = vcmp.lt.s32.totalorder %v3983, %v3984
    %v3986 = vsel %vm3985, %v3983, %v3984
    %v3987 = vrot.slane %v3986, 1
    %vm3988 = vcmp.lt.s32.totalorder %v3986, %v3987
    %v3989 = vsel %vm3988, %v3986, %v3987
    %v3990 = vsel %vm1421, %v3989, %v3950
    %s3991 = scalar_lea.vmem [#allocation14], 14
    %3992 = vst [vmem:[%s3991] sm:$0x3] %v3990
    %s3993 = scalar_lea.vmem [#allocation5], 14
    %v3994 = vld [vmem:[%s3993] sm:$0x3]
    %vm3995 = vcmp.gt.f32.partialorder %v3994, 0.0
    %v3998 = vsel %vm1421, %v3847, %v3826
    %v4000 = vsel %vm3995, %v3998, %v3572
    %v4001 = vld [vmem:[%s9] sm:$0x1]
    %v4003 = vlaneseq
    %v4004 = vshrl.u32 %v4003, 7
    %v4005 = vsub.s32 0, %v4004
    %v4006 = vrot.slane %v4001, %v4005
    %v4008 = vadd.f32 %v4000, %v4006
    %4009 = vst [vmem:[#allocation15] sm:$0x3] %v4008
    // Predicated region
    $region58: #{tpu_custom_call.1} parent=1 // pred_check
      _
    $region59: #{tpu_custom_call.1} parent=1 // pred_check_branch
      %4011 = sbr.rel (0) target = $region61
    $region60: #{tpu_custom_call.1} parent=1 // pred_region
      %s4013 = ssub.s32 256, 256
      %4014 = vsyncadd [#allocation8], %s4013
      %s4015 = sshll.u32 [#allocation14], 4
      %s4016 = int_to_ptr.vmem [resolvable:$true] %s4015
      %4021 = dma.vmem_to_hbm [thread:$0]  %s4016, 256, %s10, [#allocation8], 32, 32, 2
    $region61: #{tpu_custom_call.1} parent=1 // pred_fallthru
      _
    // Predicated region
    $region62: #{tpu_custom_call.1} parent=1 // pred_check
      _
    $region63: #{tpu_custom_call.1} parent=1 // pred_check_branch
      %4023 = sbr.rel (0) target = $region65
    $region64: #{tpu_custom_call.1} parent=1 // pred_region
      %s4025 = ssub.s32 32, 32
      %4026 = vsyncadd [#allocation16], %s4025
      %s4028 = sshll.u32 [#allocation15], 4
      %s4029 = int_to_ptr.vmem [resolvable:$true] %s4028
      %4031 = dma.vmem_to_hbm [thread:$0]  %s4029, 32, %s11, [#allocation16]
    $region65: #{tpu_custom_call.1} parent=1 // pred_fallthru
      _
    // Predicated region
    $region66: #{tpu_custom_call.1} parent=1 // pred_check
      _
    $region67: #{tpu_custom_call.1} parent=1 // pred_check_branch
      %4033 = sbr.rel (0) target = $region69
    $region68: #{tpu_custom_call.1} parent=1 // pred_region
      %4034 = dma.done [#allocation8], 256
    $region69: #{tpu_custom_call.1} parent=1 // pred_fallthru
      _
    // Predicated region
    $region70: #{tpu_custom_call.1} parent=1 // pred_check
      _
    $region71: #{tpu_custom_call.1} parent=1 // pred_check_branch
      %4036 = sbr.rel (0) target = $region73
    $region72: #{tpu_custom_call.1} parent=1 // pred_region
      %4037 = dma.done [#allocation16], 32
    $region73: #{tpu_custom_call.1} parent=1 // pred_fallthru
      _
    %4038 = vsyncpa [#allocation7], 1
    %4039 = vsyncpa [#allocation10], 1
    %4040 = vsyncpa [#allocation13], 1
    %4041 = vsyncpa [#allocation8], 1
    %4042 = vsyncpa [#allocation16], 1

</llo_original>
